<compile_context>
chip_gen: v7x
topology: tpu7x:2x2x1
jax: 0.10.0
libtpu: 0.0.40
codegen_flags: <defaults>
</compile_context>

<pallas_src>
import functools

import jax
import jax.numpy as jnp
import numpy as np
from jax.experimental import pallas as pl
from jax.experimental.pallas import tpu as pltpu

LANE = 128


def _autopad(k, p=None, d=1):
    """'same'-shape padding, identical to the PyTorch autopad helper (int k only)."""
    if d > 1:
        k = d * (k - 1) + 1
    if p is None:
        p = k // 2
    return p


def _round_up(x, m):
    return (x + m - 1) // m * m


# ---------------------------------------------------------------------------
# kernel: one (batch element, Cout tile) per grid step
# ---------------------------------------------------------------------------
def _conv_bn_act_kernel(x_ref, w_ref, scale_ref, shift_ref, o_ref, xp_ref, *,
                        ksize, dil, pad, cin, use_act):
    """SiLU(BN(conv2d(x))) at stride 1 on one image, one Cout tile.

    x_ref:     (1, H, W, Cin)        unpadded input block (Cin may be < 128)
    w_ref:     (k, k, Cin_p, TCo)    bf16 weights, channel-padded, Cout-tiled
    scale_ref: (1, TCo)              folded BatchNorm scale  (gamma / sqrt(var+eps))
    shift_ref: (1, TCo)              folded BatchNorm shift  (beta - mean*scale)
    o_ref:     (1, Ho, Wo, TCo)      stride-1 output tile (lane-dense)
    xp_ref:    VMEM scratch (Hp, Wp, Cin_p) f32 — zero-padded, lane-dense input
    """
    _, H, W, _ = x_ref.shape
    _, Ho, Wo, tco = o_ref.shape
    Hp, Wp, cin_p = xp_ref.shape

    # Build the zero-padded, channel-(lane-)padded input slab in VMEM.  The halo
    # and the lane padding never touch HBM.
    if pad > 0 or cin < cin_p:
        xp_ref[...] = jnp.zeros(xp_ref.shape, xp_ref.dtype)
    xp_ref[pl.ds(pad, H), pl.ds(pad, W), pl.ds(0, cin)] = x_ref[0].astype(xp_ref.dtype)

    w = w_ref[...]                                           # (k, k, Cin_p, TCo) bf16
    acc = jnp.zeros((Ho * Wo, tco), jnp.float32)

    # Hoist the sublane (W-axis) shift: one shifted strip per kx (k copies instead
    # of k*k), then each ky tap is a contiguous row window of the flattened strip.
    for kx in range(ksize):
        strip = xp_ref[pl.ds(0, Hp), pl.ds(kx * dil, Wo), pl.ds(0, cin_p)]
        strip = strip.astype(jnp.bfloat16).reshape(Hp * Wo, cin_p)
        for ky in range(ksize):
            r0 = ky * dil * Wo
            tap = strip[r0:r0 + Ho * Wo]                     # contiguous rows (cheap)
            acc = acc + jnp.dot(tap, w[ky, kx],
                                preferred_element_type=jnp.float32)

    y = acc * scale_ref[...] + shift_ref[...]                # folded inference BN
    if use_act:
        y = y * jax.nn.sigmoid(y)                            # SiLU (sigmoid -> EUP)
    o_ref[0] = y.reshape(Ho, Wo, tco).astype(o_ref.dtype)


# ---------------------------------------------------------------------------
# wrapper
# ---------------------------------------------------------------------------
def conv_forward(x_nchw, params, *, k=1, s=1, p=None, g=1, d=1, act=True):
    """Forward pass of the `Conv` module: act(bn(conv2d(x))) with 'same' autopad."""
    if g != 1:
        raise NotImplementedError("grouped convolution (g > 1) not implemented")
    pad = _autopad(k, p, d)

    x = jnp.transpose(x_nchw, (0, 2, 3, 1)).astype(jnp.float32)   # NCHW -> NHWC
    N, H, W, Cin = x.shape
    w = params["weight"]                                          # (Cout, Cin, k, k)
    Cout = w.shape[0]

    # Fold BatchNorm (inference) into a per-output-channel affine.
    scale = params["bn_gamma"] * jax.lax.rsqrt(params["bn_var"] + 1e-5)
    shift = params["bn_beta"] - params["bn_mean"] * scale

    # Lane-dense channel padding (weights / BN / output only — the input slab is
    # lane-padded inside the kernel, so no extra HBM traffic on the input).
    cin_p = _round_up(Cin, LANE)
    cout_p = _round_up(Cout, LANE)
    w_hwio = jnp.transpose(w, (2, 3, 1, 0))                       # (k, k, Cin, Cout)
    w_hwio = jnp.pad(w_hwio, ((0, 0), (0, 0), (0, cin_p - Cin), (0, cout_p - Cout)))
    w_hwio = w_hwio.astype(jnp.bfloat16)                          # bf16 MXU operands
    scale_p = jnp.pad(scale.astype(jnp.float32), (0, cout_p - Cout)).reshape(1, cout_p)
    shift_p = jnp.pad(shift.astype(jnp.float32), (0, cout_p - Cout)).reshape(1, cout_p)

    # Dense (stride-1) output extent; stride handled by subsampling below.
    Ho = H + 2 * pad - d * (k - 1)
    Wo = W + 2 * pad - d * (k - 1)
    Hp, Wp = H + 2 * pad, W + 2 * pad

    # Lane-dense output-channel tile: largest of 512/256/128 dividing cout_p.
    tco = next(t for t in (512, 256, 128) if cout_p % t == 0)
    n_co = cout_p // tco

    kernel = functools.partial(_conv_bn_act_kernel, ksize=k, dil=d, pad=pad,
                               cin=Cin, use_act=bool(act))

    out = pl.pallas_call(
        kernel,
        out_shape=jax.ShapeDtypeStruct((N, Ho, Wo, cout_p), jnp.float32),
        grid_spec=pltpu.PrefetchScalarGridSpec(
            num_scalar_prefetch=0,
            grid=(N, n_co),
            in_specs=[
                pl.BlockSpec((1, H, W, Cin), lambda n, j: (n, 0, 0, 0)),
                pl.BlockSpec((k, k, cin_p, tco), lambda n, j: (0, 0, 0, j)),
                pl.BlockSpec((1, tco), lambda n, j: (0, j)),
                pl.BlockSpec((1, tco), lambda n, j: (0, j)),
            ],
            out_specs=pl.BlockSpec((1, Ho, Wo, tco), lambda n, j: (n, 0, 0, j)),
            scratch_shapes=[pltpu.VMEM((Hp, Wp, cin_p), jnp.float32)],
        ),
        compiler_params=pltpu.CompilerParams(
            dimension_semantics=("parallel", "parallel"),
            vmem_limit_bytes=48 * 1024 * 1024,
        ),
    )(x, w_hwio, scale_p, shift_p)

    if s > 1:
        out = out[:, ::s, ::s, :]          # exact: strided conv == subsampled dense conv
    out = out[..., :Cout]                  # drop lane padding
    return jnp.transpose(out, (0, 3, 1, 2))                       # NHWC -> NCHW


# ---------------------------------------------------------------------------
# reference (pure JAX, f32) for a sanity check
# ---------------------------------------------------------------------------
def _reference(x, params, *, k, s, p, g, d, act):
    pad = _autopad(k, p, d)
    y = jax.lax.conv_general_dilated(
        x.astype(jnp.float32), params["weight"].astype(jnp.float32),
        window_strides=(s, s), padding=[(pad, pad), (pad, pad)],
        rhs_dilation=(d, d), dimension_numbers=("NCHW", "OIHW", "NCHW"),
        feature_group_count=g)
    scale = params["bn_gamma"] * jax.lax.rsqrt(params["bn_var"] + 1e-5)
    shift = params["bn_beta"] - params["bn_mean"] * scale
    y = y * scale[None, :, None, None] + shift[None, :, None, None]
    if act:
        y = y * jax.nn.sigmoid(y)
    return y


def init_params(key, c1, c2, k):
    k0, k1, k2, k3, k4 = jax.random.split(key, 5)
    return {
        "weight": 0.2 * jax.random.normal(k0, (c2, c1, k, k), jnp.float32),
        "bn_gamma": 1.0 + 0.1 * jax.random.normal(k1, (c2,), jnp.float32),
        "bn_beta": 0.1 * jax.random.normal(k2, (c2,), jnp.float32),
        "bn_mean": 0.1 * jax.random.normal(k3, (c2,), jnp.float32),
        "bn_var": 1.0 + 0.1 * jax.random.uniform(k4, (c2,), jnp.float32),
    }


if __name__ == "__main__":
    n, c1, c2, h, w_sp = 2, 4, 8, 16, 16
    k, s, d = 3, 1, 1

    key = jax.random.PRNGKey(0)
    kx, kp = jax.random.split(key)
    x = jax.random.normal(kx, (n, c1, h, w_sp), jnp.float32)
    params = init_params(kp, c1, c2, k)

    fwd = jax.jit(functools.partial(conv_forward, k=k, s=s, d=d, g=1, act=True))
    out = jax.block_until_ready(fwd(x, params))

    assert out.shape == (n, c2, h, w_sp) and out.dtype == jnp.float32

    ref = jax.block_until_ready(_reference(x, params, k=k, s=s, p=None, g=1, d=d, act=True))
    max_err = float(jnp.max(jnp.abs(out - ref)))
    assert max_err < 0.1, f"mismatch vs reference: max abs err {max_err}"

    print("KERNEL_OK")
</pallas_src>

<mosaic_0001>
module attributes {stable_mosaic.version = 11 : i64} {
  func.func @_conv_bn_act_kernel(%arg0: i32, %arg1: i32, %arg2: memref<1x16x16x4xf32, #tpu.memory_space<vmem>>, %arg3: memref<3x3x128x128xbf16, #tpu.memory_space<vmem>>, %arg4: memref<1x128xf32, #tpu.memory_space<vmem>>, %arg5: memref<1x128xf32, #tpu.memory_space<vmem>>, %arg6: memref<1x16x16x128xf32, #tpu.memory_space<vmem>>, %arg7: memref<18x18x128xf32, #tpu.memory_space<vmem>>) attributes {dimension_semantics = [#tpu.dimension_semantics<parallel>, #tpu.dimension_semantics<parallel>], iteration_bounds = array<i64: 2, 1>, scalar_prefetch = 0 : i64, scratch_operands = 1 : i64, tpu.core_type = #tpu.core_type<tc>, window_params = [{transform_indices = @transform_0, window_bounds = array<i64: 1, 16, 16, 4>}, {transform_indices = @transform_1, window_bounds = array<i64: 3, 3, 128, 128>}, {transform_indices = @transform_2, window_bounds = array<i64: 1, 128>}, {transform_indices = @transform_3, window_bounds = array<i64: 1, 128>}, {transform_indices = @transform_4, window_bounds = array<i64: 1, 16, 16, 128>}]} {
    %cst = arith.constant 0.000000e+00 : f32
    %0 = vector.broadcast %cst : f32 to vector<18x18x128xf32>
    %c0 = arith.constant 0 : index
    %c0_0 = arith.constant 0 : index
    %c0_1 = arith.constant 0 : index
    %1 = vector.load %arg7[%c0, %c0_0, %c0_1] : memref<18x18x128xf32, #tpu.memory_space<vmem>>, vector<18x18x128xf32>
    tpu.vector_store %arg7[%c0, %c0_0, %c0_1], %0 {strides = array<i32>} : memref<18x18x128xf32, #tpu.memory_space<vmem>>, vector<18x18x128xf32>,
    %c0_2 = arith.constant 0 : index
    %c0_3 = arith.constant 0 : index
    %c0_4 = arith.constant 0 : index
    %c0_5 = arith.constant 0 : index
    %2 = vector.load %arg2[%c0_2, %c0_3, %c0_4, %c0_5] : memref<1x16x16x4xf32, #tpu.memory_space<vmem>>, vector<1x16x16x4xf32>
    %3 = vector.shape_cast %2 : vector<1x16x16x4xf32> to vector<16x16x4xf32>
    %c1 = arith.constant 1 : index
    %c1_6 = arith.constant 1 : index
    %c0_7 = arith.constant 0 : index
    %4 = vector.load %arg7[%c1, %c1_6, %c0_7] : memref<18x18x128xf32, #tpu.memory_space<vmem>>, vector<16x16x4xf32>
    tpu.vector_store %arg7[%c1, %c1_6, %c0_7], %3 {strides = array<i32>} : memref<18x18x128xf32, #tpu.memory_space<vmem>>, vector<16x16x4xf32>,
    %c0_8 = arith.constant 0 : index
    %c0_9 = arith.constant 0 : index
    %c0_10 = arith.constant 0 : index
    %c0_11 = arith.constant 0 : index
    %5 = vector.load %arg3[%c0_8, %c0_9, %c0_10, %c0_11] : memref<3x3x128x128xbf16, #tpu.memory_space<vmem>>, vector<3x3x128x128xbf16>
    %cst_12 = arith.constant 0.000000e+00 : f32
    %6 = vector.broadcast %cst_12 : f32 to vector<256x128xf32>
    %c0_13 = arith.constant 0 : index
    %c0_14 = arith.constant 0 : index
    %c0_15 = arith.constant 0 : index
    %7 = vector.load %arg7[%c0_13, %c0_14, %c0_15] : memref<18x18x128xf32, #tpu.memory_space<vmem>>, vector<18x16x128xf32>
    %8 = arith.truncf %7 : vector<18x16x128xf32> to vector<18x16x128xbf16>
    %9 = vector.shape_cast %8 : vector<18x16x128xbf16> to vector<288x128xbf16>
    %10 = vector.extract_strided_slice %9 {offsets = [0, 0], sizes = [256, 128], strides = [1, 1]} : vector<288x128xbf16> to vector<256x128xbf16>
    %11 = vector.extract_strided_slice %5 {offsets = [0, 0, 0, 0], sizes = [1, 1, 128, 128], strides = [1, 1, 1, 1]} : vector<3x3x128x128xbf16> to vector<1x1x128x128xbf16>
    %12 = vector.shape_cast %11 : vector<1x1x128x128xbf16> to vector<128x128xbf16>
    %cst_16 = arith.constant dense<0.000000e+00> : vector<256x128xf32>
    %13 = tpu.matmul %10, %12, %cst_16 {dimension_numbers = #tpu.dot_dimension_numbers<[1], [0], [0], [1], [0, 0, 1, 1], [], []>} : vector<256x128xbf16>, vector<128x128xbf16>, vector<256x128xf32> -> vector<256x128xf32>
    %14 = arith.addf %6, %13 : vector<256x128xf32>
    %15 = vector.extract_strided_slice %9 {offsets = [16, 0], sizes = [256, 128], strides = [1, 1]} : vector<288x128xbf16> to vector<256x128xbf16>
    %16 = vector.extract_strided_slice %5 {offsets = [1, 0, 0, 0], sizes = [1, 1, 128, 128], strides = [1, 1, 1, 1]} : vector<3x3x128x128xbf16> to vector<1x1x128x128xbf16>
    %17 = vector.shape_cast %16 : vector<1x1x128x128xbf16> to vector<128x128xbf16>
    %cst_17 = arith.constant dense<0.000000e+00> : vector<256x128xf32>
    %18 = tpu.matmul %15, %17, %cst_17 {dimension_numbers = #tpu.dot_dimension_numbers<[1], [0], [0], [1], [0, 0, 1, 1], [], []>} : vector<256x128xbf16>, vector<128x128xbf16>, vector<256x128xf32> -> vector<256x128xf32>
    %19 = arith.addf %14, %18 : vector<256x128xf32>
    %20 = vector.extract_strided_slice %9 {offsets = [32, 0], sizes = [256, 128], strides = [1, 1]} : vector<288x128xbf16> to vector<256x128xbf16>
    %21 = vector.extract_strided_slice %5 {offsets = [2, 0, 0, 0], sizes = [1, 1, 128, 128], strides = [1, 1, 1, 1]} : vector<3x3x128x128xbf16> to vector<1x1x128x128xbf16>
    %22 = vector.shape_cast %21 : vector<1x1x128x128xbf16> to vector<128x128xbf16>
    %cst_18 = arith.constant dense<0.000000e+00> : vector<256x128xf32>
    %23 = tpu.matmul %20, %22, %cst_18 {dimension_numbers = #tpu.dot_dimension_numbers<[1], [0], [0], [1], [0, 0, 1, 1], [], []>} : vector<256x128xbf16>, vector<128x128xbf16>, vector<256x128xf32> -> vector<256x128xf32>
    %24 = arith.addf %19, %23 : vector<256x128xf32>
    %c0_19 = arith.constant 0 : index
    %c1_20 = arith.constant 1 : index
    %c0_21 = arith.constant 0 : index
    %25 = vector.load %arg7[%c0_19, %c1_20, %c0_21] : memref<18x18x128xf32, #tpu.memory_space<vmem>>, vector<18x16x128xf32>
    %26 = arith.truncf %25 : vector<18x16x128xf32> to vector<18x16x128xbf16>
    %27 = vector.shape_cast %26 : vector<18x16x128xbf16> to vector<288x128xbf16>
    %28 = vector.extract_strided_slice %27 {offsets = [0, 0], sizes = [256, 128], strides = [1, 1]} : vector<288x128xbf16> to vector<256x128xbf16>
    %29 = vector.extract_strided_slice %5 {offsets = [0, 1, 0, 0], sizes = [1, 1, 128, 128], strides = [1, 1, 1, 1]} : vector<3x3x128x128xbf16> to vector<1x1x128x128xbf16>
    %30 = vector.shape_cast %29 : vector<1x1x128x128xbf16> to vector<128x128xbf16>
    %cst_22 = arith.constant dense<0.000000e+00> : vector<256x128xf32>
    %31 = tpu.matmul %28, %30, %cst_22 {dimension_numbers = #tpu.dot_dimension_numbers<[1], [0], [0], [1], [0, 0, 1, 1], [], []>} : vector<256x128xbf16>, vector<128x128xbf16>, vector<256x128xf32> -> vector<256x128xf32>
    %32 = arith.addf %24, %31 : vector<256x128xf32>
    %33 = vector.extract_strided_slice %27 {offsets = [16, 0], sizes = [256, 128], strides = [1, 1]} : vector<288x128xbf16> to vector<256x128xbf16>
    %34 = vector.extract_strided_slice %5 {offsets = [1, 1, 0, 0], sizes = [1, 1, 128, 128], strides = [1, 1, 1, 1]} : vector<3x3x128x128xbf16> to vector<1x1x128x128xbf16>
    %35 = vector.shape_cast %34 : vector<1x1x128x128xbf16> to vector<128x128xbf16>
    %cst_23 = arith.constant dense<0.000000e+00> : vector<256x128xf32>
    %36 = tpu.matmul %33, %35, %cst_23 {dimension_numbers = #tpu.dot_dimension_numbers<[1], [0], [0], [1], [0, 0, 1, 1], [], []>} : vector<256x128xbf16>, vector<128x128xbf16>, vector<256x128xf32> -> vector<256x128xf32>
    %37 = arith.addf %32, %36 : vector<256x128xf32>
    %38 = vector.extract_strided_slice %27 {offsets = [32, 0], sizes = [256, 128], strides = [1, 1]} : vector<288x128xbf16> to vector<256x128xbf16>
    %39 = vector.extract_strided_slice %5 {offsets = [2, 1, 0, 0], sizes = [1, 1, 128, 128], strides = [1, 1, 1, 1]} : vector<3x3x128x128xbf16> to vector<1x1x128x128xbf16>
    %40 = vector.shape_cast %39 : vector<1x1x128x128xbf16> to vector<128x128xbf16>
    %cst_24 = arith.constant dense<0.000000e+00> : vector<256x128xf32>
    %41 = tpu.matmul %38, %40, %cst_24 {dimension_numbers = #tpu.dot_dimension_numbers<[1], [0], [0], [1], [0, 0, 1, 1], [], []>} : vector<256x128xbf16>, vector<128x128xbf16>, vector<256x128xf32> -> vector<256x128xf32>
    %42 = arith.addf %37, %41 : vector<256x128xf32>
    %c0_25 = arith.constant 0 : index
    %c2 = arith.constant 2 : index
    %c0_26 = arith.constant 0 : index
    %43 = vector.load %arg7[%c0_25, %c2, %c0_26] : memref<18x18x128xf32, #tpu.memory_space<vmem>>, vector<18x16x128xf32>
    %44 = arith.truncf %43 : vector<18x16x128xf32> to vector<18x16x128xbf16>
    %45 = vector.shape_cast %44 : vector<18x16x128xbf16> to vector<288x128xbf16>
    %46 = vector.extract_strided_slice %45 {offsets = [0, 0], sizes = [256, 128], strides = [1, 1]} : vector<288x128xbf16> to vector<256x128xbf16>
    %47 = vector.extract_strided_slice %5 {offsets = [0, 2, 0, 0], sizes = [1, 1, 128, 128], strides = [1, 1, 1, 1]} : vector<3x3x128x128xbf16> to vector<1x1x128x128xbf16>
    %48 = vector.shape_cast %47 : vector<1x1x128x128xbf16> to vector<128x128xbf16>
    %cst_27 = arith.constant dense<0.000000e+00> : vector<256x128xf32>
    %49 = tpu.matmul %46, %48, %cst_27 {dimension_numbers = #tpu.dot_dimension_numbers<[1], [0], [0], [1], [0, 0, 1, 1], [], []>} : vector<256x128xbf16>, vector<128x128xbf16>, vector<256x128xf32> -> vector<256x128xf32>
    %50 = arith.addf %42, %49 : vector<256x128xf32>
    %51 = vector.extract_strided_slice %45 {offsets = [16, 0], sizes = [256, 128], strides = [1, 1]} : vector<288x128xbf16> to vector<256x128xbf16>
    %52 = vector.extract_strided_slice %5 {offsets = [1, 2, 0, 0], sizes = [1, 1, 128, 128], strides = [1, 1, 1, 1]} : vector<3x3x128x128xbf16> to vector<1x1x128x128xbf16>
    %53 = vector.shape_cast %52 : vector<1x1x128x128xbf16> to vector<128x128xbf16>
    %cst_28 = arith.constant dense<0.000000e+00> : vector<256x128xf32>
    %54 = tpu.matmul %51, %53, %cst_28 {dimension_numbers = #tpu.dot_dimension_numbers<[1], [0], [0], [1], [0, 0, 1, 1], [], []>} : vector<256x128xbf16>, vector<128x128xbf16>, vector<256x128xf32> -> vector<256x128xf32>
    %55 = arith.addf %50, %54 : vector<256x128xf32>
    %56 = vector.extract_strided_slice %45 {offsets = [32, 0], sizes = [256, 128], strides = [1, 1]} : vector<288x128xbf16> to vector<256x128xbf16>
    %57 = vector.extract_strided_slice %5 {offsets = [2, 2, 0, 0], sizes = [1, 1, 128, 128], strides = [1, 1, 1, 1]} : vector<3x3x128x128xbf16> to vector<1x1x128x128xbf16>
    %58 = vector.shape_cast %57 : vector<1x1x128x128xbf16> to vector<128x128xbf16>
    %cst_29 = arith.constant dense<0.000000e+00> : vector<256x128xf32>
    %59 = tpu.matmul %56, %58, %cst_29 {dimension_numbers = #tpu.dot_dimension_numbers<[1], [0], [0], [1], [0, 0, 1, 1], [], []>} : vector<256x128xbf16>, vector<128x128xbf16>, vector<256x128xf32> -> vector<256x128xf32>
    %60 = arith.addf %55, %59 : vector<256x128xf32>
    %c0_30 = arith.constant 0 : index
    %c0_31 = arith.constant 0 : index
    %61 = vector.load %arg4[%c0_30, %c0_31] : memref<1x128xf32, #tpu.memory_space<vmem>>, vector<1x128xf32>
    %62 = vector.broadcast %61 : vector<1x128xf32> to vector<256x128xf32>
    %63 = arith.mulf %60, %62 : vector<256x128xf32>
    %c0_32 = arith.constant 0 : index
    %c0_33 = arith.constant 0 : index
    %64 = vector.load %arg5[%c0_32, %c0_33] : memref<1x128xf32, #tpu.memory_space<vmem>>, vector<1x128xf32>
    %65 = vector.broadcast %64 : vector<1x128xf32> to vector<256x128xf32>
    %66 = arith.addf %63, %65 : vector<256x128xf32>
    %67 = arith.negf %66 : vector<256x128xf32>
    %68 = math.exp %67 : vector<256x128xf32>
    %cst_34 = arith.constant 1.000000e+00 : f32
    %69 = vector.broadcast %cst_34 : f32 to vector<256x128xf32>
    %70 = arith.addf %69, %68 : vector<256x128xf32>
    %71 = arith.divf %69, %70 : vector<256x128xf32>
    %72 = arith.mulf %66, %71 : vector<256x128xf32>
    %73 = vector.shape_cast %72 : vector<256x128xf32> to vector<16x16x128xf32>
    %c0_35 = arith.constant 0 : index
    %c0_36 = arith.constant 0 : index
    %c0_37 = arith.constant 0 : index
    %c0_38 = arith.constant 0 : index
    %74 = vector.load %arg6[%c0_35, %c0_36, %c0_37, %c0_38] : memref<1x16x16x128xf32, #tpu.memory_space<vmem>>, vector<1x16x16x128xf32>
    %75 = vector.shape_cast %74 : vector<1x16x16x128xf32> to vector<16x16x128xf32>
    %76 = vector.shape_cast %73 : vector<16x16x128xf32> to vector<1x16x16x128xf32>
    tpu.vector_store %arg6[%c0_35, %c0_36, %c0_37, %c0_38], %76 {strides = array<i32>} : memref<1x16x16x128xf32, #tpu.memory_space<vmem>>, vector<1x16x16x128xf32>,
    return
  }
  func.func @transform_0(%arg0: i32, %arg1: i32) -> (i32, i32, i32, i32) {
    %c0_i32 = arith.constant 0 : i32
    %c0_i32_0 = arith.constant 0 : i32
    %c0_i32_1 = arith.constant 0 : i32
    %c0_i32_2 = arith.constant 0 : i32
    return %arg0, %c0_i32, %c0_i32_0, %c0_i32_1 : i32, i32, i32, i32
  }
  func.func @transform_1(%arg0: i32, %arg1: i32) -> (i32, i32, i32, i32) {
    %c0_i32 = arith.constant 0 : i32
    %c0_i32_0 = arith.constant 0 : i32
    %c0_i32_1 = arith.constant 0 : i32
    %c0_i32_2 = arith.constant 0 : i32
    return %c0_i32, %c0_i32_0, %c0_i32_1, %arg1 : i32, i32, i32, i32
  }
  func.func @transform_2(%arg0: i32, %arg1: i32) -> (i32, i32) {
    %c0_i32 = arith.constant 0 : i32
    %c0_i32_0 = arith.constant 0 : i32
    return %c0_i32, %arg1 : i32, i32
  }
  func.func @transform_3(%arg0: i32, %arg1: i32) -> (i32, i32) {
    %c0_i32 = arith.constant 0 : i32
    %c0_i32_0 = arith.constant 0 : i32
    return %c0_i32, %arg1 : i32, i32
  }
  func.func @transform_4(%arg0: i32, %arg1: i32) -> (i32, i32, i32, i32) {
    %c0_i32 = arith.constant 0 : i32
    %c0_i32_0 = arith.constant 0 : i32
    %c0_i32_1 = arith.constant 0 : i32
    return %arg0, %c0_i32, %c0_i32_0, %arg1 : i32, i32, i32, i32
  }
}

</mosaic_0001>

<llo_original>
// kernel: conv_forward.1
$region0: #{conv_forward.1}
  #allocation0 [shape = 'u32[]', space=smem, size = 0x4, offset = 0x4, fixed_abs, tag = 'smem constant byte address 0x4 - core index']
  #allocation1 [shape = 'u32[144,128]{1,0:T(1,128)}', space=vmem, size = 0x12000, scoped, tag = 'internal scratch']
  #allocation2 [shape = 'f32[18,18,128]{2,1,0:T(8,128)}', space=vmem, size = 0x36000, scoped, tag = 'scratch operand']
  %s0 = inlined_call_operand.vmem [shape: f32[2,16,16,4], index: 0, kind: input, shape index: {}]
  %s1 = inlined_call_operand.vmem [shape: bf16[3,3,128,128], index: 1, kind: input, shape index: {}]
  %s2 = inlined_call_operand.vmem [shape: f32[1,128], index: 2, kind: input, shape index: {}]
  %s3 = inlined_call_operand.vmem [shape: f32[1,128], index: 3, kind: input, shape index: {}]
  %s4 = inlined_call_operand.vmem [shape: f32[2,16,16,128], index: 4, kind: output, shape index: {}]
  %s5 = sld [smem:[#allocation0]]
  $region49: #{conv_forward.1} parent=0
    _
  %s7 = ssub.s32 1, %s5
  %s8 = scalar_select 0, %s7, %s5
  loop: start=0, step=1, limit=4
  $region2: #{conv_forward.1} parent=0 // loop_pre_header
    _
  $region3: #{conv_forward.1} parent=0 // loop_header
    %s10 = sphi 0, %s14
    %p11 = scmp.ge.s32.totalorder %s10, 4
    %s17 = sphi 0, %s29
    %s18 = sphi 0, %s25
    %s19 = sphi 0, %s17
    %s20 = sphi 0, %s18
    %s21 = sphi 0, %s19
    %s22 = sphi 0, %s20
    %s32 = sphi 0, %s34
    %s35 = sphi 0, %s32
    %s36 = sphi 0, %s35
    %s52 = sphi 0, %s36
    %s58 = sphi 0, %s60
    %s61 = sphi 0, %s58
    %s62 = sphi 0, %s61
    %s78 = sphi 0, %s62
    %s84 = sphi 0, %s86
    %s87 = sphi 0, %s84
    %s88 = sphi 0, %s87
    %s104 = sphi 0, %s88
    %s110 = sphi 0, %s112
    %s113 = sphi 0, %s110
    %s114 = sphi 0, %s113
    %s130 = sphi 0, %s114
    %s138 = sphi 0, %s140
    %s141 = sphi 0, %s138
    %s142 = sphi 0, %s141
    %s158 = sphi 0, %s142
  $region4: #{conv_forward.1} parent=0 // loop_header_branch
    %13 = sbr.rel (%p11) target = $region8
  $region5: #{conv_forward.1} parent=0 // loop_body
    %s15 = ssub.s32 %s10, 1
    %s16 = ssub.s32 %s10, 2
    %s23 = sadd.s32 1, %s18
    %p24 = scmp.ge.s32.totalorder %s23, 1
    %s25 = scalar_select %p24, 0, %s23
    %s26 = sadd.s32 1, %s17
    %s27 = scalar_select %p24, %s26, %s17
    %p28 = scmp.ge.s32.totalorder %s27, 2
    %s29 = scalar_select %p28, 0, %s27
    %s30 = ssub.s32 %s17, %s29
    %p31 = scmp.eq.s32.totalorder %s30, 0
    %s33 = sadd.s32 %s32, 1
    %s34 = scalar_select %p31, %s32, %s33
    %p37 = pneg %p31
    %p38 = scmp.eq.s32.totalorder %s10, 1
    %p39 = por %p37, %p38
    %p40 = scmp.ne.s32.totalorder %s32, %s35
    %p41 = scmp.eq.s32.totalorder %s10, 0
    %p42 = por %p40, %p41
    %p43 = scmp.ne.s32.totalorder %s32, %s35
    %p44 = scmp.eq.s32.totalorder %s15, 1
    %p45 = por %p43, %p44
    %p46 = scmp.ne.s32.totalorder %s35, %s36
    %p47 = scmp.eq.s32.totalorder %s15, 0
    %p48 = por %p46, %p47
    %p49 = scmp.ne.s32.totalorder %s35, %s36
    %p50 = scmp.eq.s32.totalorder %s16, 1
    %p51 = por %p49, %p50
    %p53 = scmp.ne.s32.totalorder %s36, %s52
    %p54 = scmp.eq.s32.totalorder %s16, 0
    %p55 = por %p53, %p54
    %s56 = ssub.s32 %s18, %s25
    %p57 = scmp.eq.s32.totalorder %s56, 0
    %s59 = sadd.s32 %s58, 1
    %s60 = scalar_select %p57, %s58, %s59
    %p63 = pneg %p57
    %p64 = scmp.eq.s32.totalorder %s10, 1
    %p65 = por %p63, %p64
    %p66 = scmp.ne.s32.totalorder %s58, %s61
    %p67 = scmp.eq.s32.totalorder %s10, 0
    %p68 = por %p66, %p67
    %p69 = scmp.ne.s32.totalorder %s58, %s61
    %p70 = scmp.eq.s32.totalorder %s15, 1
    %p71 = por %p69, %p70
    %p72 = scmp.ne.s32.totalorder %s61, %s62
    %p73 = scmp.eq.s32.totalorder %s15, 0
    %p74 = por %p72, %p73
    %p75 = scmp.ne.s32.totalorder %s61, %s62
    %p76 = scmp.eq.s32.totalorder %s16, 1
    %p77 = por %p75, %p76
    %p79 = scmp.ne.s32.totalorder %s62, %s78
    %p80 = scmp.eq.s32.totalorder %s16, 0
    %p81 = por %p79, %p80
    %s82 = ssub.s32 %s18, %s25
    %p83 = scmp.eq.s32.totalorder %s82, 0
    %s85 = sadd.s32 %s84, 1
    %s86 = scalar_select %p83, %s84, %s85
    %p89 = pneg %p83
    %p90 = scmp.eq.s32.totalorder %s10, 1
    %p91 = por %p89, %p90
    %p92 = scmp.ne.s32.totalorder %s84, %s87
    %p93 = scmp.eq.s32.totalorder %s10, 0
    %p94 = por %p92, %p93
    %p95 = scmp.ne.s32.totalorder %s84, %s87
    %p96 = scmp.eq.s32.totalorder %s15, 1
    %p97 = por %p95, %p96
    %p98 = scmp.ne.s32.totalorder %s87, %s88
    %p99 = scmp.eq.s32.totalorder %s15, 0
    %p100 = por %p98, %p99
    %p101 = scmp.ne.s32.totalorder %s87, %s88
    %p102 = scmp.eq.s32.totalorder %s16, 1
    %p103 = por %p101, %p102
    %p105 = scmp.ne.s32.totalorder %s88, %s104
    %p106 = scmp.eq.s32.totalorder %s16, 0
    %p107 = por %p105, %p106
    %s108 = ssub.s32 %s18, %s25
    %p109 = scmp.eq.s32.totalorder %s108, 0
    %s111 = sadd.s32 %s110, 1
    %s112 = scalar_select %p109, %s110, %s111
    %p115 = pneg %p109
    %p116 = scmp.eq.s32.totalorder %s10, 1
    %p117 = por %p115, %p116
    %p118 = scmp.ne.s32.totalorder %s110, %s113
    %p119 = scmp.eq.s32.totalorder %s10, 0
    %p120 = por %p118, %p119
    %p121 = scmp.ne.s32.totalorder %s110, %s113
    %p122 = scmp.eq.s32.totalorder %s15, 1
    %p123 = por %p121, %p122
    %p124 = scmp.ne.s32.totalorder %s113, %s114
    %p125 = scmp.eq.s32.totalorder %s15, 0
    %p126 = por %p124, %p125
    %p127 = scmp.ne.s32.totalorder %s113, %s114
    %p128 = scmp.eq.s32.totalorder %s16, 1
    %p129 = por %p127, %p128
    %p131 = scmp.ne.s32.totalorder %s114, %s130
    %p132 = scmp.eq.s32.totalorder %s16, 0
    %p133 = por %p131, %p132
    %s134 = ssub.s32 %s17, %s29
    %s135 = ssub.s32 %s18, %s25
    %s136 = sor.u32 %s134, %s135
    %p137 = scmp.eq.s32.totalorder %s136, 0
    %s139 = sadd.s32 %s138, 1
    %s140 = scalar_select %p137, %s138, %s139
    %p143 = pneg %p137
    %p144 = scmp.eq.s32.totalorder %s10, 1
    %p145 = por %p143, %p144
    %p146 = scmp.ne.s32.totalorder %s138, %s141
    %p147 = scmp.eq.s32.totalorder %s10, 0
    %p148 = por %p146, %p147
    %p149 = scmp.ne.s32.totalorder %s138, %s141
    %p150 = scmp.eq.s32.totalorder %s15, 1
    %p151 = por %p149, %p150
    %p152 = scmp.ne.s32.totalorder %s141, %s142
    %p153 = scmp.eq.s32.totalorder %s15, 0
    %p154 = por %p152, %p153
    %p155 = scmp.ne.s32.totalorder %s141, %s142
    %p156 = scmp.eq.s32.totalorder %s16, 1
    %p157 = por %p155, %p156
    %p159 = scmp.ne.s32.totalorder %s142, %s158
    %p160 = scmp.eq.s32.totalorder %s16, 0
    %p161 = por %p159, %p160
    %p162 = scmp.le.s32.totalorder 1, %s10
    %p163 = scmp.lt.s32.totalorder %s10, 3
    %p164 = pnand %p162, %p163
    %p165 = pneg %p164
    // Predicated region
    $region9: #{conv_forward.1} parent=5 // pred_check
      _
    $region10: #{conv_forward.1} parent=5 // pred_check_branch
      %167 = sbr.rel (%p164) target = $region12
    $region11: #{conv_forward.1} parent=5 // pred_region
      %s168 = ssub.s32 %s10, 1
      // Predicated region
      $region13: #{conv_forward.1} parent=11 // pred_check
        %p169 = pneg %p74
      $region14: #{conv_forward.1} parent=11 // pred_check_branch
        %171 = sbr.rel (%p169) target = $region16
      $region15: #{conv_forward.1} parent=11 // pred_region
        %p172 = scmp.lt.s32.totalorder %s20, 0
        %s173 = scalar_select %p172, %s20, 0
        %s174 = smul.addr %s173, 4
        %s175 = scalar_lea.vmem %s1, %s174
      $region16: #{conv_forward.1} parent=11 // pred_fallthru
        _
      // Predicated region
      $region17: #{conv_forward.1} parent=11 // pred_check
        %p176 = pneg %p100
      $region18: #{conv_forward.1} parent=11 // pred_check_branch
        %178 = sbr.rel (%p176) target = $region20
      $region19: #{conv_forward.1} parent=11 // pred_region
        %p179 = scmp.lt.s32.totalorder %s20, 0
        %s180 = scalar_select %p179, %s20, 0
        %s181 = scalar_lea.vmem %s2, %s180
      $region20: #{conv_forward.1} parent=11 // pred_fallthru
        _
      // Predicated region
      $region21: #{conv_forward.1} parent=11 // pred_check
        %p182 = pneg %p126
      $region22: #{conv_forward.1} parent=11 // pred_check_branch
        %184 = sbr.rel (%p182) target = $region24
      $region23: #{conv_forward.1} parent=11 // pred_region
        %p185 = scmp.lt.s32.totalorder %s20, 0
        %s186 = scalar_select %p185, %s20, 0
        %s187 = scalar_lea.vmem %s3, %s186
      $region24: #{conv_forward.1} parent=11 // pred_fallthru
        _
    $region12: #{conv_forward.1} parent=5 // pred_fallthru
      _
    %p188 = scmp.lt.s32.totalorder %s10, 2
    // Predicated region
    $region25: #{conv_forward.1} parent=5 // pred_check
      %p189 = pneg %p188
    $region26: #{conv_forward.1} parent=5 // pred_check_branch
      %191 = sbr.rel (%p189) target = $region28
    $region27: #{conv_forward.1} parent=5 // pred_region
      // Predicated region
      $region29: #{conv_forward.1} parent=27 // pred_check
        %p192 = pneg %p42
      $region30: #{conv_forward.1} parent=27 // pred_check_branch
        %194 = sbr.rel (%p192) target = $region32
      $region31: #{conv_forward.1} parent=27 // pred_region
        %p195 = scmp.lt.s32.totalorder %s17, 1
        %s196 = scalar_select %p195, %s17, 1
        %s197 = smul.addr %s196, 32
        %s198 = smul.addr %s197, 8
        %s199 = scalar_lea.vmem %s0, %s198
      $region32: #{conv_forward.1} parent=27 // pred_fallthru
        _
    $region28: #{conv_forward.1} parent=5 // pred_fallthru
      _
    %p200 = scmp.le.s32.totalorder 1, %s10
    %p201 = scmp.lt.s32.totalorder %s10, 3
    %p202 = pnand %p200, %p201
    %p203 = pneg %p202
    // Predicated region
    $region33: #{conv_forward.1} parent=5 // pred_check
      _
    $region34: #{conv_forward.1} parent=5 // pred_check_branch
      %205 = sbr.rel (%p202) target = $region36
    $region35: #{conv_forward.1} parent=5 // pred_region
      %s206 = ssub.s32 %s10, 1
      %p207 = scmp.lt.s32.totalorder %s19, 1
      %s208 = scalar_select %p207, %s19, 1
      %s209 = smul.addr %s208, 32
      %s210 = smul.addr %s209, 8
      %s211 = scalar_lea.vmem %s0, %s210
      %p212 = pneg %p48
      %p213 = pneg %p45
      %p214 = scmp.lt.s32.totalorder %s20, 0
      %s215 = scalar_select %p214, %s20, 0
      %s216 = smul.addr %s215, 4
      %s217 = scalar_lea.vmem %s1, %s216
      %p218 = pneg %p74
      %p219 = pneg %p71
      %p220 = scmp.lt.s32.totalorder %s20, 0
      %s221 = scalar_select %p220, %s20, 0
      %s222 = scalar_lea.vmem %s2, %s221
      %p223 = pneg %p100
      %p224 = pneg %p97
      %p225 = scmp.lt.s32.totalorder %s20, 0
      %s226 = scalar_select %p225, %s20, 0
      %s227 = scalar_lea.vmem %s3, %s226
      %p228 = pneg %p126
      %p229 = pneg %p123
      %p230 = pneg %p154
      %p231 = pneg %p151
      %p232 = scmp.lt.s32.totalorder %s19, 1
      %s233 = scalar_select %p232, %s19, 1
      %p234 = scmp.lt.s32.totalorder %s20, 0
      %s235 = scalar_select %p234, %s20, 0
      %s236 = smul.addr %s233, 32
      %s237 = sadd.s32 %s235, %s236
      %s238 = smul.addr %s237, 8
      %s239 = scalar_lea.vmem %s4, %s238
      %p240 = scmp.lt.s32.totalorder %s19, 1
      %s241 = scalar_select %p240, %s19, 1
      %s242 = smul.addr %s241, 32
      %s243 = smul.addr %s242, 8
      %s244 = scalar_lea.vmem %s0, %s243
      %p245 = scmp.lt.s32.totalorder %s20, 0
      %s246 = scalar_select %p245, %s20, 0
      %s247 = smul.addr %s246, 4
      %s248 = scalar_lea.vmem %s1, %s247
      %p249 = scmp.lt.s32.totalorder %s20, 0
      %s250 = scalar_select %p249, %s20, 0
      %s251 = scalar_lea.vmem %s2, %s250
      %p252 = scmp.lt.s32.totalorder %s20, 0
      %s253 = scalar_select %p252, %s20, 0
      %s254 = scalar_lea.vmem %s3, %s253
      %p255 = scmp.lt.s32.totalorder %s19, 1
      %s256 = scalar_select %p255, %s19, 1
      %p257 = scmp.lt.s32.totalorder %s20, 0
      %s258 = scalar_select %p257, %s20, 0
      %s259 = smul.addr %s256, 32
      %s260 = sadd.s32 %s258, %s259
      %s261 = smul.addr %s260, 8
      %s262 = scalar_lea.vmem %s4, %s261
      %264 = vst [vmem:[#allocation2] sm:$0xff] 0.0
      %265 = vst [vmem:[#allocation2 + $0x8] sm:$0xff] 0.0
      %266 = vst [vmem:[#allocation2 + $0x10] sm:$0x3] 0.0
      %267 = vst [vmem:[#allocation2 + $0x18] sm:$0xff] 0.0
      %268 = vst [vmem:[#allocation2 + $0x20] sm:$0xff] 0.0
      %269 = vst [vmem:[#allocation2 + $0x28] sm:$0x3] 0.0
      %270 = vst [vmem:[#allocation2 + $0x30] sm:$0xff] 0.0
      %271 = vst [vmem:[#allocation2 + $0x38] sm:$0xff] 0.0
      %272 = vst [vmem:[#allocation2 + $0x40] sm:$0x3] 0.0
      %273 = vst [vmem:[#allocation2 + $0x48] sm:$0xff] 0.0
      %274 = vst [vmem:[#allocation2 + $0x50] sm:$0xff] 0.0
      %275 = vst [vmem:[#allocation2 + $0x58] sm:$0x3] 0.0
      %276 = vst [vmem:[#allocation2 + $0x60] sm:$0xff] 0.0
      %277 = vst [vmem:[#allocation2 + $0x68] sm:$0xff] 0.0
      %278 = vst [vmem:[#allocation2 + $0x70] sm:$0x3] 0.0
      %279 = vst [vmem:[#allocation2 + $0x78] sm:$0xff] 0.0
      %280 = vst [vmem:[#allocation2 + $0x80] sm:$0xff] 0.0
      %281 = vst [vmem:[#allocation2 + $0x88] sm:$0x3] 0.0
      %282 = vst [vmem:[#allocation2 + $0x90] sm:$0xff] 0.0
      %283 = vst [vmem:[#allocation2 + $0x98] sm:$0xff] 0.0
      %284 = vst [vmem:[#allocation2 + $0xa0] sm:$0x3] 0.0
      %285 = vst [vmem:[#allocation2 + $0xa8] sm:$0xff] 0.0
      %286 = vst [vmem:[#allocation2 + $0xb0] sm:$0xff] 0.0
      %287 = vst [vmem:[#allocation2 + $0xb8] sm:$0x3] 0.0
      %288 = vst [vmem:[#allocation2 + $0xc0] sm:$0xff] 0.0
      %289 = vst [vmem:[#allocation2 + $0xc8] sm:$0xff] 0.0
      %290 = vst [vmem:[#allocation2 + $0xd0] sm:$0x3] 0.0
      %291 = vst [vmem:[#allocation2 + $0xd8] sm:$0xff] 0.0
      %292 = vst [vmem:[#allocation2 + $0xe0] sm:$0xff] 0.0
      %293 = vst [vmem:[#allocation2 + $0xe8] sm:$0x3] 0.0
      %294 = vst [vmem:[#allocation2 + $0xf0] sm:$0xff] 0.0
      %295 = vst [vmem:[#allocation2 + $0xf8] sm:$0xff] 0.0
      %296 = vst [vmem:[#allocation2 + $0x100] sm:$0x3] 0.0
      %297 = vst [vmem:[#allocation2 + $0x108] sm:$0xff] 0.0
      %298 = vst [vmem:[#allocation2 + $0x110] sm:$0xff] 0.0
      %299 = vst [vmem:[#allocation2 + $0x118] sm:$0x3] 0.0
      %300 = vst [vmem:[#allocation2 + $0x120] sm:$0xff] 0.0
      %301 = vst [vmem:[#allocation2 + $0x128] sm:$0xff] 0.0
      %302 = vst [vmem:[#allocation2 + $0x130] sm:$0x3] 0.0
      %303 = vst [vmem:[#allocation2 + $0x138] sm:$0xff] 0.0
      %304 = vst [vmem:[#allocation2 + $0x140] sm:$0xff] 0.0
      %305 = vst [vmem:[#allocation2 + $0x148] sm:$0x3] 0.0
      %306 = vst [vmem:[#allocation2 + $0x150] sm:$0xff] 0.0
      %307 = vst [vmem:[#allocation2 + $0x158] sm:$0xff] 0.0
      %308 = vst [vmem:[#allocation2 + $0x160] sm:$0x3] 0.0
      %309 = vst [vmem:[#allocation2 + $0x168] sm:$0xff] 0.0
      %310 = vst [vmem:[#allocation2 + $0x170] sm:$0xff] 0.0
      %311 = vst [vmem:[#allocation2 + $0x178] sm:$0x3] 0.0
      %312 = vst [vmem:[#allocation2 + $0x180] sm:$0xff] 0.0
      %313 = vst [vmem:[#allocation2 + $0x188] sm:$0xff] 0.0
      %314 = vst [vmem:[#allocation2 + $0x190] sm:$0x3] 0.0
      %315 = vst [vmem:[#allocation2 + $0x198] sm:$0xff] 0.0
      %316 = vst [vmem:[#allocation2 + $0x1a0] sm:$0xff] 0.0
      %317 = vst [vmem:[#allocation2 + $0x1a8] sm:$0x3] 0.0
      %v318 = vld [vmem:[%s244] sm:$0xff]
      %v319 = vld [vmem:[%s244 + $0x8] sm:$0xff]
      %v320 = vld [vmem:[%s244 + $0x10] sm:$0xff]
      %v321 = vld [vmem:[%s244 + $0x18] sm:$0xff]
      %v322 = vld [vmem:[%s244 + $0x20] sm:$0xff]
      %v323 = vld [vmem:[%s244 + $0x28] sm:$0xff]
      %v324 = vld [vmem:[%s244 + $0x30] sm:$0xff]
      %v325 = vld [vmem:[%s244 + $0x38] sm:$0xff]
      %v326 = vld [vmem:[%s244 + $0x40] sm:$0xff]
      %v327 = vld [vmem:[%s244 + $0x48] sm:$0xff]
      %v328 = vld [vmem:[%s244 + $0x50] sm:$0xff]
      %v329 = vld [vmem:[%s244 + $0x58] sm:$0xff]
      %v330 = vld [vmem:[%s244 + $0x60] sm:$0xff]
      %v331 = vld [vmem:[%s244 + $0x68] sm:$0xff]
      %v332 = vld [vmem:[%s244 + $0x70] sm:$0xff]
      %v333 = vld [vmem:[%s244 + $0x78] sm:$0xff]
      %v334 = vld [vmem:[%s244 + $0x80] sm:$0xff]
      %v335 = vld [vmem:[%s244 + $0x88] sm:$0xff]
      %v336 = vld [vmem:[%s244 + $0x90] sm:$0xff]
      %v337 = vld [vmem:[%s244 + $0x98] sm:$0xff]
      %v338 = vld [vmem:[%s244 + $0xa0] sm:$0xff]
      %v339 = vld [vmem:[%s244 + $0xa8] sm:$0xff]
      %v340 = vld [vmem:[%s244 + $0xb0] sm:$0xff]
      %v341 = vld [vmem:[%s244 + $0xb8] sm:$0xff]
      %v342 = vld [vmem:[%s244 + $0xc0] sm:$0xff]
      %v343 = vld [vmem:[%s244 + $0xc8] sm:$0xff]
      %v344 = vld [vmem:[%s244 + $0xd0] sm:$0xff]
      %v345 = vld [vmem:[%s244 + $0xd8] sm:$0xff]
      %v346 = vld [vmem:[%s244 + $0xe0] sm:$0xff]
      %v347 = vld [vmem:[%s244 + $0xe8] sm:$0xff]
      %v348 = vld [vmem:[%s244 + $0xf0] sm:$0xff]
      %v349 = vld [vmem:[%s244 + $0xf8] sm:$0xff]
      %s350 = scalar_lea.vmem [#allocation2], 24
      %vm351 = vcmask 31744
      %352 = vst.msk [vmem:[%s350 + $0x1] sm:$0xff] %vm351, %v318
      %353 = vst.msk [vmem:[%s350 + $0x9] sm:$0xff] %vm351, %v319
      %354 = vst.msk [vmem:[%s350 + $0x19] sm:$0xff] %vm351, %v320
      %355 = vst.msk [vmem:[%s350 + $0x21] sm:$0xff] %vm351, %v321
      %356 = vst.msk [vmem:[%s350 + $0x31] sm:$0xff] %vm351, %v322
      %357 = vst.msk [vmem:[%s350 + $0x39] sm:$0xff] %vm351, %v323
      %358 = vst.msk [vmem:[%s350 + $0x49] sm:$0xff] %vm351, %v324
      %359 = vst.msk [vmem:[%s350 + $0x51] sm:$0xff] %vm351, %v325
      %360 = vst.msk [vmem:[%s350 + $0x61] sm:$0xff] %vm351, %v326
      %361 = vst.msk [vmem:[%s350 + $0x69] sm:$0xff] %vm351, %v327
      %362 = vst.msk [vmem:[%s350 + $0x79] sm:$0xff] %vm351, %v328
      %363 = vst.msk [vmem:[%s350 + $0x81] sm:$0xff] %vm351, %v329
      %364 = vst.msk [vmem:[%s350 + $0x91] sm:$0xff] %vm351, %v330
      %365 = vst.msk [vmem:[%s350 + $0x99] sm:$0xff] %vm351, %v331
      %366 = vst.msk [vmem:[%s350 + $0xa9] sm:$0xff] %vm351, %v332
      %367 = vst.msk [vmem:[%s350 + $0xb1] sm:$0xff] %vm351, %v333
      %368 = vst.msk [vmem:[%s350 + $0xc1] sm:$0xff] %vm351, %v334
      %369 = vst.msk [vmem:[%s350 + $0xc9] sm:$0xff] %vm351, %v335
      %370 = vst.msk [vmem:[%s350 + $0xd9] sm:$0xff] %vm351, %v336
      %371 = vst.msk [vmem:[%s350 + $0xe1] sm:$0xff] %vm351, %v337
      %372 = vst.msk [vmem:[%s350 + $0xf1] sm:$0xff] %vm351, %v338
      %373 = vst.msk [vmem:[%s350 + $0xf9] sm:$0xff] %vm351, %v339
      %374 = vst.msk [vmem:[%s350 + $0x109] sm:$0xff] %vm351, %v340
      %375 = vst.msk [vmem:[%s350 + $0x111] sm:$0xff] %vm351, %v341
      %376 = vst.msk [vmem:[%s350 + $0x121] sm:$0xff] %vm351, %v342
      %377 = vst.msk [vmem:[%s350 + $0x129] sm:$0xff] %vm351, %v343
      %378 = vst.msk [vmem:[%s350 + $0x139] sm:$0xff] %vm351, %v344
      %379 = vst.msk [vmem:[%s350 + $0x141] sm:$0xff] %vm351, %v345
      %380 = vst.msk [vmem:[%s350 + $0x151] sm:$0xff] %vm351, %v346
      %381 = vst.msk [vmem:[%s350 + $0x159] sm:$0xff] %vm351, %v347
      %382 = vst.msk [vmem:[%s350 + $0x169] sm:$0xff] %vm351, %v348
      %383 = vst.msk [vmem:[%s350 + $0x171] sm:$0xff] %vm351, %v349
      %v384 = vld [vmem:[%s248] sm:$0xf]
      %v385 = vld [vmem:[%s248 + $0x4] sm:$0xf]
      %v386 = vld [vmem:[%s248 + $0x8] sm:$0xf]
      %v387 = vld [vmem:[%s248 + $0xc] sm:$0xf]
      %v388 = vld [vmem:[%s248 + $0x10] sm:$0xf]
      %v389 = vld [vmem:[%s248 + $0x14] sm:$0xf]
      %v390 = vld [vmem:[%s248 + $0x18] sm:$0xf]
      %v391 = vld [vmem:[%s248 + $0x1c] sm:$0xf]
      %v392 = vld [vmem:[%s248 + $0x20] sm:$0xf]
      %v393 = vld [vmem:[%s248 + $0x24] sm:$0xf]
      %v394 = vld [vmem:[%s248 + $0x28] sm:$0xf]
      %v395 = vld [vmem:[%s248 + $0x2c] sm:$0xf]
      %v396 = vld [vmem:[%s248 + $0x30] sm:$0xf]
      %v397 = vld [vmem:[%s248 + $0x34] sm:$0xf]
      %v398 = vld [vmem:[%s248 + $0x38] sm:$0xf]
      %v399 = vld [vmem:[%s248 + $0x3c] sm:$0xf]
      %v400 = vld [vmem:[%s248 + $0x40] sm:$0xf]
      %v401 = vld [vmem:[%s248 + $0x44] sm:$0xf]
      %v402 = vld [vmem:[%s248 + $0x48] sm:$0xf]
      %v403 = vld [vmem:[%s248 + $0x4c] sm:$0xf]
      %v404 = vld [vmem:[%s248 + $0x50] sm:$0xf]
      %v405 = vld [vmem:[%s248 + $0x54] sm:$0xf]
      %v406 = vld [vmem:[%s248 + $0x58] sm:$0xf]
      %v407 = vld [vmem:[%s248 + $0x5c] sm:$0xf]
      %v408 = vld [vmem:[%s248 + $0x60] sm:$0xf]
      %v409 = vld [vmem:[%s248 + $0x64] sm:$0xf]
      %v410 = vld [vmem:[%s248 + $0x68] sm:$0xf]
      %v411 = vld [vmem:[%s248 + $0x6c] sm:$0xf]
      %v412 = vld [vmem:[%s248 + $0x70] sm:$0xf]
      %v413 = vld [vmem:[%s248 + $0x74] sm:$0xf]
      %v414 = vld [vmem:[%s248 + $0x78] sm:$0xf]
      %v415 = vld [vmem:[%s248 + $0x7c] sm:$0xf]
      %v416 = vld [vmem:[%s248 + $0x80] sm:$0xf]
      %v417 = vld [vmem:[%s248 + $0x84] sm:$0xf]
      %v418 = vld [vmem:[%s248 + $0x88] sm:$0xf]
      %v419 = vld [vmem:[%s248 + $0x8c] sm:$0xf]
      %v420 = vld [vmem:[%s248 + $0x90] sm:$0xf]
      %v421 = vld [vmem:[%s248 + $0x94] sm:$0xf]
      %v422 = vld [vmem:[%s248 + $0x98] sm:$0xf]
      %v423 = vld [vmem:[%s248 + $0x9c] sm:$0xf]
      %v424 = vld [vmem:[%s248 + $0xa0] sm:$0xf]
      %v425 = vld [vmem:[%s248 + $0xa4] sm:$0xf]
      %v426 = vld [vmem:[%s248 + $0xa8] sm:$0xf]
      %v427 = vld [vmem:[%s248 + $0xac] sm:$0xf]
      %v428 = vld [vmem:[%s248 + $0xb0] sm:$0xf]
      %v429 = vld [vmem:[%s248 + $0xb4] sm:$0xf]
      %v430 = vld [vmem:[%s248 + $0xb8] sm:$0xf]
      %v431 = vld [vmem:[%s248 + $0xbc] sm:$0xf]
      %v432 = vld [vmem:[%s248 + $0xc0] sm:$0xf]
      %v433 = vld [vmem:[%s248 + $0xc4] sm:$0xf]
      %v434 = vld [vmem:[%s248 + $0xc8] sm:$0xf]
      %v435 = vld [vmem:[%s248 + $0xcc] sm:$0xf]
      %v436 = vld [vmem:[%s248 + $0xd0] sm:$0xf]
      %v437 = vld [vmem:[%s248 + $0xd4] sm:$0xf]
      %v438 = vld [vmem:[%s248 + $0xd8] sm:$0xf]
      %v439 = vld [vmem:[%s248 + $0xdc] sm:$0xf]
      %v440 = vld [vmem:[%s248 + $0xe0] sm:$0xf]
      %v441 = vld [vmem:[%s248 + $0xe4] sm:$0xf]
      %v442 = vld [vmem:[%s248 + $0xe8] sm:$0xf]
      %v443 = vld [vmem:[%s248 + $0xec] sm:$0xf]
      %v444 = vld [vmem:[%s248 + $0xf0] sm:$0xf]
      %v445 = vld [vmem:[%s248 + $0xf4] sm:$0xf]
      %v446 = vld [vmem:[%s248 + $0xf8] sm:$0xf]
      %v447 = vld [vmem:[%s248 + $0xfc] sm:$0xf]
      %v448 = vld [vmem:[%s248 + $0x100] sm:$0xf]
      %v449 = vld [vmem:[%s248 + $0x104] sm:$0xf]
      %v450 = vld [vmem:[%s248 + $0x108] sm:$0xf]
      %v451 = vld [vmem:[%s248 + $0x10c] sm:$0xf]
      %v452 = vld [vmem:[%s248 + $0x110] sm:$0xf]
      %v453 = vld [vmem:[%s248 + $0x114] sm:$0xf]
      %v454 = vld [vmem:[%s248 + $0x118] sm:$0xf]
      %v455 = vld [vmem:[%s248 + $0x11c] sm:$0xf]
      %v456 = vld [vmem:[%s248 + $0x120] sm:$0xf]
      %v457 = vld [vmem:[%s248 + $0x124] sm:$0xf]
      %v458 = vld [vmem:[%s248 + $0x128] sm:$0xf]
      %v459 = vld [vmem:[%s248 + $0x12c] sm:$0xf]
      %v460 = vld [vmem:[%s248 + $0x130] sm:$0xf]
      %v461 = vld [vmem:[%s248 + $0x134] sm:$0xf]
      %v462 = vld [vmem:[%s248 + $0x138] sm:$0xf]
      %v463 = vld [vmem:[%s248 + $0x13c] sm:$0xf]
      %v464 = vld [vmem:[%s248 + $0x140] sm:$0xf]
      %v465 = vld [vmem:[%s248 + $0x144] sm:$0xf]
      %v466 = vld [vmem:[%s248 + $0x148] sm:$0xf]
      %v467 = vld [vmem:[%s248 + $0x14c] sm:$0xf]
      %v468 = vld [vmem:[%s248 + $0x150] sm:$0xf]
      %v469 = vld [vmem:[%s248 + $0x154] sm:$0xf]
      %v470 = vld [vmem:[%s248 + $0x158] sm:$0xf]
      %v471 = vld [vmem:[%s248 + $0x15c] sm:$0xf]
      %v472 = vld [vmem:[%s248 + $0x160] sm:$0xf]
      %v473 = vld [vmem:[%s248 + $0x164] sm:$0xf]
      %v474 = vld [vmem:[%s248 + $0x168] sm:$0xf]
      %v475 = vld [vmem:[%s248 + $0x16c] sm:$0xf]
      %v476 = vld [vmem:[%s248 + $0x170] sm:$0xf]
      %v477 = vld [vmem:[%s248 + $0x174] sm:$0xf]
      %v478 = vld [vmem:[%s248 + $0x178] sm:$0xf]
      %v479 = vld [vmem:[%s248 + $0x17c] sm:$0xf]
      %v480 = vld [vmem:[%s248 + $0x180] sm:$0xf]
      %v481 = vld [vmem:[%s248 + $0x184] sm:$0xf]
      %v482 = vld [vmem:[%s248 + $0x188] sm:$0xf]
      %v483 = vld [vmem:[%s248 + $0x18c] sm:$0xf]
      %v484 = vld [vmem:[%s248 + $0x190] sm:$0xf]
      %v485 = vld [vmem:[%s248 + $0x194] sm:$0xf]
      %v486 = vld [vmem:[%s248 + $0x198] sm:$0xf]
      %v487 = vld [vmem:[%s248 + $0x19c] sm:$0xf]
      %v488 = vld [vmem:[%s248 + $0x1a0] sm:$0xf]
      %v489 = vld [vmem:[%s248 + $0x1a4] sm:$0xf]
      %v490 = vld [vmem:[%s248 + $0x1a8] sm:$0xf]
      %v491 = vld [vmem:[%s248 + $0x1ac] sm:$0xf]
      %v492 = vld [vmem:[%s248 + $0x1b0] sm:$0xf]
      %v493 = vld [vmem:[%s248 + $0x1b4] sm:$0xf]
      %v494 = vld [vmem:[%s248 + $0x1b8] sm:$0xf]
      %v495 = vld [vmem:[%s248 + $0x1bc] sm:$0xf]
      %v496 = vld [vmem:[%s248 + $0x1c0] sm:$0xf]
      %v497 = vld [vmem:[%s248 + $0x1c4] sm:$0xf]
      %v498 = vld [vmem:[%s248 + $0x1c8] sm:$0xf]
      %v499 = vld [vmem:[%s248 + $0x1cc] sm:$0xf]
      %v500 = vld [vmem:[%s248 + $0x1d0] sm:$0xf]
      %v501 = vld [vmem:[%s248 + $0x1d4] sm:$0xf]
      %v502 = vld [vmem:[%s248 + $0x1d8] sm:$0xf]
      %v503 = vld [vmem:[%s248 + $0x1dc] sm:$0xf]
      %v504 = vld [vmem:[%s248 + $0x1e0] sm:$0xf]
      %v505 = vld [vmem:[%s248 + $0x1e4] sm:$0xf]
      %v506 = vld [vmem:[%s248 + $0x1e8] sm:$0xf]
      %v507 = vld [vmem:[%s248 + $0x1ec] sm:$0xf]
      %v508 = vld [vmem:[%s248 + $0x1f0] sm:$0xf]
      %v509 = vld [vmem:[%s248 + $0x1f4] sm:$0xf]
      %v510 = vld [vmem:[%s248 + $0x1f8] sm:$0xf]
      %v511 = vld [vmem:[%s248 + $0x1fc] sm:$0xf]
      %v512 = vld [vmem:[%s248 + $0x200] sm:$0xf]
      %v513 = vld [vmem:[%s248 + $0x204] sm:$0xf]
      %v514 = vld [vmem:[%s248 + $0x208] sm:$0xf]
      %v515 = vld [vmem:[%s248 + $0x20c] sm:$0xf]
      %v516 = vld [vmem:[%s248 + $0x210] sm:$0xf]
      %v517 = vld [vmem:[%s248 + $0x214] sm:$0xf]
      %v518 = vld [vmem:[%s248 + $0x218] sm:$0xf]
      %v519 = vld [vmem:[%s248 + $0x21c] sm:$0xf]
      %v520 = vld [vmem:[%s248 + $0x220] sm:$0xf]
      %v521 = vld [vmem:[%s248 + $0x224] sm:$0xf]
      %v522 = vld [vmem:[%s248 + $0x228] sm:$0xf]
      %v523 = vld [vmem:[%s248 + $0x22c] sm:$0xf]
      %v524 = vld [vmem:[%s248 + $0x230] sm:$0xf]
      %v525 = vld [vmem:[%s248 + $0x234] sm:$0xf]
      %v526 = vld [vmem:[%s248 + $0x238] sm:$0xf]
      %v527 = vld [vmem:[%s248 + $0x23c] sm:$0xf]
      %v528 = vld [vmem:[#allocation2] sm:$0xff]
      %v529 = vld [vmem:[#allocation2 + $0x8] sm:$0xff]
      %v530 = vld [vmem:[#allocation2 + $0x18] sm:$0xff]
      %v531 = vld [vmem:[#allocation2 + $0x20] sm:$0xff]
      %v532 = vld [vmem:[#allocation2 + $0x30] sm:$0xff]
      %v533 = vld [vmem:[#allocation2 + $0x38] sm:$0xff]
      %v534 = vld [vmem:[#allocation2 + $0x48] sm:$0xff]
      %v535 = vld [vmem:[#allocation2 + $0x50] sm:$0xff]
      %v536 = vld [vmem:[#allocation2 + $0x60] sm:$0xff]
      %v537 = vld [vmem:[#allocation2 + $0x68] sm:$0xff]
      %v538 = vld [vmem:[#allocation2 + $0x78] sm:$0xff]
      %v539 = vld [vmem:[#allocation2 + $0x80] sm:$0xff]
      %v540 = vld [vmem:[#allocation2 + $0x90] sm:$0xff]
      %v541 = vld [vmem:[#allocation2 + $0x98] sm:$0xff]
      %v542 = vld [vmem:[#allocation2 + $0xa8] sm:$0xff]
      %v543 = vld [vmem:[#allocation2 + $0xb0] sm:$0xff]
      %v544 = vld [vmem:[#allocation2 + $0xc0] sm:$0xff]
      %v545 = vld [vmem:[#allocation2 + $0xc8] sm:$0xff]
      %v546 = vld [vmem:[#allocation2 + $0xd8] sm:$0xff]
      %v547 = vld [vmem:[#allocation2 + $0xe0] sm:$0xff]
      %v548 = vld [vmem:[#allocation2 + $0xf0] sm:$0xff]
      %v549 = vld [vmem:[#allocation2 + $0xf8] sm:$0xff]
      %v550 = vld [vmem:[#allocation2 + $0x108] sm:$0xff]
      %v551 = vld [vmem:[#allocation2 + $0x110] sm:$0xff]
      %v552 = vld [vmem:[#allocation2 + $0x120] sm:$0xff]
      %v553 = vld [vmem:[#allocation2 + $0x128] sm:$0xff]
      %v554 = vld [vmem:[#allocation2 + $0x138] sm:$0xff]
      %v555 = vld [vmem:[#allocation2 + $0x140] sm:$0xff]
      %v556 = vld [vmem:[#allocation2 + $0x150] sm:$0xff]
      %v557 = vld [vmem:[#allocation2 + $0x158] sm:$0xff]
      %v558 = vld [vmem:[#allocation2 + $0x168] sm:$0xff]
      %v559 = vld [vmem:[#allocation2 + $0x170] sm:$0xff]
      %v560 = vld [vmem:[#allocation2 + $0x180] sm:$0xff]
      %v561 = vld [vmem:[#allocation2 + $0x188] sm:$0xff]
      %v562 = vld [vmem:[#allocation2 + $0x198] sm:$0xff]
      %v563 = vld [vmem:[#allocation2 + $0x1a0] sm:$0xff]
      %v564 = vpack.c.bf16 %v529, %v528
      %v565 = vpack.c.bf16 %v531, %v530
      %v566 = vpack.c.bf16 %v533, %v532
      %v567 = vpack.c.bf16 %v535, %v534
      %v568 = vpack.c.bf16 %v537, %v536
      %v569 = vpack.c.bf16 %v539, %v538
      %v570 = vpack.c.bf16 %v541, %v540
      %v571 = vpack.c.bf16 %v543, %v542
      %v572 = vpack.c.bf16 %v545, %v544
      %v573 = vpack.c.bf16 %v547, %v546
      %v574 = vpack.c.bf16 %v549, %v548
      %v575 = vpack.c.bf16 %v551, %v550
      %v576 = vpack.c.bf16 %v553, %v552
      %v577 = vpack.c.bf16 %v555, %v554
      %v578 = vpack.c.bf16 %v557, %v556
      %v579 = vpack.c.bf16 %v559, %v558
      %v580 = vpack.c.bf16 %v561, %v560
      %v581 = vpack.c.bf16 %v563, %v562
      %v598 = vunpack.c.l.b16 %v432
      %v599 = vunpack.c.l.b16 %v433
      %v600 = vunpack.c.l.b16 %v434
      %v601 = vunpack.c.l.b16 %v435
      %v602 = vunpack.c.l.b16 %v436
      %v603 = vunpack.c.l.b16 %v437
      %v604 = vunpack.c.l.b16 %v438
      %v605 = vunpack.c.l.b16 %v439
      %v606 = vunpack.c.l.b16 %v440
      %v607 = vunpack.c.l.b16 %v441
      %v608 = vunpack.c.l.b16 %v442
      %v609 = vunpack.c.l.b16 %v443
      %v610 = vunpack.c.l.b16 %v444
      %v611 = vunpack.c.l.b16 %v445
      %v612 = vunpack.c.l.b16 %v446
      %v613 = vunpack.c.l.b16 %v447
      %v614 = vpack.c.b16 %v599, %v598
      %v615 = vpack.c.b16 %v601, %v600
      %v616 = vpack.c.b16 %v603, %v602
      %v617 = vpack.c.b16 %v605, %v604
      %v618 = vpack.c.b16 %v607, %v606
      %v619 = vpack.c.b16 %v609, %v608
      %v620 = vpack.c.b16 %v611, %v610
      %v621 = vpack.c.b16 %v613, %v612
      %630 = vmatprep.subr.bf16.mxu0 0
      %631 = vmatpush1.bf16.msra.mxu0 %v614
      %632 = vmatprep.subr.bf16.mxu0 0
      %633 = vmatpush1.bf16.msra.mxu0 %v615
      %634 = vmatprep.subr.bf16.mxu0 0
      %635 = vmatpush1.bf16.msra.mxu0 %v616
      %636 = vmatprep.subr.bf16.mxu0 0
      %637 = vmatpush1.bf16.msra.mxu0 %v617
      %638 = vmatprep.subr.bf16.mxu0 0
      %639 = vmatpush1.bf16.msra.mxu0 %v618
      %640 = vmatprep.subr.bf16.mxu0 0
      %641 = vmatpush1.bf16.msra.mxu0 %v619
      %642 = vmatprep.subr.bf16.mxu0 0
      %643 = vmatpush1.bf16.msra.mxu0 %v620
      %644 = vmatprep.subr.bf16.mxu0 0
      %645 = vmatpush1.bf16.msra.mxu0 %v621
      %646 = vmatprep.subr.bf16.mxu0 0
      %647 = vmatpush1.bf16.msra.mxu0 0
      %648 = vmatprep.subr.bf16.mxu0 0
      %649 = vmatpush1.bf16.msra.mxu0 0
      %650 = vmatprep.subr.bf16.mxu0 0
      %651 = vmatpush1.bf16.msra.mxu0 0
      %652 = vmatprep.subr.bf16.mxu0 0
      %653 = vmatpush1.bf16.msra.mxu0 0
      %654 = vmatprep.subr.bf16.mxu0 0
      %655 = vmatpush1.bf16.msra.mxu0 0
      %656 = vmatprep.subr.bf16.mxu0 0
      %657 = vmatpush1.bf16.msra.mxu0 0
      %658 = vmatprep.subr.bf16.mxu0 0
      %659 = vmatpush1.bf16.msra.mxu0 0
      %660 = vmatprep.subr.bf16.mxu0 0
      %661 = vmatpush1.bf16.msra.mxu0 0
      %662 = vmatprep.mubr.bf16.mxu0 0
      %663 = vmatmul.mubr.bf16.gmra.mrb[0].mxu0 %v565
      %v664 = vpop.f32.mrb[0].mxu0
      %v665 = vadd.f32 0.0, %v664
      %v666 = vpop.f32.mrb[0].mxu0
      %v667 = vpop.f32.mrb[0].mxu0
      %v668 = vadd.f32 0.0, %v667
      %v669 = vpop.f32.mrb[0].mxu0
      %670 = vmatprep.mubr.bf16.mxu0 0
      %671 = vmatmul.mubr.bf16.gmra.mrb[0].mxu0 %v566
      %v672 = vpop.f32.mrb[0].mxu0
      %v673 = vadd.f32 0.0, %v672
      %v674 = vpop.f32.mrb[0].mxu0
      %v675 = vpop.f32.mrb[0].mxu0
      %v676 = vadd.f32 0.0, %v675
      %v677 = vpop.f32.mrb[0].mxu0
      %678 = vmatprep.mubr.bf16.mxu0 0
      %679 = vmatmul.mubr.bf16.gmra.mrb[0].mxu0 %v567
      %v680 = vpop.f32.mrb[0].mxu0
      %v681 = vadd.f32 0.0, %v680
      %v682 = vpop.f32.mrb[0].mxu0
      %v683 = vpop.f32.mrb[0].mxu0
      %v684 = vadd.f32 0.0, %v683
      %v685 = vpop.f32.mrb[0].mxu0
      %686 = vmatprep.mubr.bf16.mxu0 0
      %687 = vmatmul.mubr.bf16.gmra.mrb[0].mxu0 %v568
      %v688 = vpop.f32.mrb[0].mxu0
      %v689 = vadd.f32 0.0, %v688
      %v690 = vpop.f32.mrb[0].mxu0
      %v691 = vpop.f32.mrb[0].mxu0
      %v692 = vadd.f32 0.0, %v691
      %v693 = vpop.f32.mrb[0].mxu0
      %694 = vmatprep.mubr.bf16.mxu0 0
      %695 = vmatmul.mubr.bf16.gmra.mrb[0].mxu0 %v569
      %v696 = vpop.f32.mrb[0].mxu0
      %v697 = vadd.f32 0.0, %v696
      %v698 = vpop.f32.mrb[0].mxu0
      %v699 = vpop.f32.mrb[0].mxu0
      %v700 = vadd.f32 0.0, %v699
      %v701 = vpop.f32.mrb[0].mxu0
      %702 = vmatprep.mubr.bf16.mxu0 0
      %703 = vmatmul.mubr.bf16.gmra.mrb[0].mxu0 %v570
      %v704 = vpop.f32.mrb[0].mxu0
      %v705 = vadd.f32 0.0, %v704
      %v706 = vpop.f32.mrb[0].mxu0
      %v707 = vpop.f32.mrb[0].mxu0
      %v708 = vadd.f32 0.0, %v707
      %v709 = vpop.f32.mrb[0].mxu0
      %710 = vmatprep.mubr.bf16.mxu0 0
      %711 = vmatmul.mubr.bf16.gmra.mrb[0].mxu0 %v571
      %v712 = vpop.f32.mrb[0].mxu0
      %v713 = vadd.f32 0.0, %v712
      %v714 = vpop.f32.mrb[0].mxu0
      %v715 = vpop.f32.mrb[0].mxu0
      %v716 = vadd.f32 0.0, %v715
      %v717 = vpop.f32.mrb[0].mxu0
      %718 = vmatprep.mubr.bf16.mxu0 0
      %719 = vmatmul.mubr.bf16.gmra.mrb[0].mxu0 %v572
      %v720 = vpop.f32.mrb[0].mxu0
      %v721 = vadd.f32 0.0, %v720
      %v722 = vpop.f32.mrb[0].mxu0
      %v723 = vpop.f32.mrb[0].mxu0
      %v724 = vadd.f32 0.0, %v723
      %v725 = vpop.f32.mrb[0].mxu0
      %726 = vmatprep.mubr.bf16.mxu0 0
      %727 = vmatmul.mubr.bf16.gmra.mrb[0].mxu0 %v573
      %v728 = vpop.f32.mrb[0].mxu0
      %v729 = vadd.f32 0.0, %v728
      %v730 = vpop.f32.mrb[0].mxu0
      %v731 = vpop.f32.mrb[0].mxu0
      %v732 = vadd.f32 0.0, %v731
      %v733 = vpop.f32.mrb[0].mxu0
      %734 = vmatprep.mubr.bf16.mxu0 0
      %735 = vmatmul.mubr.bf16.gmra.mrb[0].mxu0 %v574
      %v736 = vpop.f32.mrb[0].mxu0
      %v737 = vadd.f32 0.0, %v736
      %v738 = vpop.f32.mrb[0].mxu0
      %v739 = vpop.f32.mrb[0].mxu0
      %v740 = vadd.f32 0.0, %v739
      %v741 = vpop.f32.mrb[0].mxu0
      %742 = vmatprep.mubr.bf16.mxu0 0
      %743 = vmatmul.mubr.bf16.gmra.mrb[0].mxu0 %v575
      %v744 = vpop.f32.mrb[0].mxu0
      %v745 = vadd.f32 0.0, %v744
      %v746 = vpop.f32.mrb[0].mxu0
      %v747 = vpop.f32.mrb[0].mxu0
      %v748 = vadd.f32 0.0, %v747
      %v749 = vpop.f32.mrb[0].mxu0
      %750 = vmatprep.mubr.bf16.mxu0 0
      %751 = vmatmul.mubr.bf16.gmra.mrb[0].mxu0 %v576
      %v752 = vpop.f32.mrb[0].mxu0
      %v753 = vadd.f32 0.0, %v752
      %v754 = vpop.f32.mrb[0].mxu0
      %v755 = vpop.f32.mrb[0].mxu0
      %v756 = vadd.f32 0.0, %v755
      %v757 = vpop.f32.mrb[0].mxu0
      %758 = vmatprep.mubr.bf16.mxu0 0
      %759 = vmatmul.mubr.bf16.gmra.mrb[0].mxu0 %v577
      %v760 = vpop.f32.mrb[0].mxu0
      %v761 = vadd.f32 0.0, %v760
      %v762 = vpop.f32.mrb[0].mxu0
      %v763 = vpop.f32.mrb[0].mxu0
      %v764 = vadd.f32 0.0, %v763
      %v765 = vpop.f32.mrb[0].mxu0
      %766 = vmatprep.mubr.bf16.mxu0 0
      %767 = vmatmul.mubr.bf16.gmra.mrb[0].mxu0 %v578
      %v768 = vpop.f32.mrb[0].mxu0
      %v769 = vadd.f32 0.0, %v768
      %v770 = vpop.f32.mrb[0].mxu0
      %v771 = vpop.f32.mrb[0].mxu0
      %v772 = vadd.f32 0.0, %v771
      %v773 = vpop.f32.mrb[0].mxu0
      %774 = vmatprep.mubr.bf16.mxu0 0
      %775 = vmatmul.mubr.bf16.gmra.mrb[0].mxu0 %v579
      %v776 = vpop.f32.mrb[0].mxu0
      %v777 = vadd.f32 0.0, %v776
      %v778 = vpop.f32.mrb[0].mxu0
      %v779 = vpop.f32.mrb[0].mxu0
      %v780 = vadd.f32 0.0, %v779
      %v781 = vpop.f32.mrb[0].mxu0
      %782 = vmatprep.mubr.bf16.mxu0 0
      %783 = vmatmul.mubr.bf16.gmra.mrb[0].mxu0 %v580
      %v784 = vpop.f32.mrb[0].mxu0
      %v785 = vadd.f32 0.0, %v784
      %v786 = vpop.f32.mrb[0].mxu0
      %v787 = vpop.f32.mrb[0].mxu0
      %v788 = vadd.f32 0.0, %v787
      %v789 = vpop.f32.mrb[0].mxu0
      %790 = vdwg.mxu0
      %v807 = vunpack.c.l.b16 %v384
      %v808 = vunpack.c.l.b16 %v385
      %v809 = vunpack.c.l.b16 %v386
      %v810 = vunpack.c.l.b16 %v387
      %v811 = vunpack.c.l.b16 %v388
      %v812 = vunpack.c.l.b16 %v389
      %v813 = vunpack.c.l.b16 %v390
      %v814 = vunpack.c.l.b16 %v391
      %v815 = vunpack.c.l.b16 %v392
      %v816 = vunpack.c.l.b16 %v393
      %v817 = vunpack.c.l.b16 %v394
      %v818 = vunpack.c.l.b16 %v395
      %v819 = vunpack.c.l.b16 %v396
      %v820 = vunpack.c.l.b16 %v397
      %v821 = vunpack.c.l.b16 %v398
      %v822 = vunpack.c.l.b16 %v399
      %v823 = vpack.c.b16 %v808, %v807
      %v824 = vpack.c.b16 %v810, %v809
      %v825 = vpack.c.b16 %v812, %v811
      %v826 = vpack.c.b16 %v814, %v813
      %v827 = vpack.c.b16 %v816, %v815
      %v828 = vpack.c.b16 %v818, %v817
      %v829 = vpack.c.b16 %v820, %v819
      %v830 = vpack.c.b16 %v822, %v821
      %839 = vmatprep.subr.bf16.mxu0 0
      %840 = vmatpush1.bf16.msra.mxu0 %v823
      %841 = vmatprep.subr.bf16.mxu0 0
      %842 = vmatpush1.bf16.msra.mxu0 %v824
      %843 = vmatprep.subr.bf16.mxu0 0
      %844 = vmatpush1.bf16.msra.mxu0 %v825
      %845 = vmatprep.subr.bf16.mxu0 0
      %846 = vmatpush1.bf16.msra.mxu0 %v826
      %847 = vmatprep.subr.bf16.mxu0 0
      %848 = vmatpush1.bf16.msra.mxu0 %v827
      %849 = vmatprep.subr.bf16.mxu0 0
      %850 = vmatpush1.bf16.msra.mxu0 %v828
      %851 = vmatprep.subr.bf16.mxu0 0
      %852 = vmatpush1.bf16.msra.mxu0 %v829
      %853 = vmatprep.subr.bf16.mxu0 0
      %854 = vmatpush1.bf16.msra.mxu0 %v830
      %855 = vmatprep.subr.bf16.mxu0 0
      %856 = vmatpush1.bf16.msra.mxu0 0
      %857 = vmatprep.subr.bf16.mxu0 0
      %858 = vmatpush1.bf16.msra.mxu0 0
      %859 = vmatprep.subr.bf16.mxu0 0
      %860 = vmatpush1.bf16.msra.mxu0 0
      %861 = vmatprep.subr.bf16.mxu0 0
      %862 = vmatpush1.bf16.msra.mxu0 0
      %863 = vmatprep.subr.bf16.mxu0 0
      %864 = vmatpush1.bf16.msra.mxu0 0
      %865 = vmatprep.subr.bf16.mxu0 0
      %866 = vmatpush1.bf16.msra.mxu0 0
      %867 = vmatprep.subr.bf16.mxu0 0
      %868 = vmatpush1.bf16.msra.mxu0 0
      %869 = vmatprep.subr.bf16.mxu0 0
      %870 = vmatpush1.bf16.msra.mxu0 0
      %871 = vmatprep.mubr.bf16.mxu0 0
      %872 = vmatmul.mubr.bf16.gmra.mrb[0].mxu0 %v564
      %v873 = vpop.f32.mrb[0].mxu0
      %v874 = vadd.f32 %v665, %v873
      %v875 = vpop.f32.mrb[0].mxu0
      %v876 = vpop.f32.mrb[0].mxu0
      %v877 = vadd.f32 %v668, %v876
      %v878 = vpop.f32.mrb[0].mxu0
      %879 = vmatprep.mubr.bf16.mxu0 0
      %880 = vmatmul.mubr.bf16.gmra.mrb[0].mxu0 %v565
      %v881 = vpop.f32.mrb[0].mxu0
      %v882 = vadd.f32 %v673, %v881
      %v883 = vpop.f32.mrb[0].mxu0
      %v884 = vpop.f32.mrb[0].mxu0
      %v885 = vadd.f32 %v676, %v884
      %v886 = vpop.f32.mrb[0].mxu0
      %887 = vmatprep.mubr.bf16.mxu0 0
      %888 = vmatmul.mubr.bf16.gmra.mrb[0].mxu0 %v566
      %v889 = vpop.f32.mrb[0].mxu0
      %v890 = vadd.f32 %v681, %v889
      %v891 = vpop.f32.mrb[0].mxu0
      %v892 = vpop.f32.mrb[0].mxu0
      %v893 = vadd.f32 %v684, %v892
      %v894 = vpop.f32.mrb[0].mxu0
      %895 = vmatprep.mubr.bf16.mxu0 0
      %896 = vmatmul.mubr.bf16.gmra.mrb[0].mxu0 %v567
      %v897 = vpop.f32.mrb[0].mxu0
      %v898 = vadd.f32 %v689, %v897
      %v899 = vpop.f32.mrb[0].mxu0
      %v900 = vpop.f32.mrb[0].mxu0
      %v901 = vadd.f32 %v692, %v900
      %v902 = vpop.f32.mrb[0].mxu0
      %903 = vmatprep.mubr.bf16.mxu0 0
      %904 = vmatmul.mubr.bf16.gmra.mrb[0].mxu0 %v568
      %v905 = vpop.f32.mrb[0].mxu0
      %v906 = vadd.f32 %v697, %v905
      %v907 = vpop.f32.mrb[0].mxu0
      %v908 = vpop.f32.mrb[0].mxu0
      %v909 = vadd.f32 %v700, %v908
      %v910 = vpop.f32.mrb[0].mxu0
      %911 = vmatprep.mubr.bf16.mxu0 0
      %912 = vmatmul.mubr.bf16.gmra.mrb[0].mxu0 %v569
      %v913 = vpop.f32.mrb[0].mxu0
      %v914 = vadd.f32 %v705, %v913
      %v915 = vpop.f32.mrb[0].mxu0
      %v916 = vpop.f32.mrb[0].mxu0
      %v917 = vadd.f32 %v708, %v916
      %v918 = vpop.f32.mrb[0].mxu0
      %919 = vmatprep.mubr.bf16.mxu0 0
      %920 = vmatmul.mubr.bf16.gmra.mrb[0].mxu0 %v570
      %v921 = vpop.f32.mrb[0].mxu0
      %v922 = vadd.f32 %v713, %v921
      %v923 = vpop.f32.mrb[0].mxu0
      %v924 = vpop.f32.mrb[0].mxu0
      %v925 = vadd.f32 %v716, %v924
      %v926 = vpop.f32.mrb[0].mxu0
      %927 = vmatprep.mubr.bf16.mxu0 0
      %928 = vmatmul.mubr.bf16.gmra.mrb[0].mxu0 %v571
      %v929 = vpop.f32.mrb[0].mxu0
      %v930 = vadd.f32 %v721, %v929
      %v931 = vpop.f32.mrb[0].mxu0
      %v932 = vpop.f32.mrb[0].mxu0
      %v933 = vadd.f32 %v724, %v932
      %v934 = vpop.f32.mrb[0].mxu0
      %935 = vmatprep.mubr.bf16.mxu0 0
      %936 = vmatmul.mubr.bf16.gmra.mrb[0].mxu0 %v572
      %v937 = vpop.f32.mrb[0].mxu0
      %v938 = vadd.f32 %v729, %v937
      %v939 = vpop.f32.mrb[0].mxu0
      %v940 = vpop.f32.mrb[0].mxu0
      %v941 = vadd.f32 %v732, %v940
      %v942 = vpop.f32.mrb[0].mxu0
      %943 = vmatprep.mubr.bf16.mxu0 0
      %944 = vmatmul.mubr.bf16.gmra.mrb[0].mxu0 %v573
      %v945 = vpop.f32.mrb[0].mxu0
      %v946 = vadd.f32 %v737, %v945
      %v947 = vpop.f32.mrb[0].mxu0
      %v948 = vpop.f32.mrb[0].mxu0
      %v949 = vadd.f32 %v740, %v948
      %v950 = vpop.f32.mrb[0].mxu0
      %951 = vmatprep.mubr.bf16.mxu0 0
      %952 = vmatmul.mubr.bf16.gmra.mrb[0].mxu0 %v574
      %v953 = vpop.f32.mrb[0].mxu0
      %v954 = vadd.f32 %v745, %v953
      %v955 = vpop.f32.mrb[0].mxu0
      %v956 = vpop.f32.mrb[0].mxu0
      %v957 = vadd.f32 %v748, %v956
      %v958 = vpop.f32.mrb[0].mxu0
      %959 = vmatprep.mubr.bf16.mxu0 0
      %960 = vmatmul.mubr.bf16.gmra.mrb[0].mxu0 %v575
      %v961 = vpop.f32.mrb[0].mxu0
      %v962 = vadd.f32 %v753, %v961
      %v963 = vpop.f32.mrb[0].mxu0
      %v964 = vpop.f32.mrb[0].mxu0
      %v965 = vadd.f32 %v756, %v964
      %v966 = vpop.f32.mrb[0].mxu0
      %967 = vmatprep.mubr.bf16.mxu0 0
      %968 = vmatmul.mubr.bf16.gmra.mrb[0].mxu0 %v576
      %v969 = vpop.f32.mrb[0].mxu0
      %v970 = vadd.f32 %v761, %v969
      %v971 = vpop.f32.mrb[0].mxu0
      %v972 = vpop.f32.mrb[0].mxu0
      %v973 = vadd.f32 %v764, %v972
      %v974 = vpop.f32.mrb[0].mxu0
      %975 = vmatprep.mubr.bf16.mxu0 0
      %976 = vmatmul.mubr.bf16.gmra.mrb[0].mxu0 %v577
      %v977 = vpop.f32.mrb[0].mxu0
      %v978 = vadd.f32 %v769, %v977
      %v979 = vpop.f32.mrb[0].mxu0
      %v980 = vpop.f32.mrb[0].mxu0
      %v981 = vadd.f32 %v772, %v980
      %v982 = vpop.f32.mrb[0].mxu0
      %983 = vmatprep.mubr.bf16.mxu0 0
      %984 = vmatmul.mubr.bf16.gmra.mrb[0].mxu0 %v578
      %v985 = vpop.f32.mrb[0].mxu0
      %v986 = vadd.f32 %v777, %v985
      %v987 = vpop.f32.mrb[0].mxu0
      %v988 = vpop.f32.mrb[0].mxu0
      %v989 = vadd.f32 %v780, %v988
      %v990 = vpop.f32.mrb[0].mxu0
      %991 = vmatprep.mubr.bf16.mxu0 0
      %992 = vmatmul.mubr.bf16.gmra.mrb[0].mxu0 %v579
      %v993 = vpop.f32.mrb[0].mxu0
      %v994 = vadd.f32 %v785, %v993
      %v995 = vpop.f32.mrb[0].mxu0
      %v996 = vpop.f32.mrb[0].mxu0
      %v997 = vadd.f32 %v788, %v996
      %v998 = vpop.f32.mrb[0].mxu0
      %999 = vdwg.mxu0
      %v1016 = vunpack.c.l.b16 %v480
      %v1017 = vunpack.c.l.b16 %v481
      %v1018 = vunpack.c.l.b16 %v482
      %v1019 = vunpack.c.l.b16 %v483
      %v1020 = vunpack.c.l.b16 %v484
      %v1021 = vunpack.c.l.b16 %v485
      %v1022 = vunpack.c.l.b16 %v486
      %v1023 = vunpack.c.l.b16 %v487
      %v1024 = vunpack.c.l.b16 %v488
      %v1025 = vunpack.c.l.b16 %v489
      %v1026 = vunpack.c.l.b16 %v490
      %v1027 = vunpack.c.l.b16 %v491
      %v1028 = vunpack.c.l.b16 %v492
      %v1029 = vunpack.c.l.b16 %v493
      %v1030 = vunpack.c.l.b16 %v494
      %v1031 = vunpack.c.l.b16 %v495
      %v1032 = vpack.c.b16 %v1017, %v1016
      %v1033 = vpack.c.b16 %v1019, %v1018
      %v1034 = vpack.c.b16 %v1021, %v1020
      %v1035 = vpack.c.b16 %v1023, %v1022
      %v1036 = vpack.c.b16 %v1025, %v1024
      %v1037 = vpack.c.b16 %v1027, %v1026
      %v1038 = vpack.c.b16 %v1029, %v1028
      %v1039 = vpack.c.b16 %v1031, %v1030
      %1048 = vmatprep.subr.bf16.mxu0 0
      %1049 = vmatpush1.bf16.msra.mxu0 %v1032
      %1050 = vmatprep.subr.bf16.mxu0 0
      %1051 = vmatpush1.bf16.msra.mxu0 %v1033
      %1052 = vmatprep.subr.bf16.mxu0 0
      %1053 = vmatpush1.bf16.msra.mxu0 %v1034
      %1054 = vmatprep.subr.bf16.mxu0 0
      %1055 = vmatpush1.bf16.msra.mxu0 %v1035
      %1056 = vmatprep.subr.bf16.mxu0 0
      %1057 = vmatpush1.bf16.msra.mxu0 %v1036
      %1058 = vmatprep.subr.bf16.mxu0 0
      %1059 = vmatpush1.bf16.msra.mxu0 %v1037
      %1060 = vmatprep.subr.bf16.mxu0 0
      %1061 = vmatpush1.bf16.msra.mxu0 %v1038
      %1062 = vmatprep.subr.bf16.mxu0 0
      %1063 = vmatpush1.bf16.msra.mxu0 %v1039
      %1064 = vmatprep.subr.bf16.mxu0 0
      %1065 = vmatpush1.bf16.msra.mxu0 0
      %1066 = vmatprep.subr.bf16.mxu0 0
      %1067 = vmatpush1.bf16.msra.mxu0 0
      %1068 = vmatprep.subr.bf16.mxu0 0
      %1069 = vmatpush1.bf16.msra.mxu0 0
      %1070 = vmatprep.subr.bf16.mxu0 0
      %1071 = vmatpush1.bf16.msra.mxu0 0
      %1072 = vmatprep.subr.bf16.mxu0 0
      %1073 = vmatpush1.bf16.msra.mxu0 0
      %1074 = vmatprep.subr.bf16.mxu0 0
      %1075 = vmatpush1.bf16.msra.mxu0 0
      %1076 = vmatprep.subr.bf16.mxu0 0
      %1077 = vmatpush1.bf16.msra.mxu0 0
      %1078 = vmatprep.subr.bf16.mxu0 0
      %1079 = vmatpush1.bf16.msra.mxu0 0
      %1080 = vmatprep.mubr.bf16.mxu0 0
      %1081 = vmatmul.mubr.bf16.gmra.mrb[0].mxu0 %v566
      %v1082 = vpop.f32.mrb[0].mxu0
      %v1083 = vadd.f32 0.0, %v1082
      %v1084 = vpop.f32.mrb[0].mxu0
      %v1085 = vpop.f32.mrb[0].mxu0
      %v1086 = vadd.f32 0.0, %v1085
      %v1087 = vpop.f32.mrb[0].mxu0
      %1088 = vmatprep.mubr.bf16.mxu0 0
      %1089 = vmatmul.mubr.bf16.gmra.mrb[0].mxu0 %v567
      %v1090 = vpop.f32.mrb[0].mxu0
      %v1091 = vadd.f32 0.0, %v1090
      %v1092 = vpop.f32.mrb[0].mxu0
      %v1093 = vpop.f32.mrb[0].mxu0
      %v1094 = vadd.f32 0.0, %v1093
      %v1095 = vpop.f32.mrb[0].mxu0
      %1096 = vmatprep.mubr.bf16.mxu0 0
      %1097 = vmatmul.mubr.bf16.gmra.mrb[0].mxu0 %v568
      %v1098 = vpop.f32.mrb[0].mxu0
      %v1099 = vadd.f32 0.0, %v1098
      %v1100 = vpop.f32.mrb[0].mxu0
      %v1101 = vpop.f32.mrb[0].mxu0
      %v1102 = vadd.f32 0.0, %v1101
      %v1103 = vpop.f32.mrb[0].mxu0
      %1104 = vmatprep.mubr.bf16.mxu0 0
      %1105 = vmatmul.mubr.bf16.gmra.mrb[0].mxu0 %v569
      %v1106 = vpop.f32.mrb[0].mxu0
      %v1107 = vadd.f32 0.0, %v1106
      %v1108 = vpop.f32.mrb[0].mxu0
      %v1109 = vpop.f32.mrb[0].mxu0
      %v1110 = vadd.f32 0.0, %v1109
      %v1111 = vpop.f32.mrb[0].mxu0
      %1112 = vmatprep.mubr.bf16.mxu0 0
      %1113 = vmatmul.mubr.bf16.gmra.mrb[0].mxu0 %v570
      %v1114 = vpop.f32.mrb[0].mxu0
      %v1115 = vadd.f32 0.0, %v1114
      %v1116 = vpop.f32.mrb[0].mxu0
      %v1117 = vpop.f32.mrb[0].mxu0
      %v1118 = vadd.f32 0.0, %v1117
      %v1119 = vpop.f32.mrb[0].mxu0
      %1120 = vmatprep.mubr.bf16.mxu0 0
      %1121 = vmatmul.mubr.bf16.gmra.mrb[0].mxu0 %v571
      %v1122 = vpop.f32.mrb[0].mxu0
      %v1123 = vadd.f32 0.0, %v1122
      %v1124 = vpop.f32.mrb[0].mxu0
      %v1125 = vpop.f32.mrb[0].mxu0
      %v1126 = vadd.f32 0.0, %v1125
      %v1127 = vpop.f32.mrb[0].mxu0
      %1128 = vmatprep.mubr.bf16.mxu0 0
      %1129 = vmatmul.mubr.bf16.gmra.mrb[0].mxu0 %v572
      %v1130 = vpop.f32.mrb[0].mxu0
      %v1131 = vadd.f32 0.0, %v1130
      %v1132 = vpop.f32.mrb[0].mxu0
      %v1133 = vpop.f32.mrb[0].mxu0
      %v1134 = vadd.f32 0.0, %v1133
      %v1135 = vpop.f32.mrb[0].mxu0
      %1136 = vmatprep.mubr.bf16.mxu0 0
      %1137 = vmatmul.mubr.bf16.gmra.mrb[0].mxu0 %v573
      %v1138 = vpop.f32.mrb[0].mxu0
      %v1139 = vadd.f32 0.0, %v1138
      %v1140 = vpop.f32.mrb[0].mxu0
      %v1141 = vpop.f32.mrb[0].mxu0
      %v1142 = vadd.f32 0.0, %v1141
      %v1143 = vpop.f32.mrb[0].mxu0
      %1144 = vmatprep.mubr.bf16.mxu0 0
      %1145 = vmatmul.mubr.bf16.gmra.mrb[0].mxu0 %v574
      %v1146 = vpop.f32.mrb[0].mxu0
      %v1147 = vadd.f32 0.0, %v1146
      %v1148 = vpop.f32.mrb[0].mxu0
      %v1149 = vpop.f32.mrb[0].mxu0
      %v1150 = vadd.f32 0.0, %v1149
      %v1151 = vpop.f32.mrb[0].mxu0
      %1152 = vmatprep.mubr.bf16.mxu0 0
      %1153 = vmatmul.mubr.bf16.gmra.mrb[0].mxu0 %v575
      %v1154 = vpop.f32.mrb[0].mxu0
      %v1155 = vadd.f32 0.0, %v1154
      %v1156 = vpop.f32.mrb[0].mxu0
      %v1157 = vpop.f32.mrb[0].mxu0
      %v1158 = vadd.f32 0.0, %v1157
      %v1159 = vpop.f32.mrb[0].mxu0
      %1160 = vmatprep.mubr.bf16.mxu0 0
      %1161 = vmatmul.mubr.bf16.gmra.mrb[0].mxu0 %v576
      %v1162 = vpop.f32.mrb[0].mxu0
      %v1163 = vadd.f32 0.0, %v1162
      %v1164 = vpop.f32.mrb[0].mxu0
      %v1165 = vpop.f32.mrb[0].mxu0
      %v1166 = vadd.f32 0.0, %v1165
      %v1167 = vpop.f32.mrb[0].mxu0
      %1168 = vmatprep.mubr.bf16.mxu0 0
      %1169 = vmatmul.mubr.bf16.gmra.mrb[0].mxu0 %v577
      %v1170 = vpop.f32.mrb[0].mxu0
      %v1171 = vadd.f32 0.0, %v1170
      %v1172 = vpop.f32.mrb[0].mxu0
      %v1173 = vpop.f32.mrb[0].mxu0
      %v1174 = vadd.f32 0.0, %v1173
      %v1175 = vpop.f32.mrb[0].mxu0
      %1176 = vmatprep.mubr.bf16.mxu0 0
      %1177 = vmatmul.mubr.bf16.gmra.mrb[0].mxu0 %v578
      %v1178 = vpop.f32.mrb[0].mxu0
      %v1179 = vadd.f32 0.0, %v1178
      %v1180 = vpop.f32.mrb[0].mxu0
      %v1181 = vpop.f32.mrb[0].mxu0
      %v1182 = vadd.f32 0.0, %v1181
      %v1183 = vpop.f32.mrb[0].mxu0
      %1184 = vmatprep.mubr.bf16.mxu0 0
      %1185 = vmatmul.mubr.bf16.gmra.mrb[0].mxu0 %v579
      %v1186 = vpop.f32.mrb[0].mxu0
      %v1187 = vadd.f32 0.0, %v1186
      %v1188 = vpop.f32.mrb[0].mxu0
      %v1189 = vpop.f32.mrb[0].mxu0
      %v1190 = vadd.f32 0.0, %v1189
      %v1191 = vpop.f32.mrb[0].mxu0
      %1192 = vmatprep.mubr.bf16.mxu0 0
      %1193 = vmatmul.mubr.bf16.gmra.mrb[0].mxu0 %v580
      %v1194 = vpop.f32.mrb[0].mxu0
      %v1195 = vadd.f32 0.0, %v1194
      %v1196 = vpop.f32.mrb[0].mxu0
      %v1197 = vpop.f32.mrb[0].mxu0
      %v1198 = vadd.f32 0.0, %v1197
      %v1199 = vpop.f32.mrb[0].mxu0
      %1200 = vmatprep.mubr.bf16.mxu0 0
      %1201 = vmatmul.mubr.bf16.gmra.mrb[0].mxu0 %v581
      %v1202 = vpop.f32.mrb[0].mxu0
      %v1203 = vadd.f32 0.0, %v1202
      %v1204 = vpop.f32.mrb[0].mxu0
      %v1205 = vpop.f32.mrb[0].mxu0
      %v1206 = vadd.f32 0.0, %v1205
      %v1207 = vpop.f32.mrb[0].mxu0
      %1208 = vdwg.mxu0
      %v1209 = vadd.f32 %v874, %v1083
      %v1210 = vadd.f32 %v877, %v1086
      %v1211 = vadd.f32 %v882, %v1091
      %v1212 = vadd.f32 %v885, %v1094
      %v1213 = vadd.f32 %v890, %v1099
      %v1214 = vadd.f32 %v893, %v1102
      %v1215 = vadd.f32 %v898, %v1107
      %v1216 = vadd.f32 %v901, %v1110
      %v1217 = vadd.f32 %v906, %v1115
      %v1218 = vadd.f32 %v909, %v1118
      %v1219 = vadd.f32 %v914, %v1123
      %v1220 = vadd.f32 %v917, %v1126
      %v1221 = vadd.f32 %v922, %v1131
      %v1222 = vadd.f32 %v925, %v1134
      %v1223 = vadd.f32 %v930, %v1139
      %v1224 = vadd.f32 %v933, %v1142
      %v1225 = vadd.f32 %v938, %v1147
      %v1226 = vadd.f32 %v941, %v1150
      %v1227 = vadd.f32 %v946, %v1155
      %v1228 = vadd.f32 %v949, %v1158
      %v1229 = vadd.f32 %v954, %v1163
      %v1230 = vadd.f32 %v957, %v1166
      %v1231 = vadd.f32 %v962, %v1171
      %v1232 = vadd.f32 %v965, %v1174
      %v1233 = vadd.f32 %v970, %v1179
      %v1234 = vadd.f32 %v973, %v1182
      %v1235 = vadd.f32 %v978, %v1187
      %v1236 = vadd.f32 %v981, %v1190
      %v1237 = vadd.f32 %v986, %v1195
      %v1238 = vadd.f32 %v989, %v1198
      %v1239 = vadd.f32 %v994, %v1203
      %v1240 = vadd.f32 %v997, %v1206
      %v1241 = vld [vmem:[#allocation2 + $0x1] sm:$0xff]
      %v1242 = vld [vmem:[#allocation2 + $0x9] sm:$0xff]
      %v1243 = vld [vmem:[#allocation2 + $0x19] sm:$0xff]
      %v1244 = vld [vmem:[#allocation2 + $0x21] sm:$0xff]
      %v1245 = vld [vmem:[#allocation2 + $0x31] sm:$0xff]
      %v1246 = vld [vmem:[#allocation2 + $0x39] sm:$0xff]
      %v1247 = vld [vmem:[#allocation2 + $0x49] sm:$0xff]
      %v1248 = vld [vmem:[#allocation2 + $0x51] sm:$0xff]
      %v1249 = vld [vmem:[#allocation2 + $0x61] sm:$0xff]
      %v1250 = vld [vmem:[#allocation2 + $0x69] sm:$0xff]
      %v1251 = vld [vmem:[#allocation2 + $0x79] sm:$0xff]
      %v1252 = vld [vmem:[#allocation2 + $0x81] sm:$0xff]
      %v1253 = vld [vmem:[#allocation2 + $0x91] sm:$0xff]
      %v1254 = vld [vmem:[#allocation2 + $0x99] sm:$0xff]
      %v1255 = vld [vmem:[#allocation2 + $0xa9] sm:$0xff]
      %v1256 = vld [vmem:[#allocation2 + $0xb1] sm:$0xff]
      %v1257 = vld [vmem:[#allocation2 + $0xc1] sm:$0xff]
      %v1258 = vld [vmem:[#allocation2 + $0xc9] sm:$0xff]
      %v1259 = vld [vmem:[#allocation2 + $0xd9] sm:$0xff]
      %v1260 = vld [vmem:[#allocation2 + $0xe1] sm:$0xff]
      %v1261 = vld [vmem:[#allocation2 + $0xf1] sm:$0xff]
      %v1262 = vld [vmem:[#allocation2 + $0xf9] sm:$0xff]
      %v1263 = vld [vmem:[#allocation2 + $0x109] sm:$0xff]
      %v1264 = vld [vmem:[#allocation2 + $0x111] sm:$0xff]
      %v1265 = vld [vmem:[#allocation2 + $0x121] sm:$0xff]
      %v1266 = vld [vmem:[#allocation2 + $0x129] sm:$0xff]
      %v1267 = vld [vmem:[#allocation2 + $0x139] sm:$0xff]
      %v1268 = vld [vmem:[#allocation2 + $0x141] sm:$0xff]
      %v1269 = vld [vmem:[#allocation2 + $0x151] sm:$0xff]
      %v1270 = vld [vmem:[#allocation2 + $0x159] sm:$0xff]
      %v1271 = vld [vmem:[#allocation2 + $0x169] sm:$0xff]
      %v1272 = vld [vmem:[#allocation2 + $0x171] sm:$0xff]
      %v1273 = vld [vmem:[#allocation2 + $0x181] sm:$0xff]
      %v1274 = vld [vmem:[#allocation2 + $0x189] sm:$0xff]
      %v1275 = vld [vmem:[#allocation2 + $0x199] sm:$0xff]
      %v1276 = vld [vmem:[#allocation2 + $0x1a1] sm:$0xff]
      %v1277 = vpack.c.bf16 %v1242, %v1241
      %v1278 = vpack.c.bf16 %v1244, %v1243
      %v1279 = vpack.c.bf16 %v1246, %v1245
      %v1280 = vpack.c.bf16 %v1248, %v1247
      %v1281 = vpack.c.bf16 %v1250, %v1249
      %v1282 = vpack.c.bf16 %v1252, %v1251
      %v1283 = vpack.c.bf16 %v1254, %v1253
      %v1284 = vpack.c.bf16 %v1256, %v1255
      %v1285 = vpack.c.bf16 %v1258, %v1257
      %v1286 = vpack.c.bf16 %v1260, %v1259
      %v1287 = vpack.c.bf16 %v1262, %v1261
      %v1288 = vpack.c.bf16 %v1264, %v1263
      %v1289 = vpack.c.bf16 %v1266, %v1265
      %v1290 = vpack.c.bf16 %v1268, %v1267
      %v1291 = vpack.c.bf16 %v1270, %v1269
      %v1292 = vpack.c.bf16 %v1272, %v1271
      %v1293 = vpack.c.bf16 %v1274, %v1273
      %v1294 = vpack.c.bf16 %v1276, %v1275
      %v1311 = vunpack.c.l.b16 %v400
      %v1312 = vunpack.c.l.b16 %v401
      %v1313 = vunpack.c.l.b16 %v402
      %v1314 = vunpack.c.l.b16 %v403
      %v1315 = vunpack.c.l.b16 %v404
      %v1316 = vunpack.c.l.b16 %v405
      %v1317 = vunpack.c.l.b16 %v406
      %v1318 = vunpack.c.l.b16 %v407
      %v1319 = vunpack.c.l.b16 %v408
      %v1320 = vunpack.c.l.b16 %v409
      %v1321 = vunpack.c.l.b16 %v410
      %v1322 = vunpack.c.l.b16 %v411
      %v1323 = vunpack.c.l.b16 %v412
      %v1324 = vunpack.c.l.b16 %v413
      %v1325 = vunpack.c.l.b16 %v414
      %v1326 = vunpack.c.l.b16 %v415
      %v1327 = vpack.c.b16 %v1312, %v1311
      %v1328 = vpack.c.b16 %v1314, %v1313
      %v1329 = vpack.c.b16 %v1316, %v1315
      %v1330 = vpack.c.b16 %v1318, %v1317
      %v1331 = vpack.c.b16 %v1320, %v1319
      %v1332 = vpack.c.b16 %v1322, %v1321
      %v1333 = vpack.c.b16 %v1324, %v1323
      %v1334 = vpack.c.b16 %v1326, %v1325
      %1343 = vmatprep.subr.bf16.mxu0 0
      %1344 = vmatpush1.bf16.msra.mxu0 %v1327
      %1345 = vmatprep.subr.bf16.mxu0 0
      %1346 = vmatpush1.bf16.msra.mxu0 %v1328
      %1347 = vmatprep.subr.bf16.mxu0 0
      %1348 = vmatpush1.bf16.msra.mxu0 %v1329
      %1349 = vmatprep.subr.bf16.mxu0 0
      %1350 = vmatpush1.bf16.msra.mxu0 %v1330
      %1351 = vmatprep.subr.bf16.mxu0 0
      %1352 = vmatpush1.bf16.msra.mxu0 %v1331
      %1353 = vmatprep.subr.bf16.mxu0 0
      %1354 = vmatpush1.bf16.msra.mxu0 %v1332
      %1355 = vmatprep.subr.bf16.mxu0 0
      %1356 = vmatpush1.bf16.msra.mxu0 %v1333
      %1357 = vmatprep.subr.bf16.mxu0 0
      %1358 = vmatpush1.bf16.msra.mxu0 %v1334
      %1359 = vmatprep.subr.bf16.mxu0 0
      %1360 = vmatpush1.bf16.msra.mxu0 0
      %1361 = vmatprep.subr.bf16.mxu0 0
      %1362 = vmatpush1.bf16.msra.mxu0 0
      %1363 = vmatprep.subr.bf16.mxu0 0
      %1364 = vmatpush1.bf16.msra.mxu0 0
      %1365 = vmatprep.subr.bf16.mxu0 0
      %1366 = vmatpush1.bf16.msra.mxu0 0
      %1367 = vmatprep.subr.bf16.mxu0 0
      %1368 = vmatpush1.bf16.msra.mxu0 0
      %1369 = vmatprep.subr.bf16.mxu0 0
      %1370 = vmatpush1.bf16.msra.mxu0 0
      %1371 = vmatprep.subr.bf16.mxu0 0
      %1372 = vmatpush1.bf16.msra.mxu0 0
      %1373 = vmatprep.subr.bf16.mxu0 0
      %1374 = vmatpush1.bf16.msra.mxu0 0
      %1375 = vmatprep.mubr.bf16.mxu0 0
      %1376 = vmatmul.mubr.bf16.gmra.mrb[0].mxu0 %v1277
      %v1377 = vpop.f32.mrb[0].mxu0
      %v1378 = vadd.f32 0.0, %v1377
      %v1379 = vpop.f32.mrb[0].mxu0
      %v1380 = vpop.f32.mrb[0].mxu0
      %v1381 = vadd.f32 0.0, %v1380
      %v1382 = vpop.f32.mrb[0].mxu0
      %1383 = vmatprep.mubr.bf16.mxu0 0
      %1384 = vmatmul.mubr.bf16.gmra.mrb[0].mxu0 %v1278
      %v1385 = vpop.f32.mrb[0].mxu0
      %v1386 = vadd.f32 0.0, %v1385
      %v1387 = vpop.f32.mrb[0].mxu0
      %v1388 = vpop.f32.mrb[0].mxu0
      %v1389 = vadd.f32 0.0, %v1388
      %v1390 = vpop.f32.mrb[0].mxu0
      %1391 = vmatprep.mubr.bf16.mxu0 0
      %1392 = vmatmul.mubr.bf16.gmra.mrb[0].mxu0 %v1279
      %v1393 = vpop.f32.mrb[0].mxu0
      %v1394 = vadd.f32 0.0, %v1393
      %v1395 = vpop.f32.mrb[0].mxu0
      %v1396 = vpop.f32.mrb[0].mxu0
      %v1397 = vadd.f32 0.0, %v1396
      %v1398 = vpop.f32.mrb[0].mxu0
      %1399 = vmatprep.mubr.bf16.mxu0 0
      %1400 = vmatmul.mubr.bf16.gmra.mrb[0].mxu0 %v1280
      %v1401 = vpop.f32.mrb[0].mxu0
      %v1402 = vadd.f32 0.0, %v1401
      %v1403 = vpop.f32.mrb[0].mxu0
      %v1404 = vpop.f32.mrb[0].mxu0
      %v1405 = vadd.f32 0.0, %v1404
      %v1406 = vpop.f32.mrb[0].mxu0
      %1407 = vmatprep.mubr.bf16.mxu0 0
      %1408 = vmatmul.mubr.bf16.gmra.mrb[0].mxu0 %v1281
      %v1409 = vpop.f32.mrb[0].mxu0
      %v1410 = vadd.f32 0.0, %v1409
      %v1411 = vpop.f32.mrb[0].mxu0
      %v1412 = vpop.f32.mrb[0].mxu0
      %v1413 = vadd.f32 0.0, %v1412
      %v1414 = vpop.f32.mrb[0].mxu0
      %1415 = vmatprep.mubr.bf16.mxu0 0
      %1416 = vmatmul.mubr.bf16.gmra.mrb[0].mxu0 %v1282
      %v1417 = vpop.f32.mrb[0].mxu0
      %v1418 = vadd.f32 0.0, %v1417
      %v1419 = vpop.f32.mrb[0].mxu0
      %v1420 = vpop.f32.mrb[0].mxu0
      %v1421 = vadd.f32 0.0, %v1420
      %v1422 = vpop.f32.mrb[0].mxu0
      %1423 = vmatprep.mubr.bf16.mxu0 0
      %1424 = vmatmul.mubr.bf16.gmra.mrb[0].mxu0 %v1283
      %v1425 = vpop.f32.mrb[0].mxu0
      %v1426 = vadd.f32 0.0, %v1425
      %v1427 = vpop.f32.mrb[0].mxu0
      %v1428 = vpop.f32.mrb[0].mxu0
      %v1429 = vadd.f32 0.0, %v1428
      %v1430 = vpop.f32.mrb[0].mxu0
      %1431 = vmatprep.mubr.bf16.mxu0 0
      %1432 = vmatmul.mubr.bf16.gmra.mrb[0].mxu0 %v1284
      %v1433 = vpop.f32.mrb[0].mxu0
      %v1434 = vadd.f32 0.0, %v1433
      %v1435 = vpop.f32.mrb[0].mxu0
      %v1436 = vpop.f32.mrb[0].mxu0
      %v1437 = vadd.f32 0.0, %v1436
      %v1438 = vpop.f32.mrb[0].mxu0
      %1439 = vmatprep.mubr.bf16.mxu0 0
      %1440 = vmatmul.mubr.bf16.gmra.mrb[0].mxu0 %v1285
      %v1441 = vpop.f32.mrb[0].mxu0
      %v1442 = vadd.f32 0.0, %v1441
      %v1443 = vpop.f32.mrb[0].mxu0
      %v1444 = vpop.f32.mrb[0].mxu0
      %v1445 = vadd.f32 0.0, %v1444
      %v1446 = vpop.f32.mrb[0].mxu0
      %1447 = vmatprep.mubr.bf16.mxu0 0
      %1448 = vmatmul.mubr.bf16.gmra.mrb[0].mxu0 %v1286
      %v1449 = vpop.f32.mrb[0].mxu0
      %v1450 = vadd.f32 0.0, %v1449
      %v1451 = vpop.f32.mrb[0].mxu0
      %v1452 = vpop.f32.mrb[0].mxu0
      %v1453 = vadd.f32 0.0, %v1452
      %v1454 = vpop.f32.mrb[0].mxu0
      %1455 = vmatprep.mubr.bf16.mxu0 0
      %1456 = vmatmul.mubr.bf16.gmra.mrb[0].mxu0 %v1287
      %v1457 = vpop.f32.mrb[0].mxu0
      %v1458 = vadd.f32 0.0, %v1457
      %v1459 = vpop.f32.mrb[0].mxu0
      %v1460 = vpop.f32.mrb[0].mxu0
      %v1461 = vadd.f32 0.0, %v1460
      %v1462 = vpop.f32.mrb[0].mxu0
      %1463 = vmatprep.mubr.bf16.mxu0 0
      %1464 = vmatmul.mubr.bf16.gmra.mrb[0].mxu0 %v1288
      %v1465 = vpop.f32.mrb[0].mxu0
      %v1466 = vadd.f32 0.0, %v1465
      %v1467 = vpop.f32.mrb[0].mxu0
      %v1468 = vpop.f32.mrb[0].mxu0
      %v1469 = vadd.f32 0.0, %v1468
      %v1470 = vpop.f32.mrb[0].mxu0
      %1471 = vmatprep.mubr.bf16.mxu0 0
      %1472 = vmatmul.mubr.bf16.gmra.mrb[0].mxu0 %v1289
      %v1473 = vpop.f32.mrb[0].mxu0
      %v1474 = vadd.f32 0.0, %v1473
      %v1475 = vpop.f32.mrb[0].mxu0
      %v1476 = vpop.f32.mrb[0].mxu0
      %v1477 = vadd.f32 0.0, %v1476
      %v1478 = vpop.f32.mrb[0].mxu0
      %1479 = vmatprep.mubr.bf16.mxu0 0
      %1480 = vmatmul.mubr.bf16.gmra.mrb[0].mxu0 %v1290
      %v1481 = vpop.f32.mrb[0].mxu0
      %v1482 = vadd.f32 0.0, %v1481
      %v1483 = vpop.f32.mrb[0].mxu0
      %v1484 = vpop.f32.mrb[0].mxu0
      %v1485 = vadd.f32 0.0, %v1484
      %v1486 = vpop.f32.mrb[0].mxu0
      %1487 = vmatprep.mubr.bf16.mxu0 0
      %1488 = vmatmul.mubr.bf16.gmra.mrb[0].mxu0 %v1291
      %v1489 = vpop.f32.mrb[0].mxu0
      %v1490 = vadd.f32 0.0, %v1489
      %v1491 = vpop.f32.mrb[0].mxu0
      %v1492 = vpop.f32.mrb[0].mxu0
      %v1493 = vadd.f32 0.0, %v1492
      %v1494 = vpop.f32.mrb[0].mxu0
      %1495 = vmatprep.mubr.bf16.mxu0 0
      %1496 = vmatmul.mubr.bf16.gmra.mrb[0].mxu0 %v1292
      %v1497 = vpop.f32.mrb[0].mxu0
      %v1498 = vadd.f32 0.0, %v1497
      %v1499 = vpop.f32.mrb[0].mxu0
      %v1500 = vpop.f32.mrb[0].mxu0
      %v1501 = vadd.f32 0.0, %v1500
      %v1502 = vpop.f32.mrb[0].mxu0
      %1503 = vdwg.mxu0
      %v1504 = vadd.f32 %v1209, %v1378
      %v1505 = vadd.f32 %v1210, %v1381
      %v1506 = vadd.f32 %v1211, %v1386
      %v1507 = vadd.f32 %v1212, %v1389
      %v1508 = vadd.f32 %v1213, %v1394
      %v1509 = vadd.f32 %v1214, %v1397
      %v1510 = vadd.f32 %v1215, %v1402
      %v1511 = vadd.f32 %v1216, %v1405
      %v1512 = vadd.f32 %v1217, %v1410
      %v1513 = vadd.f32 %v1218, %v1413
      %v1514 = vadd.f32 %v1219, %v1418
      %v1515 = vadd.f32 %v1220, %v1421
      %v1516 = vadd.f32 %v1221, %v1426
      %v1517 = vadd.f32 %v1222, %v1429
      %v1518 = vadd.f32 %v1223, %v1434
      %v1519 = vadd.f32 %v1224, %v1437
      %v1520 = vadd.f32 %v1225, %v1442
      %v1521 = vadd.f32 %v1226, %v1445
      %v1522 = vadd.f32 %v1227, %v1450
      %v1523 = vadd.f32 %v1228, %v1453
      %v1524 = vadd.f32 %v1229, %v1458
      %v1525 = vadd.f32 %v1230, %v1461
      %v1526 = vadd.f32 %v1231, %v1466
      %v1527 = vadd.f32 %v1232, %v1469
      %v1528 = vadd.f32 %v1233, %v1474
      %v1529 = vadd.f32 %v1234, %v1477
      %v1530 = vadd.f32 %v1235, %v1482
      %v1531 = vadd.f32 %v1236, %v1485
      %v1532 = vadd.f32 %v1237, %v1490
      %v1533 = vadd.f32 %v1238, %v1493
      %v1534 = vadd.f32 %v1239, %v1498
      %v1535 = vadd.f32 %v1240, %v1501
      %v1552 = vunpack.c.l.b16 %v448
      %v1553 = vunpack.c.l.b16 %v449
      %v1554 = vunpack.c.l.b16 %v450
      %v1555 = vunpack.c.l.b16 %v451
      %v1556 = vunpack.c.l.b16 %v452
      %v1557 = vunpack.c.l.b16 %v453
      %v1558 = vunpack.c.l.b16 %v454
      %v1559 = vunpack.c.l.b16 %v455
      %v1560 = vunpack.c.l.b16 %v456
      %v1561 = vunpack.c.l.b16 %v457
      %v1562 = vunpack.c.l.b16 %v458
      %v1563 = vunpack.c.l.b16 %v459
      %v1564 = vunpack.c.l.b16 %v460
      %v1565 = vunpack.c.l.b16 %v461
      %v1566 = vunpack.c.l.b16 %v462
      %v1567 = vunpack.c.l.b16 %v463
      %v1568 = vpack.c.b16 %v1553, %v1552
      %v1569 = vpack.c.b16 %v1555, %v1554
      %v1570 = vpack.c.b16 %v1557, %v1556
      %v1571 = vpack.c.b16 %v1559, %v1558
      %v1572 = vpack.c.b16 %v1561, %v1560
      %v1573 = vpack.c.b16 %v1563, %v1562
      %v1574 = vpack.c.b16 %v1565, %v1564
      %v1575 = vpack.c.b16 %v1567, %v1566
      %1584 = vmatprep.subr.bf16.mxu0 0
      %1585 = vmatpush1.bf16.msra.mxu0 %v1568
      %1586 = vmatprep.subr.bf16.mxu0 0
      %1587 = vmatpush1.bf16.msra.mxu0 %v1569
      %1588 = vmatprep.subr.bf16.mxu0 0
      %1589 = vmatpush1.bf16.msra.mxu0 %v1570
      %1590 = vmatprep.subr.bf16.mxu0 0
      %1591 = vmatpush1.bf16.msra.mxu0 %v1571
      %1592 = vmatprep.subr.bf16.mxu0 0
      %1593 = vmatpush1.bf16.msra.mxu0 %v1572
      %1594 = vmatprep.subr.bf16.mxu0 0
      %1595 = vmatpush1.bf16.msra.mxu0 %v1573
      %1596 = vmatprep.subr.bf16.mxu0 0
      %1597 = vmatpush1.bf16.msra.mxu0 %v1574
      %1598 = vmatprep.subr.bf16.mxu0 0
      %1599 = vmatpush1.bf16.msra.mxu0 %v1575
      %1600 = vmatprep.subr.bf16.mxu0 0
      %1601 = vmatpush1.bf16.msra.mxu0 0
      %1602 = vmatprep.subr.bf16.mxu0 0
      %1603 = vmatpush1.bf16.msra.mxu0 0
      %1604 = vmatprep.subr.bf16.mxu0 0
      %1605 = vmatpush1.bf16.msra.mxu0 0
      %1606 = vmatprep.subr.bf16.mxu0 0
      %1607 = vmatpush1.bf16.msra.mxu0 0
      %1608 = vmatprep.subr.bf16.mxu0 0
      %1609 = vmatpush1.bf16.msra.mxu0 0
      %1610 = vmatprep.subr.bf16.mxu0 0
      %1611 = vmatpush1.bf16.msra.mxu0 0
      %1612 = vmatprep.subr.bf16.mxu0 0
      %1613 = vmatpush1.bf16.msra.mxu0 0
      %1614 = vmatprep.subr.bf16.mxu0 0
      %1615 = vmatpush1.bf16.msra.mxu0 0
      %1616 = vmatprep.mubr.bf16.mxu0 0
      %1617 = vmatmul.mubr.bf16.gmra.mrb[0].mxu0 %v1278
      %v1618 = vpop.f32.mrb[0].mxu0
      %v1619 = vadd.f32 0.0, %v1618
      %v1620 = vpop.f32.mrb[0].mxu0
      %v1621 = vpop.f32.mrb[0].mxu0
      %v1622 = vadd.f32 0.0, %v1621
      %v1623 = vpop.f32.mrb[0].mxu0
      %1624 = vmatprep.mubr.bf16.mxu0 0
      %1625 = vmatmul.mubr.bf16.gmra.mrb[0].mxu0 %v1279
      %v1626 = vpop.f32.mrb[0].mxu0
      %v1627 = vadd.f32 0.0, %v1626
      %v1628 = vpop.f32.mrb[0].mxu0
      %v1629 = vpop.f32.mrb[0].mxu0
      %v1630 = vadd.f32 0.0, %v1629
      %v1631 = vpop.f32.mrb[0].mxu0
      %1632 = vmatprep.mubr.bf16.mxu0 0
      %1633 = vmatmul.mubr.bf16.gmra.mrb[0].mxu0 %v1280
      %v1634 = vpop.f32.mrb[0].mxu0
      %v1635 = vadd.f32 0.0, %v1634
      %v1636 = vpop.f32.mrb[0].mxu0
      %v1637 = vpop.f32.mrb[0].mxu0
      %v1638 = vadd.f32 0.0, %v1637
      %v1639 = vpop.f32.mrb[0].mxu0
      %1640 = vmatprep.mubr.bf16.mxu0 0
      %1641 = vmatmul.mubr.bf16.gmra.mrb[0].mxu0 %v1281
      %v1642 = vpop.f32.mrb[0].mxu0
      %v1643 = vadd.f32 0.0, %v1642
      %v1644 = vpop.f32.mrb[0].mxu0
      %v1645 = vpop.f32.mrb[0].mxu0
      %v1646 = vadd.f32 0.0, %v1645
      %v1647 = vpop.f32.mrb[0].mxu0
      %1648 = vmatprep.mubr.bf16.mxu0 0
      %1649 = vmatmul.mubr.bf16.gmra.mrb[0].mxu0 %v1282
      %v1650 = vpop.f32.mrb[0].mxu0
      %v1651 = vadd.f32 0.0, %v1650
      %v1652 = vpop.f32.mrb[0].mxu0
      %v1653 = vpop.f32.mrb[0].mxu0
      %v1654 = vadd.f32 0.0, %v1653
      %v1655 = vpop.f32.mrb[0].mxu0
      %1656 = vmatprep.mubr.bf16.mxu0 0
      %1657 = vmatmul.mubr.bf16.gmra.mrb[0].mxu0 %v1283
      %v1658 = vpop.f32.mrb[0].mxu0
      %v1659 = vadd.f32 0.0, %v1658
      %v1660 = vpop.f32.mrb[0].mxu0
      %v1661 = vpop.f32.mrb[0].mxu0
      %v1662 = vadd.f32 0.0, %v1661
      %v1663 = vpop.f32.mrb[0].mxu0
      %1664 = vmatprep.mubr.bf16.mxu0 0
      %1665 = vmatmul.mubr.bf16.gmra.mrb[0].mxu0 %v1284
      %v1666 = vpop.f32.mrb[0].mxu0
      %v1667 = vadd.f32 0.0, %v1666
      %v1668 = vpop.f32.mrb[0].mxu0
      %v1669 = vpop.f32.mrb[0].mxu0
      %v1670 = vadd.f32 0.0, %v1669
      %v1671 = vpop.f32.mrb[0].mxu0
      %1672 = vmatprep.mubr.bf16.mxu0 0
      %1673 = vmatmul.mubr.bf16.gmra.mrb[0].mxu0 %v1285
      %v1674 = vpop.f32.mrb[0].mxu0
      %v1675 = vadd.f32 0.0, %v1674
      %v1676 = vpop.f32.mrb[0].mxu0
      %v1677 = vpop.f32.mrb[0].mxu0
      %v1678 = vadd.f32 0.0, %v1677
      %v1679 = vpop.f32.mrb[0].mxu0
      %1680 = vmatprep.mubr.bf16.mxu0 0
      %1681 = vmatmul.mubr.bf16.gmra.mrb[0].mxu0 %v1286
      %v1682 = vpop.f32.mrb[0].mxu0
      %v1683 = vadd.f32 0.0, %v1682
      %v1684 = vpop.f32.mrb[0].mxu0
      %v1685 = vpop.f32.mrb[0].mxu0
      %v1686 = vadd.f32 0.0, %v1685
      %v1687 = vpop.f32.mrb[0].mxu0
      %1688 = vmatprep.mubr.bf16.mxu0 0
      %1689 = vmatmul.mubr.bf16.gmra.mrb[0].mxu0 %v1287
      %v1690 = vpop.f32.mrb[0].mxu0
      %v1691 = vadd.f32 0.0, %v1690
      %v1692 = vpop.f32.mrb[0].mxu0
      %v1693 = vpop.f32.mrb[0].mxu0
      %v1694 = vadd.f32 0.0, %v1693
      %v1695 = vpop.f32.mrb[0].mxu0
      %1696 = vmatprep.mubr.bf16.mxu0 0
      %1697 = vmatmul.mubr.bf16.gmra.mrb[0].mxu0 %v1288
      %v1698 = vpop.f32.mrb[0].mxu0
      %v1699 = vadd.f32 0.0, %v1698
      %v1700 = vpop.f32.mrb[0].mxu0
      %v1701 = vpop.f32.mrb[0].mxu0
      %v1702 = vadd.f32 0.0, %v1701
      %v1703 = vpop.f32.mrb[0].mxu0
      %1704 = vmatprep.mubr.bf16.mxu0 0
      %1705 = vmatmul.mubr.bf16.gmra.mrb[0].mxu0 %v1289
      %v1706 = vpop.f32.mrb[0].mxu0
      %v1707 = vadd.f32 0.0, %v1706
      %v1708 = vpop.f32.mrb[0].mxu0
      %v1709 = vpop.f32.mrb[0].mxu0
      %v1710 = vadd.f32 0.0, %v1709
      %v1711 = vpop.f32.mrb[0].mxu0
      %1712 = vmatprep.mubr.bf16.mxu0 0
      %1713 = vmatmul.mubr.bf16.gmra.mrb[0].mxu0 %v1290
      %v1714 = vpop.f32.mrb[0].mxu0
      %v1715 = vadd.f32 0.0, %v1714
      %v1716 = vpop.f32.mrb[0].mxu0
      %v1717 = vpop.f32.mrb[0].mxu0
      %v1718 = vadd.f32 0.0, %v1717
      %v1719 = vpop.f32.mrb[0].mxu0
      %1720 = vmatprep.mubr.bf16.mxu0 0
      %1721 = vmatmul.mubr.bf16.gmra.mrb[0].mxu0 %v1291
      %v1722 = vpop.f32.mrb[0].mxu0
      %v1723 = vadd.f32 0.0, %v1722
      %v1724 = vpop.f32.mrb[0].mxu0
      %v1725 = vpop.f32.mrb[0].mxu0
      %v1726 = vadd.f32 0.0, %v1725
      %v1727 = vpop.f32.mrb[0].mxu0
      %1728 = vmatprep.mubr.bf16.mxu0 0
      %1729 = vmatmul.mubr.bf16.gmra.mrb[0].mxu0 %v1292
      %v1730 = vpop.f32.mrb[0].mxu0
      %v1731 = vadd.f32 0.0, %v1730
      %v1732 = vpop.f32.mrb[0].mxu0
      %v1733 = vpop.f32.mrb[0].mxu0
      %v1734 = vadd.f32 0.0, %v1733
      %v1735 = vpop.f32.mrb[0].mxu0
      %1736 = vmatprep.mubr.bf16.mxu0 0
      %1737 = vmatmul.mubr.bf16.gmra.mrb[0].mxu0 %v1293
      %v1738 = vpop.f32.mrb[0].mxu0
      %v1739 = vadd.f32 0.0, %v1738
      %v1740 = vpop.f32.mrb[0].mxu0
      %v1741 = vpop.f32.mrb[0].mxu0
      %v1742 = vadd.f32 0.0, %v1741
      %v1743 = vpop.f32.mrb[0].mxu0
      %1744 = vdwg.mxu0
      %v1745 = vadd.f32 %v1504, %v1619
      %v1746 = vadd.f32 %v1505, %v1622
      %v1747 = vadd.f32 %v1506, %v1627
      %v1748 = vadd.f32 %v1507, %v1630
      %v1749 = vadd.f32 %v1508, %v1635
      %v1750 = vadd.f32 %v1509, %v1638
      %v1751 = vadd.f32 %v1510, %v1643
      %v1752 = vadd.f32 %v1511, %v1646
      %v1753 = vadd.f32 %v1512, %v1651
      %v1754 = vadd.f32 %v1513, %v1654
      %v1755 = vadd.f32 %v1514, %v1659
      %v1756 = vadd.f32 %v1515, %v1662
      %v1757 = vadd.f32 %v1516, %v1667
      %v1758 = vadd.f32 %v1517, %v1670
      %v1759 = vadd.f32 %v1518, %v1675
      %v1760 = vadd.f32 %v1519, %v1678
      %v1761 = vadd.f32 %v1520, %v1683
      %v1762 = vadd.f32 %v1521, %v1686
      %v1763 = vadd.f32 %v1522, %v1691
      %v1764 = vadd.f32 %v1523, %v1694
      %v1765 = vadd.f32 %v1524, %v1699
      %v1766 = vadd.f32 %v1525, %v1702
      %v1767 = vadd.f32 %v1526, %v1707
      %v1768 = vadd.f32 %v1527, %v1710
      %v1769 = vadd.f32 %v1528, %v1715
      %v1770 = vadd.f32 %v1529, %v1718
      %v1771 = vadd.f32 %v1530, %v1723
      %v1772 = vadd.f32 %v1531, %v1726
      %v1773 = vadd.f32 %v1532, %v1731
      %v1774 = vadd.f32 %v1533, %v1734
      %v1775 = vadd.f32 %v1534, %v1739
      %v1776 = vadd.f32 %v1535, %v1742
      %v1793 = vunpack.c.l.b16 %v496
      %v1794 = vunpack.c.l.b16 %v497
      %v1795 = vunpack.c.l.b16 %v498
      %v1796 = vunpack.c.l.b16 %v499
      %v1797 = vunpack.c.l.b16 %v500
      %v1798 = vunpack.c.l.b16 %v501
      %v1799 = vunpack.c.l.b16 %v502
      %v1800 = vunpack.c.l.b16 %v503
      %v1801 = vunpack.c.l.b16 %v504
      %v1802 = vunpack.c.l.b16 %v505
      %v1803 = vunpack.c.l.b16 %v506
      %v1804 = vunpack.c.l.b16 %v507
      %v1805 = vunpack.c.l.b16 %v508
      %v1806 = vunpack.c.l.b16 %v509
      %v1807 = vunpack.c.l.b16 %v510
      %v1808 = vunpack.c.l.b16 %v511
      %v1809 = vpack.c.b16 %v1794, %v1793
      %v1810 = vpack.c.b16 %v1796, %v1795
      %v1811 = vpack.c.b16 %v1798, %v1797
      %v1812 = vpack.c.b16 %v1800, %v1799
      %v1813 = vpack.c.b16 %v1802, %v1801
      %v1814 = vpack.c.b16 %v1804, %v1803
      %v1815 = vpack.c.b16 %v1806, %v1805
      %v1816 = vpack.c.b16 %v1808, %v1807
      %1825 = vmatprep.subr.bf16.mxu0 0
      %1826 = vmatpush1.bf16.msra.mxu0 %v1809
      %1827 = vmatprep.subr.bf16.mxu0 0
      %1828 = vmatpush1.bf16.msra.mxu0 %v1810
      %1829 = vmatprep.subr.bf16.mxu0 0
      %1830 = vmatpush1.bf16.msra.mxu0 %v1811
      %1831 = vmatprep.subr.bf16.mxu0 0
      %1832 = vmatpush1.bf16.msra.mxu0 %v1812
      %1833 = vmatprep.subr.bf16.mxu0 0
      %1834 = vmatpush1.bf16.msra.mxu0 %v1813
      %1835 = vmatprep.subr.bf16.mxu0 0
      %1836 = vmatpush1.bf16.msra.mxu0 %v1814
      %1837 = vmatprep.subr.bf16.mxu0 0
      %1838 = vmatpush1.bf16.msra.mxu0 %v1815
      %1839 = vmatprep.subr.bf16.mxu0 0
      %1840 = vmatpush1.bf16.msra.mxu0 %v1816
      %1841 = vmatprep.subr.bf16.mxu0 0
      %1842 = vmatpush1.bf16.msra.mxu0 0
      %1843 = vmatprep.subr.bf16.mxu0 0
      %1844 = vmatpush1.bf16.msra.mxu0 0
      %1845 = vmatprep.subr.bf16.mxu0 0
      %1846 = vmatpush1.bf16.msra.mxu0 0
      %1847 = vmatprep.subr.bf16.mxu0 0
      %1848 = vmatpush1.bf16.msra.mxu0 0
      %1849 = vmatprep.subr.bf16.mxu0 0
      %1850 = vmatpush1.bf16.msra.mxu0 0
      %1851 = vmatprep.subr.bf16.mxu0 0
      %1852 = vmatpush1.bf16.msra.mxu0 0
      %1853 = vmatprep.subr.bf16.mxu0 0
      %1854 = vmatpush1.bf16.msra.mxu0 0
      %1855 = vmatprep.subr.bf16.mxu0 0
      %1856 = vmatpush1.bf16.msra.mxu0 0
      %1857 = vmatprep.mubr.bf16.mxu0 0
      %1858 = vmatmul.mubr.bf16.gmra.mrb[0].mxu0 %v1279
      %v1859 = vpop.f32.mrb[0].mxu0
      %v1860 = vadd.f32 0.0, %v1859
      %v1861 = vpop.f32.mrb[0].mxu0
      %v1862 = vpop.f32.mrb[0].mxu0
      %v1863 = vadd.f32 0.0, %v1862
      %v1864 = vpop.f32.mrb[0].mxu0
      %1865 = vmatprep.mubr.bf16.mxu0 0
      %1866 = vmatmul.mubr.bf16.gmra.mrb[0].mxu0 %v1280
      %v1867 = vpop.f32.mrb[0].mxu0
      %v1868 = vadd.f32 0.0, %v1867
      %v1869 = vpop.f32.mrb[0].mxu0
      %v1870 = vpop.f32.mrb[0].mxu0
      %v1871 = vadd.f32 0.0, %v1870
      %v1872 = vpop.f32.mrb[0].mxu0
      %1873 = vmatprep.mubr.bf16.mxu0 0
      %1874 = vmatmul.mubr.bf16.gmra.mrb[0].mxu0 %v1281
      %v1875 = vpop.f32.mrb[0].mxu0
      %v1876 = vadd.f32 0.0, %v1875
      %v1877 = vpop.f32.mrb[0].mxu0
      %v1878 = vpop.f32.mrb[0].mxu0
      %v1879 = vadd.f32 0.0, %v1878
      %v1880 = vpop.f32.mrb[0].mxu0
      %1881 = vmatprep.mubr.bf16.mxu0 0
      %1882 = vmatmul.mubr.bf16.gmra.mrb[0].mxu0 %v1282
      %v1883 = vpop.f32.mrb[0].mxu0
      %v1884 = vadd.f32 0.0, %v1883
      %v1885 = vpop.f32.mrb[0].mxu0
      %v1886 = vpop.f32.mrb[0].mxu0
      %v1887 = vadd.f32 0.0, %v1886
      %v1888 = vpop.f32.mrb[0].mxu0
      %1889 = vmatprep.mubr.bf16.mxu0 0
      %1890 = vmatmul.mubr.bf16.gmra.mrb[0].mxu0 %v1283
      %v1891 = vpop.f32.mrb[0].mxu0
      %v1892 = vadd.f32 0.0, %v1891
      %v1893 = vpop.f32.mrb[0].mxu0
      %v1894 = vpop.f32.mrb[0].mxu0
      %v1895 = vadd.f32 0.0, %v1894
      %v1896 = vpop.f32.mrb[0].mxu0
      %1897 = vmatprep.mubr.bf16.mxu0 0
      %1898 = vmatmul.mubr.bf16.gmra.mrb[0].mxu0 %v1284
      %v1899 = vpop.f32.mrb[0].mxu0
      %v1900 = vadd.f32 0.0, %v1899
      %v1901 = vpop.f32.mrb[0].mxu0
      %v1902 = vpop.f32.mrb[0].mxu0
      %v1903 = vadd.f32 0.0, %v1902
      %v1904 = vpop.f32.mrb[0].mxu0
      %1905 = vmatprep.mubr.bf16.mxu0 0
      %1906 = vmatmul.mubr.bf16.gmra.mrb[0].mxu0 %v1285
      %v1907 = vpop.f32.mrb[0].mxu0
      %v1908 = vadd.f32 0.0, %v1907
      %v1909 = vpop.f32.mrb[0].mxu0
      %v1910 = vpop.f32.mrb[0].mxu0
      %v1911 = vadd.f32 0.0, %v1910
      %v1912 = vpop.f32.mrb[0].mxu0
      %1913 = vmatprep.mubr.bf16.mxu0 0
      %1914 = vmatmul.mubr.bf16.gmra.mrb[0].mxu0 %v1286
      %v1915 = vpop.f32.mrb[0].mxu0
      %v1916 = vadd.f32 0.0, %v1915
      %v1917 = vpop.f32.mrb[0].mxu0
      %v1918 = vpop.f32.mrb[0].mxu0
      %v1919 = vadd.f32 0.0, %v1918
      %v1920 = vpop.f32.mrb[0].mxu0
      %1921 = vmatprep.mubr.bf16.mxu0 0
      %1922 = vmatmul.mubr.bf16.gmra.mrb[0].mxu0 %v1287
      %v1923 = vpop.f32.mrb[0].mxu0
      %v1924 = vadd.f32 0.0, %v1923
      %v1925 = vpop.f32.mrb[0].mxu0
      %v1926 = vpop.f32.mrb[0].mxu0
      %v1927 = vadd.f32 0.0, %v1926
      %v1928 = vpop.f32.mrb[0].mxu0
      %1929 = vmatprep.mubr.bf16.mxu0 0
      %1930 = vmatmul.mubr.bf16.gmra.mrb[0].mxu0 %v1288
      %v1931 = vpop.f32.mrb[0].mxu0
      %v1932 = vadd.f32 0.0, %v1931
      %v1933 = vpop.f32.mrb[0].mxu0
      %v1934 = vpop.f32.mrb[0].mxu0
      %v1935 = vadd.f32 0.0, %v1934
      %v1936 = vpop.f32.mrb[0].mxu0
      %1937 = vmatprep.mubr.bf16.mxu0 0
      %1938 = vmatmul.mubr.bf16.gmra.mrb[0].mxu0 %v1289
      %v1939 = vpop.f32.mrb[0].mxu0
      %v1940 = vadd.f32 0.0, %v1939
      %v1941 = vpop.f32.mrb[0].mxu0
      %v1942 = vpop.f32.mrb[0].mxu0
      %v1943 = vadd.f32 0.0, %v1942
      %v1944 = vpop.f32.mrb[0].mxu0
      %1945 = vmatprep.mubr.bf16.mxu0 0
      %1946 = vmatmul.mubr.bf16.gmra.mrb[0].mxu0 %v1290
      %v1947 = vpop.f32.mrb[0].mxu0
      %v1948 = vadd.f32 0.0, %v1947
      %v1949 = vpop.f32.mrb[0].mxu0
      %v1950 = vpop.f32.mrb[0].mxu0
      %v1951 = vadd.f32 0.0, %v1950
      %v1952 = vpop.f32.mrb[0].mxu0
      %1953 = vmatprep.mubr.bf16.mxu0 0
      %1954 = vmatmul.mubr.bf16.gmra.mrb[0].mxu0 %v1291
      %v1955 = vpop.f32.mrb[0].mxu0
      %v1956 = vadd.f32 0.0, %v1955
      %v1957 = vpop.f32.mrb[0].mxu0
      %v1958 = vpop.f32.mrb[0].mxu0
      %v1959 = vadd.f32 0.0, %v1958
      %v1960 = vpop.f32.mrb[0].mxu0
      %1961 = vmatprep.mubr.bf16.mxu0 0
      %1962 = vmatmul.mubr.bf16.gmra.mrb[0].mxu0 %v1292
      %v1963 = vpop.f32.mrb[0].mxu0
      %v1964 = vadd.f32 0.0, %v1963
      %v1965 = vpop.f32.mrb[0].mxu0
      %v1966 = vpop.f32.mrb[0].mxu0
      %v1967 = vadd.f32 0.0, %v1966
      %v1968 = vpop.f32.mrb[0].mxu0
      %1969 = vmatprep.mubr.bf16.mxu0 0
      %1970 = vmatmul.mubr.bf16.gmra.mrb[0].mxu0 %v1293
      %v1971 = vpop.f32.mrb[0].mxu0
      %v1972 = vadd.f32 0.0, %v1971
      %v1973 = vpop.f32.mrb[0].mxu0
      %v1974 = vpop.f32.mrb[0].mxu0
      %v1975 = vadd.f32 0.0, %v1974
      %v1976 = vpop.f32.mrb[0].mxu0
      %1977 = vmatprep.mubr.bf16.mxu0 0
      %1978 = vmatmul.mubr.bf16.gmra.mrb[0].mxu0 %v1294
      %v1979 = vpop.f32.mrb[0].mxu0
      %v1980 = vadd.f32 0.0, %v1979
      %v1981 = vpop.f32.mrb[0].mxu0
      %v1982 = vpop.f32.mrb[0].mxu0
      %v1983 = vadd.f32 0.0, %v1982
      %v1984 = vpop.f32.mrb[0].mxu0
      %1985 = vdwg.mxu0
      %v1986 = vadd.f32 %v1745, %v1860
      %v1987 = vadd.f32 %v1746, %v1863
      %v1988 = vadd.f32 %v1747, %v1868
      %v1989 = vadd.f32 %v1748, %v1871
      %v1990 = vadd.f32 %v1749, %v1876
      %v1991 = vadd.f32 %v1750, %v1879
      %v1992 = vadd.f32 %v1751, %v1884
      %v1993 = vadd.f32 %v1752, %v1887
      %v1994 = vadd.f32 %v1753, %v1892
      %v1995 = vadd.f32 %v1754, %v1895
      %v1996 = vadd.f32 %v1755, %v1900
      %v1997 = vadd.f32 %v1756, %v1903
      %v1998 = vadd.f32 %v1757, %v1908
      %v1999 = vadd.f32 %v1758, %v1911
      %v2000 = vadd.f32 %v1759, %v1916
      %v2001 = vadd.f32 %v1760, %v1919
      %v2002 = vadd.f32 %v1761, %v1924
      %v2003 = vadd.f32 %v1762, %v1927
      %v2004 = vadd.f32 %v1763, %v1932
      %v2005 = vadd.f32 %v1764, %v1935
      %v2006 = vadd.f32 %v1765, %v1940
      %v2007 = vadd.f32 %v1766, %v1943
      %v2008 = vadd.f32 %v1767, %v1948
      %v2009 = vadd.f32 %v1768, %v1951
      %v2010 = vadd.f32 %v1769, %v1956
      %v2011 = vadd.f32 %v1770, %v1959
      %v2012 = vadd.f32 %v1771, %v1964
      %v2013 = vadd.f32 %v1772, %v1967
      %v2014 = vadd.f32 %v1773, %v1972
      %v2015 = vadd.f32 %v1774, %v1975
      %v2016 = vadd.f32 %v1775, %v1980
      %v2017 = vadd.f32 %v1776, %v1983
      %v2018 = vld [vmem:[#allocation2 + $0x2] sm:$0xff]
      %v2019 = vld [vmem:[#allocation2 + $0xa] sm:$0xff]
      %v2020 = vld [vmem:[#allocation2 + $0x1a] sm:$0xff]
      %v2021 = vld [vmem:[#allocation2 + $0x22] sm:$0xff]
      %v2022 = vld [vmem:[#allocation2 + $0x32] sm:$0xff]
      %v2023 = vld [vmem:[#allocation2 + $0x3a] sm:$0xff]
      %v2024 = vld [vmem:[#allocation2 + $0x4a] sm:$0xff]
      %v2025 = vld [vmem:[#allocation2 + $0x52] sm:$0xff]
      %v2026 = vld [vmem:[#allocation2 + $0x62] sm:$0xff]
      %v2027 = vld [vmem:[#allocation2 + $0x6a] sm:$0xff]
      %v2028 = vld [vmem:[#allocation2 + $0x7a] sm:$0xff]
      %v2029 = vld [vmem:[#allocation2 + $0x82] sm:$0xff]
      %v2030 = vld [vmem:[#allocation2 + $0x92] sm:$0xff]
      %v2031 = vld [vmem:[#allocation2 + $0x9a] sm:$0xff]
      %v2032 = vld [vmem:[#allocation2 + $0xaa] sm:$0xff]
      %v2033 = vld [vmem:[#allocation2 + $0xb2] sm:$0xff]
      %v2034 = vld [vmem:[#allocation2 + $0xc2] sm:$0xff]
      %v2035 = vld [vmem:[#allocation2 + $0xca] sm:$0xff]
      %v2036 = vld [vmem:[#allocation2 + $0xda] sm:$0xff]
      %v2037 = vld [vmem:[#allocation2 + $0xe2] sm:$0xff]
      %v2038 = vld [vmem:[#allocation2 + $0xf2] sm:$0xff]
      %v2039 = vld [vmem:[#allocation2 + $0xfa] sm:$0xff]
      %v2040 = vld [vmem:[#allocation2 + $0x10a] sm:$0xff]
      %v2041 = vld [vmem:[#allocation2 + $0x112] sm:$0xff]
      %v2042 = vld [vmem:[#allocation2 + $0x122] sm:$0xff]
      %v2043 = vld [vmem:[#allocation2 + $0x12a] sm:$0xff]
      %v2044 = vld [vmem:[#allocation2 + $0x13a] sm:$0xff]
      %v2045 = vld [vmem:[#allocation2 + $0x142] sm:$0xff]
      %v2046 = vld [vmem:[#allocation2 + $0x152] sm:$0xff]
      %v2047 = vld [vmem:[#allocation2 + $0x15a] sm:$0xff]
      %v2048 = vld [vmem:[#allocation2 + $0x16a] sm:$0xff]
      %v2049 = vld [vmem:[#allocation2 + $0x172] sm:$0xff]
      %v2050 = vld [vmem:[#allocation2 + $0x182] sm:$0xff]
      %v2051 = vld [vmem:[#allocation2 + $0x18a] sm:$0xff]
      %v2052 = vld [vmem:[#allocation2 + $0x19a] sm:$0xff]
      %v2053 = vld [vmem:[#allocation2 + $0x1a2] sm:$0xff]
      %v2054 = vpack.c.bf16 %v2019, %v2018
      %v2055 = vpack.c.bf16 %v2021, %v2020
      %v2056 = vpack.c.bf16 %v2023, %v2022
      %v2057 = vpack.c.bf16 %v2025, %v2024
      %v2058 = vpack.c.bf16 %v2027, %v2026
      %v2059 = vpack.c.bf16 %v2029, %v2028
      %v2060 = vpack.c.bf16 %v2031, %v2030
      %v2061 = vpack.c.bf16 %v2033, %v2032
      %v2062 = vpack.c.bf16 %v2035, %v2034
      %v2063 = vpack.c.bf16 %v2037, %v2036
      %v2064 = vpack.c.bf16 %v2039, %v2038
      %v2065 = vpack.c.bf16 %v2041, %v2040
      %v2066 = vpack.c.bf16 %v2043, %v2042
      %v2067 = vpack.c.bf16 %v2045, %v2044
      %v2068 = vpack.c.bf16 %v2047, %v2046
      %v2069 = vpack.c.bf16 %v2049, %v2048
      %v2070 = vpack.c.bf16 %v2051, %v2050
      %v2071 = vpack.c.bf16 %v2053, %v2052
      %v2088 = vunpack.c.l.b16 %v416
      %v2089 = vunpack.c.l.b16 %v417
      %v2090 = vunpack.c.l.b16 %v418
      %v2091 = vunpack.c.l.b16 %v419
      %v2092 = vunpack.c.l.b16 %v420
      %v2093 = vunpack.c.l.b16 %v421
      %v2094 = vunpack.c.l.b16 %v422
      %v2095 = vunpack.c.l.b16 %v423
      %v2096 = vunpack.c.l.b16 %v424
      %v2097 = vunpack.c.l.b16 %v425
      %v2098 = vunpack.c.l.b16 %v426
      %v2099 = vunpack.c.l.b16 %v427
      %v2100 = vunpack.c.l.b16 %v428
      %v2101 = vunpack.c.l.b16 %v429
      %v2102 = vunpack.c.l.b16 %v430
      %v2103 = vunpack.c.l.b16 %v431
      %v2104 = vpack.c.b16 %v2089, %v2088
      %v2105 = vpack.c.b16 %v2091, %v2090
      %v2106 = vpack.c.b16 %v2093, %v2092
      %v2107 = vpack.c.b16 %v2095, %v2094
      %v2108 = vpack.c.b16 %v2097, %v2096
      %v2109 = vpack.c.b16 %v2099, %v2098
      %v2110 = vpack.c.b16 %v2101, %v2100
      %v2111 = vpack.c.b16 %v2103, %v2102
      %2120 = vmatprep.subr.bf16.mxu0 0
      %2121 = vmatpush1.bf16.msra.mxu0 %v2104
      %2122 = vmatprep.subr.bf16.mxu0 0
      %2123 = vmatpush1.bf16.msra.mxu0 %v2105
      %2124 = vmatprep.subr.bf16.mxu0 0
      %2125 = vmatpush1.bf16.msra.mxu0 %v2106
      %2126 = vmatprep.subr.bf16.mxu0 0
      %2127 = vmatpush1.bf16.msra.mxu0 %v2107
      %2128 = vmatprep.subr.bf16.mxu0 0
      %2129 = vmatpush1.bf16.msra.mxu0 %v2108
      %2130 = vmatprep.subr.bf16.mxu0 0
      %2131 = vmatpush1.bf16.msra.mxu0 %v2109
      %2132 = vmatprep.subr.bf16.mxu0 0
      %2133 = vmatpush1.bf16.msra.mxu0 %v2110
      %2134 = vmatprep.subr.bf16.mxu0 0
      %2135 = vmatpush1.bf16.msra.mxu0 %v2111
      %2136 = vmatprep.subr.bf16.mxu0 0
      %2137 = vmatpush1.bf16.msra.mxu0 0
      %2138 = vmatprep.subr.bf16.mxu0 0
      %2139 = vmatpush1.bf16.msra.mxu0 0
      %2140 = vmatprep.subr.bf16.mxu0 0
      %2141 = vmatpush1.bf16.msra.mxu0 0
      %2142 = vmatprep.subr.bf16.mxu0 0
      %2143 = vmatpush1.bf16.msra.mxu0 0
      %2144 = vmatprep.subr.bf16.mxu0 0
      %2145 = vmatpush1.bf16.msra.mxu0 0
      %2146 = vmatprep.subr.bf16.mxu0 0
      %2147 = vmatpush1.bf16.msra.mxu0 0
      %2148 = vmatprep.subr.bf16.mxu0 0
      %2149 = vmatpush1.bf16.msra.mxu0 0
      %2150 = vmatprep.subr.bf16.mxu0 0
      %2151 = vmatpush1.bf16.msra.mxu0 0
      %2152 = vmatprep.mubr.bf16.mxu0 0
      %2153 = vmatmul.mubr.bf16.gmra.mrb[0].mxu0 %v2054
      %v2154 = vpop.f32.mrb[0].mxu0
      %v2155 = vadd.f32 0.0, %v2154
      %v2156 = vpop.f32.mrb[0].mxu0
      %v2157 = vpop.f32.mrb[0].mxu0
      %v2158 = vadd.f32 0.0, %v2157
      %v2159 = vpop.f32.mrb[0].mxu0
      %2160 = vmatprep.mubr.bf16.mxu0 0
      %2161 = vmatmul.mubr.bf16.gmra.mrb[0].mxu0 %v2055
      %v2162 = vpop.f32.mrb[0].mxu0
      %v2163 = vadd.f32 0.0, %v2162
      %v2164 = vpop.f32.mrb[0].mxu0
      %v2165 = vpop.f32.mrb[0].mxu0
      %v2166 = vadd.f32 0.0, %v2165
      %v2167 = vpop.f32.mrb[0].mxu0
      %2168 = vmatprep.mubr.bf16.mxu0 0
      %2169 = vmatmul.mubr.bf16.gmra.mrb[0].mxu0 %v2056
      %v2170 = vpop.f32.mrb[0].mxu0
      %v2171 = vadd.f32 0.0, %v2170
      %v2172 = vpop.f32.mrb[0].mxu0
      %v2173 = vpop.f32.mrb[0].mxu0
      %v2174 = vadd.f32 0.0, %v2173
      %v2175 = vpop.f32.mrb[0].mxu0
      %2176 = vmatprep.mubr.bf16.mxu0 0
      %2177 = vmatmul.mubr.bf16.gmra.mrb[0].mxu0 %v2057
      %v2178 = vpop.f32.mrb[0].mxu0
      %v2179 = vadd.f32 0.0, %v2178
      %v2180 = vpop.f32.mrb[0].mxu0
      %v2181 = vpop.f32.mrb[0].mxu0
      %v2182 = vadd.f32 0.0, %v2181
      %v2183 = vpop.f32.mrb[0].mxu0
      %2184 = vmatprep.mubr.bf16.mxu0 0
      %2185 = vmatmul.mubr.bf16.gmra.mrb[0].mxu0 %v2058
      %v2186 = vpop.f32.mrb[0].mxu0
      %v2187 = vadd.f32 0.0, %v2186
      %v2188 = vpop.f32.mrb[0].mxu0
      %v2189 = vpop.f32.mrb[0].mxu0
      %v2190 = vadd.f32 0.0, %v2189
      %v2191 = vpop.f32.mrb[0].mxu0
      %2192 = vmatprep.mubr.bf16.mxu0 0
      %2193 = vmatmul.mubr.bf16.gmra.mrb[0].mxu0 %v2059
      %v2194 = vpop.f32.mrb[0].mxu0
      %v2195 = vadd.f32 0.0, %v2194
      %v2196 = vpop.f32.mrb[0].mxu0
      %v2197 = vpop.f32.mrb[0].mxu0
      %v2198 = vadd.f32 0.0, %v2197
      %v2199 = vpop.f32.mrb[0].mxu0
      %2200 = vmatprep.mubr.bf16.mxu0 0
      %2201 = vmatmul.mubr.bf16.gmra.mrb[0].mxu0 %v2060
      %v2202 = vpop.f32.mrb[0].mxu0
      %v2203 = vadd.f32 0.0, %v2202
      %v2204 = vpop.f32.mrb[0].mxu0
      %v2205 = vpop.f32.mrb[0].mxu0
      %v2206 = vadd.f32 0.0, %v2205
      %v2207 = vpop.f32.mrb[0].mxu0
      %2208 = vmatprep.mubr.bf16.mxu0 0
      %2209 = vmatmul.mubr.bf16.gmra.mrb[0].mxu0 %v2061
      %v2210 = vpop.f32.mrb[0].mxu0
      %v2211 = vadd.f32 0.0, %v2210
      %v2212 = vpop.f32.mrb[0].mxu0
      %v2213 = vpop.f32.mrb[0].mxu0
      %v2214 = vadd.f32 0.0, %v2213
      %v2215 = vpop.f32.mrb[0].mxu0
      %2216 = vmatprep.mubr.bf16.mxu0 0
      %2217 = vmatmul.mubr.bf16.gmra.mrb[0].mxu0 %v2062
      %v2218 = vpop.f32.mrb[0].mxu0
      %v2219 = vadd.f32 0.0, %v2218
      %v2220 = vpop.f32.mrb[0].mxu0
      %v2221 = vpop.f32.mrb[0].mxu0
      %v2222 = vadd.f32 0.0, %v2221
      %v2223 = vpop.f32.mrb[0].mxu0
      %2224 = vmatprep.mubr.bf16.mxu0 0
      %2225 = vmatmul.mubr.bf16.gmra.mrb[0].mxu0 %v2063
      %v2226 = vpop.f32.mrb[0].mxu0
      %v2227 = vadd.f32 0.0, %v2226
      %v2228 = vpop.f32.mrb[0].mxu0
      %v2229 = vpop.f32.mrb[0].mxu0
      %v2230 = vadd.f32 0.0, %v2229
      %v2231 = vpop.f32.mrb[0].mxu0
      %2232 = vmatprep.mubr.bf16.mxu0 0
      %2233 = vmatmul.mubr.bf16.gmra.mrb[0].mxu0 %v2064
      %v2234 = vpop.f32.mrb[0].mxu0
      %v2235 = vadd.f32 0.0, %v2234
      %v2236 = vpop.f32.mrb[0].mxu0
      %v2237 = vpop.f32.mrb[0].mxu0
      %v2238 = vadd.f32 0.0, %v2237
      %v2239 = vpop.f32.mrb[0].mxu0
      %2240 = vmatprep.mubr.bf16.mxu0 0
      %2241 = vmatmul.mubr.bf16.gmra.mrb[0].mxu0 %v2065
      %v2242 = vpop.f32.mrb[0].mxu0
      %v2243 = vadd.f32 0.0, %v2242
      %v2244 = vpop.f32.mrb[0].mxu0
      %v2245 = vpop.f32.mrb[0].mxu0
      %v2246 = vadd.f32 0.0, %v2245
      %v2247 = vpop.f32.mrb[0].mxu0
      %2248 = vmatprep.mubr.bf16.mxu0 0
      %2249 = vmatmul.mubr.bf16.gmra.mrb[0].mxu0 %v2066
      %v2250 = vpop.f32.mrb[0].mxu0
      %v2251 = vadd.f32 0.0, %v2250
      %v2252 = vpop.f32.mrb[0].mxu0
      %v2253 = vpop.f32.mrb[0].mxu0
      %v2254 = vadd.f32 0.0, %v2253
      %v2255 = vpop.f32.mrb[0].mxu0
      %2256 = vmatprep.mubr.bf16.mxu0 0
      %2257 = vmatmul.mubr.bf16.gmra.mrb[0].mxu0 %v2067
      %v2258 = vpop.f32.mrb[0].mxu0
      %v2259 = vadd.f32 0.0, %v2258
      %v2260 = vpop.f32.mrb[0].mxu0
      %v2261 = vpop.f32.mrb[0].mxu0
      %v2262 = vadd.f32 0.0, %v2261
      %v2263 = vpop.f32.mrb[0].mxu0
      %2264 = vmatprep.mubr.bf16.mxu0 0
      %2265 = vmatmul.mubr.bf16.gmra.mrb[0].mxu0 %v2068
      %v2266 = vpop.f32.mrb[0].mxu0
      %v2267 = vadd.f32 0.0, %v2266
      %v2268 = vpop.f32.mrb[0].mxu0
      %v2269 = vpop.f32.mrb[0].mxu0
      %v2270 = vadd.f32 0.0, %v2269
      %v2271 = vpop.f32.mrb[0].mxu0
      %2272 = vmatprep.mubr.bf16.mxu0 0
      %2273 = vmatmul.mubr.bf16.gmra.mrb[0].mxu0 %v2069
      %v2274 = vpop.f32.mrb[0].mxu0
      %v2275 = vadd.f32 0.0, %v2274
      %v2276 = vpop.f32.mrb[0].mxu0
      %v2277 = vpop.f32.mrb[0].mxu0
      %v2278 = vadd.f32 0.0, %v2277
      %v2279 = vpop.f32.mrb[0].mxu0
      %2280 = vdwg.mxu0
      %v2281 = vadd.f32 %v1986, %v2155
      %v2282 = vadd.f32 %v1987, %v2158
      %v2283 = vadd.f32 %v1988, %v2163
      %v2284 = vadd.f32 %v1989, %v2166
      %v2285 = vadd.f32 %v1990, %v2171
      %v2286 = vadd.f32 %v1991, %v2174
      %v2287 = vadd.f32 %v1992, %v2179
      %v2288 = vadd.f32 %v1993, %v2182
      %v2289 = vadd.f32 %v1994, %v2187
      %v2290 = vadd.f32 %v1995, %v2190
      %v2291 = vadd.f32 %v1996, %v2195
      %v2292 = vadd.f32 %v1997, %v2198
      %v2293 = vadd.f32 %v1998, %v2203
      %v2294 = vadd.f32 %v1999, %v2206
      %v2295 = vadd.f32 %v2000, %v2211
      %v2296 = vadd.f32 %v2001, %v2214
      %v2297 = vadd.f32 %v2002, %v2219
      %v2298 = vadd.f32 %v2003, %v2222
      %v2299 = vadd.f32 %v2004, %v2227
      %v2300 = vadd.f32 %v2005, %v2230
      %v2301 = vadd.f32 %v2006, %v2235
      %v2302 = vadd.f32 %v2007, %v2238
      %v2303 = vadd.f32 %v2008, %v2243
      %v2304 = vadd.f32 %v2009, %v2246
      %v2305 = vadd.f32 %v2010, %v2251
      %v2306 = vadd.f32 %v2011, %v2254
      %v2307 = vadd.f32 %v2012, %v2259
      %v2308 = vadd.f32 %v2013, %v2262
      %v2309 = vadd.f32 %v2014, %v2267
      %v2310 = vadd.f32 %v2015, %v2270
      %v2311 = vadd.f32 %v2016, %v2275
      %v2312 = vadd.f32 %v2017, %v2278
      %v2329 = vunpack.c.l.b16 %v464
      %v2330 = vunpack.c.l.b16 %v465
      %v2331 = vunpack.c.l.b16 %v466
      %v2332 = vunpack.c.l.b16 %v467
      %v2333 = vunpack.c.l.b16 %v468
      %v2334 = vunpack.c.l.b16 %v469
      %v2335 = vunpack.c.l.b16 %v470
      %v2336 = vunpack.c.l.b16 %v471
      %v2337 = vunpack.c.l.b16 %v472
      %v2338 = vunpack.c.l.b16 %v473
      %v2339 = vunpack.c.l.b16 %v474
      %v2340 = vunpack.c.l.b16 %v475
      %v2341 = vunpack.c.l.b16 %v476
      %v2342 = vunpack.c.l.b16 %v477
      %v2343 = vunpack.c.l.b16 %v478
      %v2344 = vunpack.c.l.b16 %v479
      %v2345 = vpack.c.b16 %v2330, %v2329
      %v2346 = vpack.c.b16 %v2332, %v2331
      %v2347 = vpack.c.b16 %v2334, %v2333
      %v2348 = vpack.c.b16 %v2336, %v2335
      %v2349 = vpack.c.b16 %v2338, %v2337
      %v2350 = vpack.c.b16 %v2340, %v2339
      %v2351 = vpack.c.b16 %v2342, %v2341
      %v2352 = vpack.c.b16 %v2344, %v2343
      %2361 = vmatprep.subr.bf16.mxu0 0
      %2362 = vmatpush1.bf16.msra.mxu0 %v2345
      %2363 = vmatprep.subr.bf16.mxu0 0
      %2364 = vmatpush1.bf16.msra.mxu0 %v2346
      %2365 = vmatprep.subr.bf16.mxu0 0
      %2366 = vmatpush1.bf16.msra.mxu0 %v2347
      %2367 = vmatprep.subr.bf16.mxu0 0
      %2368 = vmatpush1.bf16.msra.mxu0 %v2348
      %2369 = vmatprep.subr.bf16.mxu0 0
      %2370 = vmatpush1.bf16.msra.mxu0 %v2349
      %2371 = vmatprep.subr.bf16.mxu0 0
      %2372 = vmatpush1.bf16.msra.mxu0 %v2350
      %2373 = vmatprep.subr.bf16.mxu0 0
      %2374 = vmatpush1.bf16.msra.mxu0 %v2351
      %2375 = vmatprep.subr.bf16.mxu0 0
      %2376 = vmatpush1.bf16.msra.mxu0 %v2352
      %2377 = vmatprep.subr.bf16.mxu0 0
      %2378 = vmatpush1.bf16.msra.mxu0 0
      %2379 = vmatprep.subr.bf16.mxu0 0
      %2380 = vmatpush1.bf16.msra.mxu0 0
      %2381 = vmatprep.subr.bf16.mxu0 0
      %2382 = vmatpush1.bf16.msra.mxu0 0
      %2383 = vmatprep.subr.bf16.mxu0 0
      %2384 = vmatpush1.bf16.msra.mxu0 0
      %2385 = vmatprep.subr.bf16.mxu0 0
      %2386 = vmatpush1.bf16.msra.mxu0 0
      %2387 = vmatprep.subr.bf16.mxu0 0
      %2388 = vmatpush1.bf16.msra.mxu0 0
      %2389 = vmatprep.subr.bf16.mxu0 0
      %2390 = vmatpush1.bf16.msra.mxu0 0
      %2391 = vmatprep.subr.bf16.mxu0 0
      %2392 = vmatpush1.bf16.msra.mxu0 0
      %2393 = vmatprep.mubr.bf16.mxu0 0
      %2394 = vmatmul.mubr.bf16.gmra.mrb[0].mxu0 %v2055
      %v2395 = vpop.f32.mrb[0].mxu0
      %v2396 = vadd.f32 0.0, %v2395
      %v2397 = vpop.f32.mrb[0].mxu0
      %v2398 = vpop.f32.mrb[0].mxu0
      %v2399 = vadd.f32 0.0, %v2398
      %v2400 = vpop.f32.mrb[0].mxu0
      %2401 = vmatprep.mubr.bf16.mxu0 0
      %2402 = vmatmul.mubr.bf16.gmra.mrb[0].mxu0 %v2056
      %v2403 = vpop.f32.mrb[0].mxu0
      %v2404 = vadd.f32 0.0, %v2403
      %v2405 = vpop.f32.mrb[0].mxu0
      %v2406 = vpop.f32.mrb[0].mxu0
      %v2407 = vadd.f32 0.0, %v2406
      %v2408 = vpop.f32.mrb[0].mxu0
      %2409 = vmatprep.mubr.bf16.mxu0 0
      %2410 = vmatmul.mubr.bf16.gmra.mrb[0].mxu0 %v2057
      %v2411 = vpop.f32.mrb[0].mxu0
      %v2412 = vadd.f32 0.0, %v2411
      %v2413 = vpop.f32.mrb[0].mxu0
      %v2414 = vpop.f32.mrb[0].mxu0
      %v2415 = vadd.f32 0.0, %v2414
      %v2416 = vpop.f32.mrb[0].mxu0
      %2417 = vmatprep.mubr.bf16.mxu0 0
      %2418 = vmatmul.mubr.bf16.gmra.mrb[0].mxu0 %v2058
      %v2419 = vpop.f32.mrb[0].mxu0
      %v2420 = vadd.f32 0.0, %v2419
      %v2421 = vpop.f32.mrb[0].mxu0
      %v2422 = vpop.f32.mrb[0].mxu0
      %v2423 = vadd.f32 0.0, %v2422
      %v2424 = vpop.f32.mrb[0].mxu0
      %2425 = vmatprep.mubr.bf16.mxu0 0
      %2426 = vmatmul.mubr.bf16.gmra.mrb[0].mxu0 %v2059
      %v2427 = vpop.f32.mrb[0].mxu0
      %v2428 = vadd.f32 0.0, %v2427
      %v2429 = vpop.f32.mrb[0].mxu0
      %v2430 = vpop.f32.mrb[0].mxu0
      %v2431 = vadd.f32 0.0, %v2430
      %v2432 = vpop.f32.mrb[0].mxu0
      %2433 = vmatprep.mubr.bf16.mxu0 0
      %2434 = vmatmul.mubr.bf16.gmra.mrb[0].mxu0 %v2060
      %v2435 = vpop.f32.mrb[0].mxu0
      %v2436 = vadd.f32 0.0, %v2435
      %v2437 = vpop.f32.mrb[0].mxu0
      %v2438 = vpop.f32.mrb[0].mxu0
      %v2439 = vadd.f32 0.0, %v2438
      %v2440 = vpop.f32.mrb[0].mxu0
      %2441 = vmatprep.mubr.bf16.mxu0 0
      %2442 = vmatmul.mubr.bf16.gmra.mrb[0].mxu0 %v2061
      %v2443 = vpop.f32.mrb[0].mxu0
      %v2444 = vadd.f32 0.0, %v2443
      %v2445 = vpop.f32.mrb[0].mxu0
      %v2446 = vpop.f32.mrb[0].mxu0
      %v2447 = vadd.f32 0.0, %v2446
      %v2448 = vpop.f32.mrb[0].mxu0
      %2449 = vmatprep.mubr.bf16.mxu0 0
      %2450 = vmatmul.mubr.bf16.gmra.mrb[0].mxu0 %v2062
      %v2451 = vpop.f32.mrb[0].mxu0
      %v2452 = vadd.f32 0.0, %v2451
      %v2453 = vpop.f32.mrb[0].mxu0
      %v2454 = vpop.f32.mrb[0].mxu0
      %v2455 = vadd.f32 0.0, %v2454
      %v2456 = vpop.f32.mrb[0].mxu0
      %2457 = vmatprep.mubr.bf16.mxu0 0
      %2458 = vmatmul.mubr.bf16.gmra.mrb[0].mxu0 %v2063
      %v2459 = vpop.f32.mrb[0].mxu0
      %v2460 = vadd.f32 0.0, %v2459
      %v2461 = vpop.f32.mrb[0].mxu0
      %v2462 = vpop.f32.mrb[0].mxu0
      %v2463 = vadd.f32 0.0, %v2462
      %v2464 = vpop.f32.mrb[0].mxu0
      %2465 = vmatprep.mubr.bf16.mxu0 0
      %2466 = vmatmul.mubr.bf16.gmra.mrb[0].mxu0 %v2064
      %v2467 = vpop.f32.mrb[0].mxu0
      %v2468 = vadd.f32 0.0, %v2467
      %v2469 = vpop.f32.mrb[0].mxu0
      %v2470 = vpop.f32.mrb[0].mxu0
      %v2471 = vadd.f32 0.0, %v2470
      %v2472 = vpop.f32.mrb[0].mxu0
      %2473 = vmatprep.mubr.bf16.mxu0 0
      %2474 = vmatmul.mubr.bf16.gmra.mrb[0].mxu0 %v2065
      %v2475 = vpop.f32.mrb[0].mxu0
      %v2476 = vadd.f32 0.0, %v2475
      %v2477 = vpop.f32.mrb[0].mxu0
      %v2478 = vpop.f32.mrb[0].mxu0
      %v2479 = vadd.f32 0.0, %v2478
      %v2480 = vpop.f32.mrb[0].mxu0
      %2481 = vmatprep.mubr.bf16.mxu0 0
      %2482 = vmatmul.mubr.bf16.gmra.mrb[0].mxu0 %v2066
      %v2483 = vpop.f32.mrb[0].mxu0
      %v2484 = vadd.f32 0.0, %v2483
      %v2485 = vpop.f32.mrb[0].mxu0
      %v2486 = vpop.f32.mrb[0].mxu0
      %v2487 = vadd.f32 0.0, %v2486
      %v2488 = vpop.f32.mrb[0].mxu0
      %2489 = vmatprep.mubr.bf16.mxu0 0
      %2490 = vmatmul.mubr.bf16.gmra.mrb[0].mxu0 %v2067
      %v2491 = vpop.f32.mrb[0].mxu0
      %v2492 = vadd.f32 0.0, %v2491
      %v2493 = vpop.f32.mrb[0].mxu0
      %v2494 = vpop.f32.mrb[0].mxu0
      %v2495 = vadd.f32 0.0, %v2494
      %v2496 = vpop.f32.mrb[0].mxu0
      %2497 = vmatprep.mubr.bf16.mxu0 0
      %2498 = vmatmul.mubr.bf16.gmra.mrb[0].mxu0 %v2068
      %v2499 = vpop.f32.mrb[0].mxu0
      %v2500 = vadd.f32 0.0, %v2499
      %v2501 = vpop.f32.mrb[0].mxu0
      %v2502 = vpop.f32.mrb[0].mxu0
      %v2503 = vadd.f32 0.0, %v2502
      %v2504 = vpop.f32.mrb[0].mxu0
      %2505 = vmatprep.mubr.bf16.mxu0 0
      %2506 = vmatmul.mubr.bf16.gmra.mrb[0].mxu0 %v2069
      %v2507 = vpop.f32.mrb[0].mxu0
      %v2508 = vadd.f32 0.0, %v2507
      %v2509 = vpop.f32.mrb[0].mxu0
      %v2510 = vpop.f32.mrb[0].mxu0
      %v2511 = vadd.f32 0.0, %v2510
      %v2512 = vpop.f32.mrb[0].mxu0
      %2513 = vmatprep.mubr.bf16.mxu0 0
      %2514 = vmatmul.mubr.bf16.gmra.mrb[0].mxu0 %v2070
      %v2515 = vpop.f32.mrb[0].mxu0
      %v2516 = vadd.f32 0.0, %v2515
      %v2517 = vpop.f32.mrb[0].mxu0
      %v2518 = vpop.f32.mrb[0].mxu0
      %v2519 = vadd.f32 0.0, %v2518
      %v2520 = vpop.f32.mrb[0].mxu0
      %2521 = vdwg.mxu0
      %v2522 = vadd.f32 %v2281, %v2396
      %v2523 = vadd.f32 %v2282, %v2399
      %v2524 = vadd.f32 %v2283, %v2404
      %v2525 = vadd.f32 %v2284, %v2407
      %v2526 = vadd.f32 %v2285, %v2412
      %v2527 = vadd.f32 %v2286, %v2415
      %v2528 = vadd.f32 %v2287, %v2420
      %v2529 = vadd.f32 %v2288, %v2423
      %v2530 = vadd.f32 %v2289, %v2428
      %v2531 = vadd.f32 %v2290, %v2431
      %v2532 = vadd.f32 %v2291, %v2436
      %v2533 = vadd.f32 %v2292, %v2439
      %v2534 = vadd.f32 %v2293, %v2444
      %v2535 = vadd.f32 %v2294, %v2447
      %v2536 = vadd.f32 %v2295, %v2452
      %v2537 = vadd.f32 %v2296, %v2455
      %v2538 = vadd.f32 %v2297, %v2460
      %v2539 = vadd.f32 %v2298, %v2463
      %v2540 = vadd.f32 %v2299, %v2468
      %v2541 = vadd.f32 %v2300, %v2471
      %v2542 = vadd.f32 %v2301, %v2476
      %v2543 = vadd.f32 %v2302, %v2479
      %v2544 = vadd.f32 %v2303, %v2484
      %v2545 = vadd.f32 %v2304, %v2487
      %v2546 = vadd.f32 %v2305, %v2492
      %v2547 = vadd.f32 %v2306, %v2495
      %v2548 = vadd.f32 %v2307, %v2500
      %v2549 = vadd.f32 %v2308, %v2503
      %v2550 = vadd.f32 %v2309, %v2508
      %v2551 = vadd.f32 %v2310, %v2511
      %v2552 = vadd.f32 %v2311, %v2516
      %v2553 = vadd.f32 %v2312, %v2519
      %v2570 = vunpack.c.l.b16 %v512
      %v2571 = vunpack.c.l.b16 %v513
      %v2572 = vunpack.c.l.b16 %v514
      %v2573 = vunpack.c.l.b16 %v515
      %v2574 = vunpack.c.l.b16 %v516
      %v2575 = vunpack.c.l.b16 %v517
      %v2576 = vunpack.c.l.b16 %v518
      %v2577 = vunpack.c.l.b16 %v519
      %v2578 = vunpack.c.l.b16 %v520
      %v2579 = vunpack.c.l.b16 %v521
      %v2580 = vunpack.c.l.b16 %v522
      %v2581 = vunpack.c.l.b16 %v523
      %v2582 = vunpack.c.l.b16 %v524
      %v2583 = vunpack.c.l.b16 %v525
      %v2584 = vunpack.c.l.b16 %v526
      %v2585 = vunpack.c.l.b16 %v527
      %v2586 = vpack.c.b16 %v2571, %v2570
      %v2587 = vpack.c.b16 %v2573, %v2572
      %v2588 = vpack.c.b16 %v2575, %v2574
      %v2589 = vpack.c.b16 %v2577, %v2576
      %v2590 = vpack.c.b16 %v2579, %v2578
      %v2591 = vpack.c.b16 %v2581, %v2580
      %v2592 = vpack.c.b16 %v2583, %v2582
      %v2593 = vpack.c.b16 %v2585, %v2584
      %2602 = vmatprep.subr.bf16.mxu0 0
      %2603 = vmatpush1.bf16.msra.mxu0 %v2586
      %2604 = vmatprep.subr.bf16.mxu0 0
      %2605 = vmatpush1.bf16.msra.mxu0 %v2587
      %2606 = vmatprep.subr.bf16.mxu0 0
      %2607 = vmatpush1.bf16.msra.mxu0 %v2588
      %2608 = vmatprep.subr.bf16.mxu0 0
      %2609 = vmatpush1.bf16.msra.mxu0 %v2589
      %2610 = vmatprep.subr.bf16.mxu0 0
      %2611 = vmatpush1.bf16.msra.mxu0 %v2590
      %2612 = vmatprep.subr.bf16.mxu0 0
      %2613 = vmatpush1.bf16.msra.mxu0 %v2591
      %2614 = vmatprep.subr.bf16.mxu0 0
      %2615 = vmatpush1.bf16.msra.mxu0 %v2592
      %2616 = vmatprep.subr.bf16.mxu0 0
      %2617 = vmatpush1.bf16.msra.mxu0 %v2593
      %2618 = vmatprep.subr.bf16.mxu0 0
      %2619 = vmatpush1.bf16.msra.mxu0 0
      %2620 = vmatprep.subr.bf16.mxu0 0
      %2621 = vmatpush1.bf16.msra.mxu0 0
      %2622 = vmatprep.subr.bf16.mxu0 0
      %2623 = vmatpush1.bf16.msra.mxu0 0
      %2624 = vmatprep.subr.bf16.mxu0 0
      %2625 = vmatpush1.bf16.msra.mxu0 0
      %2626 = vmatprep.subr.bf16.mxu0 0
      %2627 = vmatpush1.bf16.msra.mxu0 0
      %2628 = vmatprep.subr.bf16.mxu0 0
      %2629 = vmatpush1.bf16.msra.mxu0 0
      %2630 = vmatprep.subr.bf16.mxu0 0
      %2631 = vmatpush1.bf16.msra.mxu0 0
      %2632 = vmatprep.subr.bf16.mxu0 0
      %2633 = vmatpush1.bf16.msra.mxu0 0
      %2634 = vmatprep.mubr.bf16.mxu0 0
      %2635 = vmatmul.mubr.bf16.gmra.mrb[0].mxu0 %v2056
      %v2636 = vpop.f32.mrb[0].mxu0
      %v2637 = vadd.f32 0.0, %v2636
      %v2638 = vpop.f32.mrb[0].mxu0
      %v2639 = vpop.f32.mrb[0].mxu0
      %v2640 = vadd.f32 0.0, %v2639
      %v2641 = vpop.f32.mrb[0].mxu0
      %2642 = vmatprep.mubr.bf16.mxu0 0
      %2643 = vmatmul.mubr.bf16.gmra.mrb[0].mxu0 %v2057
      %v2644 = vpop.f32.mrb[0].mxu0
      %v2645 = vadd.f32 0.0, %v2644
      %v2646 = vpop.f32.mrb[0].mxu0
      %v2647 = vpop.f32.mrb[0].mxu0
      %v2648 = vadd.f32 0.0, %v2647
      %v2649 = vpop.f32.mrb[0].mxu0
      %2650 = vmatprep.mubr.bf16.mxu0 0
      %2651 = vmatmul.mubr.bf16.gmra.mrb[0].mxu0 %v2058
      %v2652 = vpop.f32.mrb[0].mxu0
      %v2653 = vadd.f32 0.0, %v2652
      %v2654 = vpop.f32.mrb[0].mxu0
      %v2655 = vpop.f32.mrb[0].mxu0
      %v2656 = vadd.f32 0.0, %v2655
      %v2657 = vpop.f32.mrb[0].mxu0
      %2658 = vmatprep.mubr.bf16.mxu0 0
      %2659 = vmatmul.mubr.bf16.gmra.mrb[0].mxu0 %v2059
      %v2660 = vpop.f32.mrb[0].mxu0
      %v2661 = vadd.f32 0.0, %v2660
      %v2662 = vpop.f32.mrb[0].mxu0
      %v2663 = vpop.f32.mrb[0].mxu0
      %v2664 = vadd.f32 0.0, %v2663
      %v2665 = vpop.f32.mrb[0].mxu0
      %2666 = vmatprep.mubr.bf16.mxu0 0
      %2667 = vmatmul.mubr.bf16.gmra.mrb[0].mxu0 %v2060
      %v2668 = vpop.f32.mrb[0].mxu0
      %v2669 = vadd.f32 0.0, %v2668
      %v2670 = vpop.f32.mrb[0].mxu0
      %v2671 = vpop.f32.mrb[0].mxu0
      %v2672 = vadd.f32 0.0, %v2671
      %v2673 = vpop.f32.mrb[0].mxu0
      %2674 = vmatprep.mubr.bf16.mxu0 0
      %2675 = vmatmul.mubr.bf16.gmra.mrb[0].mxu0 %v2061
      %v2676 = vpop.f32.mrb[0].mxu0
      %v2677 = vadd.f32 0.0, %v2676
      %v2678 = vpop.f32.mrb[0].mxu0
      %v2679 = vpop.f32.mrb[0].mxu0
      %v2680 = vadd.f32 0.0, %v2679
      %v2681 = vpop.f32.mrb[0].mxu0
      %2682 = vmatprep.mubr.bf16.mxu0 0
      %2683 = vmatmul.mubr.bf16.gmra.mrb[0].mxu0 %v2062
      %v2684 = vpop.f32.mrb[0].mxu0
      %v2685 = vadd.f32 0.0, %v2684
      %v2686 = vpop.f32.mrb[0].mxu0
      %v2687 = vpop.f32.mrb[0].mxu0
      %v2688 = vadd.f32 0.0, %v2687
      %v2689 = vpop.f32.mrb[0].mxu0
      %2690 = vmatprep.mubr.bf16.mxu0 0
      %2691 = vmatmul.mubr.bf16.gmra.mrb[0].mxu0 %v2063
      %v2692 = vpop.f32.mrb[0].mxu0
      %v2693 = vadd.f32 0.0, %v2692
      %v2694 = vpop.f32.mrb[0].mxu0
      %v2695 = vpop.f32.mrb[0].mxu0
      %v2696 = vadd.f32 0.0, %v2695
      %v2697 = vpop.f32.mrb[0].mxu0
      %2698 = vmatprep.mubr.bf16.mxu0 0
      %2699 = vmatmul.mubr.bf16.gmra.mrb[0].mxu0 %v2064
      %v2700 = vpop.f32.mrb[0].mxu0
      %v2701 = vadd.f32 0.0, %v2700
      %v2702 = vpop.f32.mrb[0].mxu0
      %v2703 = vpop.f32.mrb[0].mxu0
      %v2704 = vadd.f32 0.0, %v2703
      %v2705 = vpop.f32.mrb[0].mxu0
      %2706 = vmatprep.mubr.bf16.mxu0 0
      %2707 = vmatmul.mubr.bf16.gmra.mrb[0].mxu0 %v2065
      %v2708 = vpop.f32.mrb[0].mxu0
      %v2709 = vadd.f32 0.0, %v2708
      %v2710 = vpop.f32.mrb[0].mxu0
      %v2711 = vpop.f32.mrb[0].mxu0
      %v2712 = vadd.f32 0.0, %v2711
      %v2713 = vpop.f32.mrb[0].mxu0
      %2714 = vmatprep.mubr.bf16.mxu0 0
      %2715 = vmatmul.mubr.bf16.gmra.mrb[0].mxu0 %v2066
      %v2716 = vpop.f32.mrb[0].mxu0
      %v2717 = vadd.f32 0.0, %v2716
      %v2718 = vpop.f32.mrb[0].mxu0
      %v2719 = vpop.f32.mrb[0].mxu0
      %v2720 = vadd.f32 0.0, %v2719
      %v2721 = vpop.f32.mrb[0].mxu0
      %2722 = vmatprep.mubr.bf16.mxu0 0
      %2723 = vmatmul.mubr.bf16.gmra.mrb[0].mxu0 %v2067
      %v2724 = vpop.f32.mrb[0].mxu0
      %v2725 = vadd.f32 0.0, %v2724
      %v2726 = vpop.f32.mrb[0].mxu0
      %v2727 = vpop.f32.mrb[0].mxu0
      %v2728 = vadd.f32 0.0, %v2727
      %v2729 = vpop.f32.mrb[0].mxu0
      %2730 = vmatprep.mubr.bf16.mxu0 0
      %2731 = vmatmul.mubr.bf16.gmra.mrb[0].mxu0 %v2068
      %v2732 = vpop.f32.mrb[0].mxu0
      %v2733 = vadd.f32 0.0, %v2732
      %v2734 = vpop.f32.mrb[0].mxu0
      %v2735 = vpop.f32.mrb[0].mxu0
      %v2736 = vadd.f32 0.0, %v2735
      %v2737 = vpop.f32.mrb[0].mxu0
      %2738 = vmatprep.mubr.bf16.mxu0 0
      %2739 = vmatmul.mubr.bf16.gmra.mrb[0].mxu0 %v2069
      %v2740 = vpop.f32.mrb[0].mxu0
      %v2741 = vadd.f32 0.0, %v2740
      %v2742 = vpop.f32.mrb[0].mxu0
      %v2743 = vpop.f32.mrb[0].mxu0
      %v2744 = vadd.f32 0.0, %v2743
      %v2745 = vpop.f32.mrb[0].mxu0
      %2746 = vmatprep.mubr.bf16.mxu0 0
      %2747 = vmatmul.mubr.bf16.gmra.mrb[0].mxu0 %v2070
      %v2748 = vpop.f32.mrb[0].mxu0
      %v2749 = vadd.f32 0.0, %v2748
      %v2750 = vpop.f32.mrb[0].mxu0
      %v2751 = vpop.f32.mrb[0].mxu0
      %v2752 = vadd.f32 0.0, %v2751
      %v2753 = vpop.f32.mrb[0].mxu0
      %2754 = vmatprep.mubr.bf16.mxu0 0
      %2755 = vmatmul.mubr.bf16.gmra.mrb[0].mxu0 %v2071
      %v2756 = vpop.f32.mrb[0].mxu0
      %v2757 = vadd.f32 0.0, %v2756
      %v2758 = vpop.f32.mrb[0].mxu0
      %v2759 = vpop.f32.mrb[0].mxu0
      %v2760 = vadd.f32 0.0, %v2759
      %v2761 = vpop.f32.mrb[0].mxu0
      %2762 = vdwg.mxu0
      %v2763 = vadd.f32 %v2522, %v2637
      %v2764 = vadd.f32 %v2523, %v2640
      %v2765 = vadd.f32 %v2524, %v2645
      %v2766 = vadd.f32 %v2525, %v2648
      %v2767 = vadd.f32 %v2526, %v2653
      %v2768 = vadd.f32 %v2527, %v2656
      %v2769 = vadd.f32 %v2528, %v2661
      %v2770 = vadd.f32 %v2529, %v2664
      %v2771 = vadd.f32 %v2530, %v2669
      %v2772 = vadd.f32 %v2531, %v2672
      %v2773 = vadd.f32 %v2532, %v2677
      %v2774 = vadd.f32 %v2533, %v2680
      %v2775 = vadd.f32 %v2534, %v2685
      %v2776 = vadd.f32 %v2535, %v2688
      %v2777 = vadd.f32 %v2536, %v2693
      %v2778 = vadd.f32 %v2537, %v2696
      %v2779 = vadd.f32 %v2538, %v2701
      %v2780 = vadd.f32 %v2539, %v2704
      %v2781 = vadd.f32 %v2540, %v2709
      %v2782 = vadd.f32 %v2541, %v2712
      %v2783 = vadd.f32 %v2542, %v2717
      %v2784 = vadd.f32 %v2543, %v2720
      %v2785 = vadd.f32 %v2544, %v2725
      %v2786 = vadd.f32 %v2545, %v2728
      %v2787 = vadd.f32 %v2546, %v2733
      %v2788 = vadd.f32 %v2547, %v2736
      %v2789 = vadd.f32 %v2548, %v2741
      %v2790 = vadd.f32 %v2549, %v2744
      %v2791 = vadd.f32 %v2550, %v2749
      %v2792 = vadd.f32 %v2551, %v2752
      %v2793 = vadd.f32 %v2552, %v2757
      %v2794 = vadd.f32 %v2553, %v2760
      %v2795 = vld [vmem:[%s251] sm:$0x1]
      %v2797 = vlaneseq
      %v2798 = vshrl.u32 %v2797, 7
      %v2799 = vsub.s32 0, %v2798
      %v2800 = vrot.slane %v2795, %v2799
      %v2802 = vmul.f32 %v2763, %v2800
      %v2803 = vmul.f32 %v2764, %v2800
      %v2804 = vmul.f32 %v2765, %v2800
      %v2805 = vmul.f32 %v2766, %v2800
      %v2806 = vmul.f32 %v2767, %v2800
      %v2807 = vmul.f32 %v2768, %v2800
      %v2808 = vmul.f32 %v2769, %v2800
      %v2809 = vmul.f32 %v2770, %v2800
      %v2810 = vmul.f32 %v2771, %v2800
      %v2811 = vmul.f32 %v2772, %v2800
      %v2812 = vmul.f32 %v2773, %v2800
      %v2813 = vmul.f32 %v2774, %v2800
      %v2814 = vmul.f32 %v2775, %v2800
      %v2815 = vmul.f32 %v2776, %v2800
      %v2816 = vmul.f32 %v2777, %v2800
      %v2817 = vmul.f32 %v2778, %v2800
      %v2818 = vmul.f32 %v2779, %v2800
      %v2819 = vmul.f32 %v2780, %v2800
      %v2820 = vmul.f32 %v2781, %v2800
      %v2821 = vmul.f32 %v2782, %v2800
      %v2822 = vmul.f32 %v2783, %v2800
      %v2823 = vmul.f32 %v2784, %v2800
      %v2824 = vmul.f32 %v2785, %v2800
      %v2825 = vmul.f32 %v2786, %v2800
      %v2826 = vmul.f32 %v2787, %v2800
      %v2827 = vmul.f32 %v2788, %v2800
      %v2828 = vmul.f32 %v2789, %v2800
      %v2829 = vmul.f32 %v2790, %v2800
      %v2830 = vmul.f32 %v2791, %v2800
      %v2831 = vmul.f32 %v2792, %v2800
      %v2832 = vmul.f32 %v2793, %v2800
      %v2833 = vmul.f32 %v2794, %v2800
      %v2834 = vld [vmem:[%s254] sm:$0x1]
      %v2836 = vlaneseq
      %v2837 = vshrl.u32 %v2836, 7
      %v2838 = vsub.s32 0, %v2837
      %v2839 = vrot.slane %v2834, %v2838
      %v2841 = vadd.f32 %v2802, %v2839
      %v2842 = vadd.f32 %v2803, %v2839
      %v2843 = vadd.f32 %v2804, %v2839
      %v2844 = vadd.f32 %v2805, %v2839
      %v2845 = vadd.f32 %v2806, %v2839
      %v2846 = vadd.f32 %v2807, %v2839
      %v2847 = vadd.f32 %v2808, %v2839
      %v2848 = vadd.f32 %v2809, %v2839
      %v2849 = vadd.f32 %v2810, %v2839
      %v2850 = vadd.f32 %v2811, %v2839
      %v2851 = vadd.f32 %v2812, %v2839
      %v2852 = vadd.f32 %v2813, %v2839
      %v2853 = vadd.f32 %v2814, %v2839
      %v2854 = vadd.f32 %v2815, %v2839
      %v2855 = vadd.f32 %v2816, %v2839
      %v2856 = vadd.f32 %v2817, %v2839
      %v2857 = vadd.f32 %v2818, %v2839
      %v2858 = vadd.f32 %v2819, %v2839
      %v2859 = vadd.f32 %v2820, %v2839
      %v2860 = vadd.f32 %v2821, %v2839
      %v2861 = vadd.f32 %v2822, %v2839
      %v2862 = vadd.f32 %v2823, %v2839
      %v2863 = vadd.f32 %v2824, %v2839
      %v2864 = vadd.f32 %v2825, %v2839
      %v2865 = vadd.f32 %v2826, %v2839
      %v2866 = vadd.f32 %v2827, %v2839
      %v2867 = vadd.f32 %v2828, %v2839
      %v2868 = vadd.f32 %v2829, %v2839
      %v2869 = vadd.f32 %v2830, %v2839
      %v2870 = vadd.f32 %v2831, %v2839
      %v2871 = vadd.f32 %v2832, %v2839
      %v2872 = vadd.f32 %v2833, %v2839
      %v2873 = vxor.u32 %v2841, 2147483648
      %v2874 = vxor.u32 %v2842, 2147483648
      %v2875 = vxor.u32 %v2843, 2147483648
      %v2876 = vxor.u32 %v2844, 2147483648
      %v2877 = vxor.u32 %v2845, 2147483648
      %v2878 = vxor.u32 %v2846, 2147483648
      %v2879 = vxor.u32 %v2847, 2147483648
      %v2880 = vxor.u32 %v2848, 2147483648
      %v2881 = vxor.u32 %v2849, 2147483648
      %v2882 = vxor.u32 %v2850, 2147483648
      %v2883 = vxor.u32 %v2851, 2147483648
      %v2884 = vxor.u32 %v2852, 2147483648
      %v2885 = vxor.u32 %v2853, 2147483648
      %v2886 = vxor.u32 %v2854, 2147483648
      %v2887 = vxor.u32 %v2855, 2147483648
      %v2888 = vxor.u32 %v2856, 2147483648
      %v2889 = vxor.u32 %v2857, 2147483648
      %v2890 = vxor.u32 %v2858, 2147483648
      %v2891 = vxor.u32 %v2859, 2147483648
      %v2892 = vxor.u32 %v2860, 2147483648
      %v2893 = vxor.u32 %v2861, 2147483648
      %v2894 = vxor.u32 %v2862, 2147483648
      %v2895 = vxor.u32 %v2863, 2147483648
      %v2896 = vxor.u32 %v2864, 2147483648
      %v2897 = vxor.u32 %v2865, 2147483648
      %v2898 = vxor.u32 %v2866, 2147483648
      %v2899 = vxor.u32 %v2867, 2147483648
      %v2900 = vxor.u32 %v2868, 2147483648
      %v2901 = vxor.u32 %v2869, 2147483648
      %v2902 = vxor.u32 %v2870, 2147483648
      %v2903 = vxor.u32 %v2871, 2147483648
      %v2904 = vxor.u32 %v2872, 2147483648
      %v2905 = vmul.f32 %v2873, 1.442695
      %v2906 = vpow.pop %v2905
      %v2907 = vmul.f32 %v2874, 1.442695
      %v2908 = vpow.pop %v2907
      %v2909 = vmul.f32 %v2875, 1.442695
      %v2910 = vpow.pop %v2909
      %v2911 = vmul.f32 %v2876, 1.442695
      %v2912 = vpow.pop %v2911
      %v2913 = vmul.f32 %v2877, 1.442695
      %v2914 = vpow.pop %v2913
      %v2915 = vmul.f32 %v2878, 1.442695
      %v2916 = vpow.pop %v2915
      %v2917 = vmul.f32 %v2879, 1.442695
      %v2918 = vpow.pop %v2917
      %v2919 = vmul.f32 %v2880, 1.442695
      %v2920 = vpow.pop %v2919
      %v2921 = vmul.f32 %v2881, 1.442695
      %v2922 = vpow.pop %v2921
      %v2923 = vmul.f32 %v2882, 1.442695
      %v2924 = vpow.pop %v2923
      %v2925 = vmul.f32 %v2883, 1.442695
      %v2926 = vpow.pop %v2925
      %v2927 = vmul.f32 %v2884, 1.442695
      %v2928 = vpow.pop %v2927
      %v2929 = vmul.f32 %v2885, 1.442695
      %v2930 = vpow.pop %v2929
      %v2931 = vmul.f32 %v2886, 1.442695
      %v2932 = vpow.pop %v2931
      %v2933 = vmul.f32 %v2887, 1.442695
      %v2934 = vpow.pop %v2933
      %v2935 = vmul.f32 %v2888, 1.442695
      %v2936 = vpow.pop %v2935
      %v2937 = vmul.f32 %v2889, 1.442695
      %v2938 = vpow.pop %v2937
      %v2939 = vmul.f32 %v2890, 1.442695
      %v2940 = vpow.pop %v2939
      %v2941 = vmul.f32 %v2891, 1.442695
      %v2942 = vpow.pop %v2941
      %v2943 = vmul.f32 %v2892, 1.442695
      %v2944 = vpow.pop %v2943
      %v2945 = vmul.f32 %v2893, 1.442695
      %v2946 = vpow.pop %v2945
      %v2947 = vmul.f32 %v2894, 1.442695
      %v2948 = vpow.pop %v2947
      %v2949 = vmul.f32 %v2895, 1.442695
      %v2950 = vpow.pop %v2949
      %v2951 = vmul.f32 %v2896, 1.442695
      %v2952 = vpow.pop %v2951
      %v2953 = vmul.f32 %v2897, 1.442695
      %v2954 = vpow.pop %v2953
      %v2955 = vmul.f32 %v2898, 1.442695
      %v2956 = vpow.pop %v2955
      %v2957 = vmul.f32 %v2899, 1.442695
      %v2958 = vpow.pop %v2957
      %v2959 = vmul.f32 %v2900, 1.442695
      %v2960 = vpow.pop %v2959
      %v2961 = vmul.f32 %v2901, 1.442695
      %v2962 = vpow.pop %v2961
      %v2963 = vmul.f32 %v2902, 1.442695
      %v2964 = vpow.pop %v2963
      %v2965 = vmul.f32 %v2903, 1.442695
      %v2966 = vpow.pop %v2965
      %v2967 = vmul.f32 %v2904, 1.442695
      %v2968 = vpow.pop %v2967
      %v2969 = vadd.f32 %v2906, 1.0
      %v2970 = vadd.f32 %v2908, 1.0
      %v2971 = vadd.f32 %v2910, 1.0
      %v2972 = vadd.f32 %v2912, 1.0
      %v2973 = vadd.f32 %v2914, 1.0
      %v2974 = vadd.f32 %v2916, 1.0
      %v2975 = vadd.f32 %v2918, 1.0
      %v2976 = vadd.f32 %v2920, 1.0
      %v2977 = vadd.f32 %v2922, 1.0
      %v2978 = vadd.f32 %v2924, 1.0
      %v2979 = vadd.f32 %v2926, 1.0
      %v2980 = vadd.f32 %v2928, 1.0
      %v2981 = vadd.f32 %v2930, 1.0
      %v2982 = vadd.f32 %v2932, 1.0
      %v2983 = vadd.f32 %v2934, 1.0
      %v2984 = vadd.f32 %v2936, 1.0
      %v2985 = vadd.f32 %v2938, 1.0
      %v2986 = vadd.f32 %v2940, 1.0
      %v2987 = vadd.f32 %v2942, 1.0
      %v2988 = vadd.f32 %v2944, 1.0
      %v2989 = vadd.f32 %v2946, 1.0
      %v2990 = vadd.f32 %v2948, 1.0
      %v2991 = vadd.f32 %v2950, 1.0
      %v2992 = vadd.f32 %v2952, 1.0
      %v2993 = vadd.f32 %v2954, 1.0
      %v2994 = vadd.f32 %v2956, 1.0
      %v2995 = vadd.f32 %v2958, 1.0
      %v2996 = vadd.f32 %v2960, 1.0
      %v2997 = vadd.f32 %v2962, 1.0
      %v2998 = vadd.f32 %v2964, 1.0
      %v2999 = vadd.f32 %v2966, 1.0
      %v3000 = vadd.f32 %v2968, 1.0
      %v3001 = vrcp.pop %v2969
      %v3002 = vmul.f32 1.0, %v3001
      %v3003 = vrcp.pop %v2970
      %v3004 = vmul.f32 1.0, %v3003
      %v3005 = vrcp.pop %v2971
      %v3006 = vmul.f32 1.0, %v3005
      %v3007 = vrcp.pop %v2972
      %v3008 = vmul.f32 1.0, %v3007
      %v3009 = vrcp.pop %v2973
      %v3010 = vmul.f32 1.0, %v3009
      %v3011 = vrcp.pop %v2974
      %v3012 = vmul.f32 1.0, %v3011
      %v3013 = vrcp.pop %v2975
      %v3014 = vmul.f32 1.0, %v3013
      %v3015 = vrcp.pop %v2976
      %v3016 = vmul.f32 1.0, %v3015
      %v3017 = vrcp.pop %v2977
      %v3018 = vmul.f32 1.0, %v3017
      %v3019 = vrcp.pop %v2978
      %v3020 = vmul.f32 1.0, %v3019
      %v3021 = vrcp.pop %v2979
      %v3022 = vmul.f32 1.0, %v3021
      %v3023 = vrcp.pop %v2980
      %v3024 = vmul.f32 1.0, %v3023
      %v3025 = vrcp.pop %v2981
      %v3026 = vmul.f32 1.0, %v3025
      %v3027 = vrcp.pop %v2982
      %v3028 = vmul.f32 1.0, %v3027
      %v3029 = vrcp.pop %v2983
      %v3030 = vmul.f32 1.0, %v3029
      %v3031 = vrcp.pop %v2984
      %v3032 = vmul.f32 1.0, %v3031
      %v3033 = vrcp.pop %v2985
      %v3034 = vmul.f32 1.0, %v3033
      %v3035 = vrcp.pop %v2986
      %v3036 = vmul.f32 1.0, %v3035
      %v3037 = vrcp.pop %v2987
      %v3038 = vmul.f32 1.0, %v3037
      %v3039 = vrcp.pop %v2988
      %v3040 = vmul.f32 1.0, %v3039
      %v3041 = vrcp.pop %v2989
      %v3042 = vmul.f32 1.0, %v3041
      %v3043 = vrcp.pop %v2990
      %v3044 = vmul.f32 1.0, %v3043
      %v3045 = vrcp.pop %v2991
      %v3046 = vmul.f32 1.0, %v3045
      %v3047 = vrcp.pop %v2992
      %v3048 = vmul.f32 1.0, %v3047
      %v3049 = vrcp.pop %v2993
      %v3050 = vmul.f32 1.0, %v3049
      %v3051 = vrcp.pop %v2994
      %v3052 = vmul.f32 1.0, %v3051
      %v3053 = vrcp.pop %v2995
      %v3054 = vmul.f32 1.0, %v3053
      %v3055 = vrcp.pop %v2996
      %v3056 = vmul.f32 1.0, %v3055
      %v3057 = vrcp.pop %v2997
      %v3058 = vmul.f32 1.0, %v3057
      %v3059 = vrcp.pop %v2998
      %v3060 = vmul.f32 1.0, %v3059
      %v3061 = vrcp.pop %v2999
      %v3062 = vmul.f32 1.0, %v3061
      %v3063 = vrcp.pop %v3000
      %v3064 = vmul.f32 1.0, %v3063
      %v3065 = vmul.f32 %v2841, %v3002
      %v3066 = vmul.f32 %v2842, %v3004
      %v3067 = vmul.f32 %v2843, %v3006
      %v3068 = vmul.f32 %v2844, %v3008
      %v3069 = vmul.f32 %v2845, %v3010
      %v3070 = vmul.f32 %v2846, %v3012
      %v3071 = vmul.f32 %v2847, %v3014
      %v3072 = vmul.f32 %v2848, %v3016
      %v3073 = vmul.f32 %v2849, %v3018
      %v3074 = vmul.f32 %v2850, %v3020
      %v3075 = vmul.f32 %v2851, %v3022
      %v3076 = vmul.f32 %v2852, %v3024
      %v3077 = vmul.f32 %v2853, %v3026
      %v3078 = vmul.f32 %v2854, %v3028
      %v3079 = vmul.f32 %v2855, %v3030
      %v3080 = vmul.f32 %v2856, %v3032
      %v3081 = vmul.f32 %v2857, %v3034
      %v3082 = vmul.f32 %v2858, %v3036
      %v3083 = vmul.f32 %v2859, %v3038
      %v3084 = vmul.f32 %v2860, %v3040
      %v3085 = vmul.f32 %v2861, %v3042
      %v3086 = vmul.f32 %v2862, %v3044
      %v3087 = vmul.f32 %v2863, %v3046
      %v3088 = vmul.f32 %v2864, %v3048
      %v3089 = vmul.f32 %v2865, %v3050
      %v3090 = vmul.f32 %v2866, %v3052
      %v3091 = vmul.f32 %v2867, %v3054
      %v3092 = vmul.f32 %v2868, %v3056
      %v3093 = vmul.f32 %v2869, %v3058
      %v3094 = vmul.f32 %v2870, %v3060
      %v3095 = vmul.f32 %v2871, %v3062
      %v3096 = vmul.f32 %v2872, %v3064
      %3097 = vst [vmem:[%s262] sm:$0xff] %v3065
      %3098 = vst [vmem:[%s262 + $0x8] sm:$0xff] %v3066
      %3099 = vst [vmem:[%s262 + $0x10] sm:$0xff] %v3067
      %3100 = vst [vmem:[%s262 + $0x18] sm:$0xff] %v3068
      %3101 = vst [vmem:[%s262 + $0x20] sm:$0xff] %v3069
      %3102 = vst [vmem:[%s262 + $0x28] sm:$0xff] %v3070
      %3103 = vst [vmem:[%s262 + $0x30] sm:$0xff] %v3071
      %3104 = vst [vmem:[%s262 + $0x38] sm:$0xff] %v3072
      %3105 = vst [vmem:[%s262 + $0x40] sm:$0xff] %v3073
      %3106 = vst [vmem:[%s262 + $0x48] sm:$0xff] %v3074
      %3107 = vst [vmem:[%s262 + $0x50] sm:$0xff] %v3075
      %3108 = vst [vmem:[%s262 + $0x58] sm:$0xff] %v3076
      %3109 = vst [vmem:[%s262 + $0x60] sm:$0xff] %v3077
      %3110 = vst [vmem:[%s262 + $0x68] sm:$0xff] %v3078
      %3111 = vst [vmem:[%s262 + $0x70] sm:$0xff] %v3079
      %3112 = vst [vmem:[%s262 + $0x78] sm:$0xff] %v3080
      %3113 = vst [vmem:[%s262 + $0x80] sm:$0xff] %v3081
      %3114 = vst [vmem:[%s262 + $0x88] sm:$0xff] %v3082
      %3115 = vst [vmem:[%s262 + $0x90] sm:$0xff] %v3083
      %3116 = vst [vmem:[%s262 + $0x98] sm:$0xff] %v3084
      %3117 = vst [vmem:[%s262 + $0xa0] sm:$0xff] %v3085
      %3118 = vst [vmem:[%s262 + $0xa8] sm:$0xff] %v3086
      %3119 = vst [vmem:[%s262 + $0xb0] sm:$0xff] %v3087
      %3120 = vst [vmem:[%s262 + $0xb8] sm:$0xff] %v3088
      %3121 = vst [vmem:[%s262 + $0xc0] sm:$0xff] %v3089
      %3122 = vst [vmem:[%s262 + $0xc8] sm:$0xff] %v3090
      %3123 = vst [vmem:[%s262 + $0xd0] sm:$0xff] %v3091
      %3124 = vst [vmem:[%s262 + $0xd8] sm:$0xff] %v3092
      %3125 = vst [vmem:[%s262 + $0xe0] sm:$0xff] %v3093
      %3126 = vst [vmem:[%s262 + $0xe8] sm:$0xff] %v3094
      %3127 = vst [vmem:[%s262 + $0xf0] sm:$0xff] %v3095
      %3128 = vst [vmem:[%s262 + $0xf8] sm:$0xff] %v3096
      %p3129 = scmp.lt.s32.totalorder %s19, 1
      %s3130 = scalar_select %p3129, %s19, 1
      %p3131 = scmp.lt.s32.totalorder %s20, 0
      %s3132 = scalar_select %p3131, %s20, 0
      %s3133 = smul.addr %s3130, 32
      %s3134 = sadd.s32 %s3132, %s3133
      %s3135 = smul.addr %s3134, 8
      %s3136 = scalar_lea.vmem %s4, %s3135
      // Predicated region
      $region37: #{conv_forward.1} parent=35 // pred_check
        %p3137 = pneg %p151
      $region38: #{conv_forward.1} parent=35 // pred_check_branch
        %3139 = sbr.rel (%p3137) target = $region40
      $region39: #{conv_forward.1} parent=35 // pred_region
        _
      $region40: #{conv_forward.1} parent=35 // pred_fallthru
        _
    $region36: #{conv_forward.1} parent=5 // pred_fallthru
      _
    %p3140 = scmp.le.s32.totalorder 2, %s10
    // Predicated region
    $region41: #{conv_forward.1} parent=5 // pred_check
      %p3141 = pneg %p3140
    $region42: #{conv_forward.1} parent=5 // pred_check_branch
      %3143 = sbr.rel (%p3141) target = $region44
    $region43: #{conv_forward.1} parent=5 // pred_region
      %s3144 = ssub.s32 %s10, 2
      // Predicated region
      $region45: #{conv_forward.1} parent=43 // pred_check
        %p3145 = pneg %p157
      $region46: #{conv_forward.1} parent=43 // pred_check_branch
        %3147 = sbr.rel (%p3145) target = $region48
      $region47: #{conv_forward.1} parent=43 // pred_region
        %p3148 = scmp.lt.s32.totalorder %s21, 1
        %s3149 = scalar_select %p3148, %s21, 1
        %p3150 = scmp.lt.s32.totalorder %s22, 0
        %s3151 = scalar_select %p3150, %s22, 0
        %s3152 = smul.addr %s3149, 32
        %s3153 = sadd.s32 %s3151, %s3152
        %s3154 = smul.addr %s3153, 8
        %s3155 = scalar_lea.vmem %s4, %s3154
      $region48: #{conv_forward.1} parent=43 // pred_fallthru
        _
    $region44: #{conv_forward.1} parent=5 // pred_fallthru
      _
  $region6: #{conv_forward.1} parent=0 // loop_footer
    %s14 = sadd.s32 1, %s10
  $region7: #{conv_forward.1} parent=0 // loop_footer_branch
    %9 = sbr.rel target = $region3
  $region8: #{conv_forward.1} parent=0 // loop_exit
    _

</llo_original>
